<compile_context>
chip_gen: v7x
topology: tpu7x:2x2x1
jax: 0.10.0
libtpu: 0.0.40
codegen_flags: <defaults>
</compile_context>

<pallas_src>
import functools

import jax
import jax.numpy as jnp
from jax.experimental import pallas as pl
from jax.experimental.pallas import tpu as pltpu


# Row indices of the packed per-layer (NVEC, H) bias/LayerNorm operand.
_EMB_LN_G, _EMB_LN_B = 0, 1          # embedding LayerNorm (used only by the first layer)
_BQ, _BK, _BV, _BO = 2, 3, 4, 5      # attention biases (bq pre-scaled by 1/sqrt(head_dim))
_LN1_G, _LN1_B = 6, 7                # post-attention LayerNorm
_B2 = 8                              # FFN output bias
_LN2_G, _LN2_B = 9, 10               # post-FFN LayerNorm
_NVEC = 11

_SQ_BLOCK = 256                      # query-block rows; >=256 keeps the v6e/v7x MXU M-dim filled


# ------------------------- in-kernel helpers -------------------------

def _layer_norm(x, g, b, eps=1e-12):
    mu = jnp.mean(x, axis=-1, keepdims=True)
    var = jnp.mean((x - mu) ** 2, axis=-1, keepdims=True)
    return (x - mu) * jax.lax.rsqrt(var + eps) * g + b


def _gelu(x):
    # tanh-approximate GELU in x.dtype (bf16 on v6e/v7x, f32 on v5e).
    return 0.5 * x * (1.0 + jnp.tanh(0.7978845608028654 * (x + 0.044715 * x * x * x)))


@functools.lru_cache(maxsize=None)
def _vmem_limit():
    # Explicit scoped-VMEM limit (defaults are only 16 MiB v5e / 32 MiB v6e & v7x).
    try:
        cap = pltpu.get_tpu_info().vmem_capacity_bytes
    except Exception:
        cap = 64 * 1024 * 1024
    return int(cap * 0.85)


@functools.lru_cache(maxsize=None)
def _elementwise_dtype():
    # bf16 VPU/EUP exist on v6e/v7x (2x elementwise/transcendental throughput, half the VMEM
    # for softmax/GELU intermediates); v5e has no bf16 VPU/EUP -> keep f32 there.
    try:
        kind = jax.devices()[0].device_kind.lower()
    except Exception:
        return jnp.float32
    return jnp.bfloat16 if ("v6" in kind or "v7" in kind) else jnp.float32


# ------------------------- fused encoder-layer kernel -------------------------

def bert_layer_kernel(*refs, num_heads, fuse_input_ln, head_mode, compute_dtype):
    """One BERT encoder layer; optionally fuses the embedding LN (first layer) and the
    classifier (+ CrossEntropy reduction) epilogue (last layer)."""
    it = iter(refs)
    x_ref = next(it)
    wqkv_ref = next(it)
    wo_ref = next(it)
    w1_ref = next(it)
    b1_ref = next(it)
    w2_ref = next(it)
    vec_ref = next(it)
    if head_mode is not None:
        wc_ref = next(it)
        bc_ref = next(it)
    if head_mode == "loss":
        y_ref = next(it)
    if head_mode is None:
        o_ref = next(it)
    elif head_mode == "logits":
        logits_ref = next(it)
    else:
        loss_ref = next(it)
        nll_acc = next(it)
        cnt_acc = next(it)

    def vrow(i):                       # packed (1, H) bias/LN row, static slice
        return vec_ref[i:i + 1, :]

    if head_mode == "loss":
        @pl.when(pl.program_id(0) == 0)
        def _():
            nll_acc[0] = 0.0
            cnt_acc[0] = 0.0

    x = x_ref[0].astype(jnp.float32)                       # (S, H), bf16 input from prev layer
    if fuse_input_ln:
        x = _layer_norm(x, vrow(_EMB_LN_G), vrow(_EMB_LN_B))
    S, H = x.shape
    hd = H // num_heads
    xb = x.astype(jnp.bfloat16)

    # Fused QKV: one (S,H)@(H,3H) bf16 MXU matmul, f32 accumulation. 1/sqrt(hd) is pre-folded
    # into the q columns / bias on the host.
    qkv = jnp.dot(xb, wqkv_ref[...], preferred_element_type=jnp.float32)       # (S, 3H) f32
    q = (qkv[:, 0 * H:1 * H] + vrow(_BQ)).astype(jnp.bfloat16)
    k = (qkv[:, 1 * H:2 * H] + vrow(_BK)).astype(jnp.bfloat16)
    v = (qkv[:, 2 * H:3 * H] + vrow(_BV)).astype(jnp.bfloat16)

    nll_sum = 0.0
    cnt_sum = 0.0
    sq = min(_SQ_BLOCK, S)

    for qs in range(0, S, sq):                             # in-kernel query blocking
        x_blk = x[qs:qs + sq, :]
        qb = q[qs:qs + sq, :]

        # Per-head attention on 2-D lane slices (no head-major stack/concat copies of q/k/v).
        ctx_parts = []
        for h in range(num_heads):
            sl = slice(h * hd, (h + 1) * hd)
            s_h = jnp.einsum("qd,kd->qk", qb[:, sl], k[:, sl],
                             preferred_element_type=jnp.float32)               # (sq, S) f32
            m = jnp.max(s_h, axis=-1, keepdims=True)
            p = jnp.exp((s_h - m).astype(compute_dtype))                       # EUP
            denom = jnp.sum(p.astype(jnp.float32), axis=-1, keepdims=True)
            inv = pl.reciprocal(denom, approx=True)                            # EUP slot
            pw = (p * inv.astype(compute_dtype)).astype(jnp.bfloat16)
            ctx_parts.append(jnp.dot(pw, v[:, sl],
                                     preferred_element_type=jnp.float32))      # (sq, hd) f32
        ctx = jnp.concatenate(ctx_parts, axis=-1)                              # (sq, H) f32

        # ONE (sq,H)@(H,H) output projection.
        attn = jnp.dot(ctx.astype(jnp.bfloat16), wo_ref[...],
                       preferred_element_type=jnp.float32) + vrow(_BO)
        h1 = _layer_norm(x_blk + attn, vrow(_LN1_G), vrow(_LN1_B))

        ff = jnp.dot(h1.astype(jnp.bfloat16), w1_ref[...],
                     preferred_element_type=jnp.float32) + b1_ref[...]
        ff = _gelu(ff.astype(compute_dtype))
        ff = jnp.dot(ff.astype(jnp.bfloat16), w2_ref[...],
                     preferred_element_type=jnp.float32) + vrow(_B2)
        out = _layer_norm(h1 + ff, vrow(_LN2_G), vrow(_LN2_B))                 # (sq, H) f32

        if head_mode is None:
            o_ref[0, qs:qs + sq, :] = out.astype(o_ref.dtype)                  # bf16 activation
        else:
            # Fused classifier head: (sq,H)@(H,2); logits never leave VMEM on the loss path.
            logits = jnp.dot(out, wc_ref[...],
                             preferred_element_type=jnp.float32) + bc_ref[...]
            if head_mode == "logits":
                logits_ref[0, qs:qs + sq, :] = logits
            else:
                y_blk = y_ref[0, qs:qs + sq, :]                                # (sq, 1) int32
                z0 = logits[:, 0:1]
                z1 = logits[:, 1:2]
                m = jnp.maximum(z0, z1)
                lse = m + jnp.log(jnp.exp(z0 - m) + jnp.exp(z1 - m))
                valid = y_blk != -100
                picked = jnp.where(y_blk == 1, z1, z0)                         # 2-class head
                nll_sum = nll_sum + jnp.sum(jnp.where(valid, lse - picked, 0.0))
                cnt_sum = cnt_sum + jnp.sum(valid.astype(jnp.float32))

    if head_mode == "loss":
        nll_acc[0] = nll_acc[0] + nll_sum
        cnt_acc[0] = cnt_acc[0] + cnt_sum
        # Running mean; the final (sequential) grid step leaves the correct value.
        loss_ref[0, 0] = nll_acc[0] / jnp.maximum(cnt_acc[0], 1.0)


# ------------------------- wrappers -------------------------

def _wspec(shape):
    # Grid-invariant weight/bias block: constant index_map + single-buffered
    # (no re-DMA across the batch grid, and no wasted second VMEM buffer).
    return pl.BlockSpec(shape, lambda *_: (0,) * len(shape), pipeline_mode=pl.Buffered(1))


def bert_layer(x, lp, num_heads, fuse_input_ln=False, head=None, labels=None):
    """head=None -> (B,S,H) bf16 hidden states; head=('logits', wc, bc) -> (B,S,2) f32 logits;
    head=('loss', wc, bc) with labels -> scalar mean CE loss (ignore_index=-100)."""
    B, S, H = x.shape
    I = lp["w1"].shape[1]
    head_mode = None if head is None else head[0]

    kernel = functools.partial(bert_layer_kernel, num_heads=num_heads,
                               fuse_input_ln=fuse_input_ln, head_mode=head_mode,
                               compute_dtype=_elementwise_dtype())

    in_specs = [pl.BlockSpec((1, S, H), lambda i: (i, 0, 0)),
                _wspec((H, 3 * H)), _wspec((H, H)),
                _wspec((H, I)), _wspec((1, I)), _wspec((I, H)),
                _wspec((_NVEC, H))]
    operands = [x, lp["wqkv"], lp["wo"], lp["w1"], lp["b1"], lp["w2"], lp["vec"]]
    scratch = []

    if head_mode is None:
        out_shape = jax.ShapeDtypeStruct((B, S, H), jnp.bfloat16)      # bf16 inter-layer acts
        out_specs = pl.BlockSpec((1, S, H), lambda i: (i, 0, 0))
        semantics = ("parallel",)
    else:
        wc, bc = head[1], head[2]
        in_specs += [_wspec((H, 2)), _wspec((1, 2))]
        operands += [wc, bc]
        if head_mode == "logits":
            out_shape = jax.ShapeDtypeStruct((B, S, 2), jnp.float32)
            out_specs = pl.BlockSpec((1, S, 2), lambda i: (i, 0, 0))
            semantics = ("parallel",)
        else:
            y3 = labels.reshape(B, S, 1).astype(jnp.int32)
            in_specs.append(pl.BlockSpec((1, S, 1), lambda i: (i, 0, 0)))
            operands.append(y3)
            out_shape = jax.ShapeDtypeStruct((1, 1), jnp.float32)
            out_specs = pl.BlockSpec((1, 1), lambda i: (0, 0),
                                     memory_space=pltpu.MemorySpace.SMEM)
            scratch = [pltpu.SMEM((1,), jnp.float32), pltpu.SMEM((1,), jnp.float32)]
            # CE reduction accumulates across the batch grid -> must stay sequential.
            semantics = ("arbitrary",)

    out = pl.pallas_call(
        kernel,
        out_shape=out_shape,
        grid=(B,),
        in_specs=in_specs,
        out_specs=out_specs,
        scratch_shapes=scratch,
        compiler_params=pltpu.CompilerParams(
            dimension_semantics=semantics,
            vmem_limit_bytes=_vmem_limit()),
    )(*operands)

    return out[0, 0] if head_mode == "loss" else out


def bert_segmentation_forward(params, token_ids, y=None):
    B, S = token_ids.shape
    # Embedding lookups (gather) stay in plain JAX glue; the embedding LayerNorm is fused into
    # the first encoder-layer kernel, and the classifier (+CE) into the last one.
    h = (params["word_emb"][token_ids]
         + params["pos_emb"][:S][None, :, :]
         + params["type_emb"][0][None, None, :]).astype(jnp.float32)
    layers = params["layers"]
    n = len(layers)
    for li, lp in enumerate(layers):
        if li < n - 1:
            h = bert_layer(h, lp, params["num_heads"], fuse_input_ln=(li == 0))
        else:
            head = ("logits" if y is None else "loss", params["wc"], params["bc"])
            return bert_layer(h, lp, params["num_heads"], fuse_input_ln=(li == 0),
                              head=head, labels=y)


# ------------------------- parameters -------------------------

def init_params(key, *, vocab, max_pos, hidden, heads, inter, layers):
    ks = iter(jax.random.split(key, 16 + layers * 20))

    def nrm(shape, scale=0.02):
        return (scale * jax.random.normal(next(ks), shape)).astype(jnp.float32)

    params = {
        "num_heads": heads,
        "word_emb": nrm((vocab, hidden)),
        "pos_emb": nrm((max_pos, hidden)),
        "type_emb": nrm((2, hidden)),
        "emb_ln_g": 1.0 + nrm((hidden,)),
        "emb_ln_b": nrm((hidden,)),
        "wc": nrm((hidden, 2)),
        "bc": nrm((1, 2)),
        "layers": [],
    }
    for _ in range(layers):
        params["layers"].append({
            "wq": nrm((hidden, hidden)), "bq": nrm((hidden,)),
            "wk": nrm((hidden, hidden)), "bk": nrm((hidden,)),
            "wv": nrm((hidden, hidden)), "bv": nrm((hidden,)),
            "wo": nrm((hidden, hidden)), "bo": nrm((hidden,)),
            "ln1_g": 1.0 + nrm((hidden,)), "ln1_b": nrm((hidden,)),
            "w1": nrm((hidden, inter)), "b1": nrm((1, inter)),
            "w2": nrm((inter, hidden)), "b2": nrm((hidden,)),
            "ln2_g": 1.0 + nrm((hidden,)), "ln2_b": nrm((hidden,)),
        })
    return params


def prepare_params(raw):
    """Host-side prep: fold 1/sqrt(head_dim) into Wq/bq, fuse Wq|Wk|Wv into one (H,3H) bf16
    weight, pack the 11 per-layer bias/LayerNorm vectors into one (NVEC,H) f32 operand, and
    cast all big matmul weights to bf16 (f32 MXU accumulation in-kernel)."""
    heads = raw["num_heads"]
    prep = {k: raw[k] for k in ("num_heads", "word_emb", "pos_emb", "type_emb", "wc", "bc")}
    prep["layers"] = []
    for lp in raw["layers"]:
        H = lp["wq"].shape[0]
        hd = H // heads
        scale = 1.0 / float(hd) ** 0.5
        wqkv = jnp.concatenate([lp["wq"] * scale, lp["wk"], lp["wv"]], axis=1)
        vec = jnp.stack([raw["emb_ln_g"], raw["emb_ln_b"],
                         lp["bq"] * scale, lp["bk"], lp["bv"], lp["bo"],
                         lp["ln1_g"], lp["ln1_b"], lp["b2"],
                         lp["ln2_g"], lp["ln2_b"]], axis=0).astype(jnp.float32)
        prep["layers"].append({
            "wqkv": wqkv.astype(jnp.bfloat16),
            "wo": lp["wo"].astype(jnp.bfloat16),
            "w1": lp["w1"].astype(jnp.bfloat16),
            "b1": lp["b1"],
            "w2": lp["w2"].astype(jnp.bfloat16),
            "vec": vec,
        })
    return prep


# --------------- pure-JAX reference (mirrors the kernel's bf16 math) ---------------

def bert_segmentation_reference(prep, token_ids, y=None):
    cdt = _elementwise_dtype()
    B, S = token_ids.shape
    heads = prep["num_heads"]
    h = (prep["word_emb"][token_ids] + prep["pos_emb"][:S][None]
         + prep["type_emb"][0][None, None]).astype(jnp.float32)
    n = len(prep["layers"])
    for li, lp in enumerate(prep["layers"]):
        vec = lp["vec"]
        if li == 0:
            h = _layer_norm(h, vec[_EMB_LN_G], vec[_EMB_LN_B])
        H = h.shape[-1]
        hd = H // heads
        hb = h.astype(jnp.bfloat16)
        qkv = jnp.einsum("bsk,kh->bsh", hb, lp["wqkv"], preferred_element_type=jnp.float32)
        q = (qkv[..., :H] + vec[_BQ]).astype(jnp.bfloat16).reshape(B, S, heads, hd)
        k = (qkv[..., H:2 * H] + vec[_BK]).astype(jnp.bfloat16).reshape(B, S, heads, hd)
        v = (qkv[..., 2 * H:] + vec[_BV]).astype(jnp.bfloat16).reshape(B, S, heads, hd)
        s = jnp.einsum("bqnd,bknd->bnqk", q, k, preferred_element_type=jnp.float32)
        m = jnp.max(s, axis=-1, keepdims=True)
        p = jnp.exp((s - m).astype(cdt)).astype(jnp.float32)
        pw = (p / jnp.sum(p, axis=-1, keepdims=True)).astype(jnp.bfloat16)
        ctx = jnp.einsum("bnqk,bknd->bqnd", pw, v,
                         preferred_element_type=jnp.float32).reshape(B, S, H)
        attn = jnp.einsum("bsk,kh->bsh", ctx.astype(jnp.bfloat16), lp["wo"],
                          preferred_element_type=jnp.float32) + vec[_BO]
        h1 = _layer_norm(h + attn, vec[_LN1_G], vec[_LN1_B])
        ff = jnp.einsum("bsk,ki->bsi", h1.astype(jnp.bfloat16), lp["w1"],
                        preferred_element_type=jnp.float32) + lp["b1"]
        ff = _gelu(ff.astype(cdt))
        ff = jnp.einsum("bsi,ik->bsk", ff.astype(jnp.bfloat16), lp["w2"],
                        preferred_element_type=jnp.float32) + vec[_B2]
        h = _layer_norm(h1 + ff, vec[_LN2_G], vec[_LN2_B])
        if li != n - 1:
            h = h.astype(jnp.bfloat16).astype(jnp.float32)   # mirror bf16 inter-layer store
    logits = jnp.einsum("bsk,kc->bsc", h, prep["wc"],
                        preferred_element_type=jnp.float32) + prep["bc"]
    if y is None:
        return logits
    z = logits.reshape(-1, 2)
    yy = y.reshape(-1)
    lse = jax.scipy.special.logsumexp(z, axis=-1)
    picked = jnp.where(yy == 1, z[:, 1], z[:, 0])
    valid = yy != -100
    nll = jnp.where(valid, lse - picked, 0.0)
    return jnp.sum(nll) / jnp.maximum(jnp.sum(valid.astype(jnp.float32)), 1.0)


# ------------------------- demo -------------------------

if __name__ == "__main__":
    # Small but tile-friendly demo config: head_dim = 256 / 2 = 128 (lane-aligned).
    B, S = 2, 128
    VOCAB, HIDDEN, HEADS, INTER, LAYERS, MAXPOS = 64, 256, 2, 512, 2, 512

    key = jax.random.PRNGKey(0)
    kp, kx, ky = jax.random.split(key, 3)
    raw = init_params(kp, vocab=VOCAB, max_pos=MAXPOS, hidden=HIDDEN,
                      heads=HEADS, inter=INTER, layers=LAYERS)
    params = prepare_params(raw)

    token_ids = jax.random.randint(kx, (B, S), 0, VOCAB, dtype=jnp.int32)
    labels = jax.random.randint(ky, (B, S), 0, 2, dtype=jnp.int32)
    labels = labels.at[:, 0].set(-100)   # exercise ignore_index=-100

    # forward without labels -> per-token logits (B, S, 2)
    y_pred = jax.block_until_ready(bert_segmentation_forward(params, token_ids))
    assert y_pred.shape == (B, S, 2)

    # forward with labels -> scalar cross-entropy loss
    loss = jax.block_until_ready(bert_segmentation_forward(params, token_ids, labels))
    assert loss.shape == ()

    # correctness sanity check against a pure-JAX reference using the same bf16 math
    y_ref = bert_segmentation_reference(params, token_ids)
    loss_ref = bert_segmentation_reference(params, token_ids, labels)
    assert bool(jnp.all(jnp.isfinite(y_pred))) and bool(jnp.isfinite(loss))
    assert bool(jnp.allclose(y_pred, y_ref, atol=5e-2, rtol=5e-2)), "logits mismatch vs reference"
    assert abs(float(loss) - float(loss_ref)) < 5e-2, "loss mismatch vs reference"

    print("KERNEL_OK")
</pallas_src>

<mosaic_0001>
module attributes {stable_mosaic.version = 11 : i64} {
  func.func @bert_layer_kernel(%arg0: i32, %arg1: memref<1x128x256xf32, #tpu.memory_space<vmem>>, %arg2: memref<256x768xbf16, #tpu.memory_space<vmem>>, %arg3: memref<256x256xbf16, #tpu.memory_space<vmem>>, %arg4: memref<256x512xbf16, #tpu.memory_space<vmem>>, %arg5: memref<1x512xf32, #tpu.memory_space<vmem>>, %arg6: memref<512x256xbf16, #tpu.memory_space<vmem>>, %arg7: memref<11x256xf32, #tpu.memory_space<vmem>>, %arg8: memref<1x128x256xbf16, #tpu.memory_space<vmem>>) attributes {dimension_semantics = [#tpu.dimension_semantics<parallel>], iteration_bounds = array<i64: 2>, scalar_prefetch = 0 : i64, scratch_operands = 0 : i64, tpu.core_type = #tpu.core_type<tc>, window_params = [{transform_indices = @transform_0, window_bounds = array<i64: 1, 128, 256>}, {pipeline_mode = #tpu.pipeline_mode<synchronous>, transform_indices = @transform_1, window_bounds = array<i64: 256, 768>}, {pipeline_mode = #tpu.pipeline_mode<synchronous>, transform_indices = @transform_2, window_bounds = array<i64: 256, 256>}, {pipeline_mode = #tpu.pipeline_mode<synchronous>, transform_indices = @transform_3, window_bounds = array<i64: 256, 512>}, {pipeline_mode = #tpu.pipeline_mode<synchronous>, transform_indices = @transform_4, window_bounds = array<i64: 1, 512>}, {pipeline_mode = #tpu.pipeline_mode<synchronous>, transform_indices = @transform_5, window_bounds = array<i64: 512, 256>}, {pipeline_mode = #tpu.pipeline_mode<synchronous>, transform_indices = @transform_6, window_bounds = array<i64: 11, 256>}, {transform_indices = @transform_7, window_bounds = array<i64: 1, 128, 256>}]} {
    %c0 = arith.constant 0 : index
    %c0_0 = arith.constant 0 : index
    %c0_1 = arith.constant 0 : index
    %0 = vector.load %arg1[%c0, %c0_0, %c0_1] : memref<1x128x256xf32, #tpu.memory_space<vmem>>, vector<1x128x256xf32>
    %1 = vector.shape_cast %0 : vector<1x128x256xf32> to vector<128x256xf32>
    %c0_2 = arith.constant 0 : index
    %c0_3 = arith.constant 0 : index
    %2 = vector.load %arg7[%c0_2, %c0_3] : memref<11x256xf32, #tpu.memory_space<vmem>>, vector<1x256xf32>
    %c1 = arith.constant 1 : index
    %c0_4 = arith.constant 0 : index
    %3 = vector.load %arg7[%c1, %c0_4] : memref<11x256xf32, #tpu.memory_space<vmem>>, vector<1x256xf32>
    %cst = arith.constant dense<0.000000e+00> : vector<128xf32>
    %4 = vector.multi_reduction <add>, %1, %cst [1] : vector<128x256xf32> to vector<128xf32>
    %5 = vector.shape_cast %4 : vector<128xf32> to vector<128x1xf32>
    %cst_5 = arith.constant 2.560000e+02 : f32
    %6 = vector.broadcast %cst_5 : f32 to vector<128x1xf32>
    %7 = arith.divf %5, %6 : vector<128x1xf32>
    %8 = vector.broadcast %7 : vector<128x1xf32> to vector<128x256xf32>
    %9 = arith.subf %1, %8 : vector<128x256xf32>
    %10 = arith.mulf %9, %9 : vector<128x256xf32>
    %cst_6 = arith.constant dense<0.000000e+00> : vector<128xf32>
    %11 = vector.multi_reduction <add>, %10, %cst_6 [1] : vector<128x256xf32> to vector<128xf32>
    %12 = vector.shape_cast %11 : vector<128xf32> to vector<128x1xf32>
    %cst_7 = arith.constant 2.560000e+02 : f32
    %13 = vector.broadcast %cst_7 : f32 to vector<128x1xf32>
    %14 = arith.divf %12, %13 : vector<128x1xf32>
    %15 = vector.broadcast %7 : vector<128x1xf32> to vector<128x256xf32>
    %16 = arith.subf %1, %15 : vector<128x256xf32>
    %cst_8 = arith.constant 9.99999996E-13 : f32
    %17 = vector.broadcast %cst_8 : f32 to vector<128x1xf32>
    %18 = arith.addf %14, %17 : vector<128x1xf32>
    %19 = math.rsqrt %18 : vector<128x1xf32>
    %20 = vector.broadcast %19 : vector<128x1xf32> to vector<128x256xf32>
    %21 = arith.mulf %16, %20 : vector<128x256xf32>
    %22 = vector.broadcast %2 : vector<1x256xf32> to vector<128x256xf32>
    %23 = arith.mulf %21, %22 : vector<128x256xf32>
    %24 = vector.broadcast %3 : vector<1x256xf32> to vector<128x256xf32>
    %25 = arith.addf %23, %24 : vector<128x256xf32>
    %26 = arith.truncf %25 : vector<128x256xf32> to vector<128x256xbf16>
    %c0_9 = arith.constant 0 : index
    %c0_10 = arith.constant 0 : index
    %27 = vector.load %arg2[%c0_9, %c0_10] : memref<256x768xbf16, #tpu.memory_space<vmem>>, vector<256x768xbf16>
    %cst_11 = arith.constant dense<0.000000e+00> : vector<128x768xf32>
    %28 = tpu.matmul %26, %27, %cst_11 {dimension_numbers = #tpu.dot_dimension_numbers<[1], [0], [0], [1], [0, 0, 1, 1], [], []>} : vector<128x256xbf16>, vector<256x768xbf16>, vector<128x768xf32> -> vector<128x768xf32>
    %29 = vector.extract_strided_slice %28 {offsets = [0, 0], sizes = [128, 256], strides = [1, 1]} : vector<128x768xf32> to vector<128x256xf32>
    %c2 = arith.constant 2 : index
    %c0_12 = arith.constant 0 : index
    %30 = vector.load %arg7[%c2, %c0_12] : memref<11x256xf32, #tpu.memory_space<vmem>>, vector<1x256xf32>
    %31 = vector.broadcast %30 : vector<1x256xf32> to vector<128x256xf32>
    %32 = arith.addf %29, %31 : vector<128x256xf32>
    %33 = arith.truncf %32 : vector<128x256xf32> to vector<128x256xbf16>
    %34 = vector.extract_strided_slice %28 {offsets = [0, 256], sizes = [128, 256], strides = [1, 1]} : vector<128x768xf32> to vector<128x256xf32>
    %c3 = arith.constant 3 : index
    %c0_13 = arith.constant 0 : index
    %35 = vector.load %arg7[%c3, %c0_13] : memref<11x256xf32, #tpu.memory_space<vmem>>, vector<1x256xf32>
    %36 = vector.broadcast %35 : vector<1x256xf32> to vector<128x256xf32>
    %37 = arith.addf %34, %36 : vector<128x256xf32>
    %38 = arith.truncf %37 : vector<128x256xf32> to vector<128x256xbf16>
    %39 = vector.extract_strided_slice %28 {offsets = [0, 512], sizes = [128, 256], strides = [1, 1]} : vector<128x768xf32> to vector<128x256xf32>
    %c4 = arith.constant 4 : index
    %c0_14 = arith.constant 0 : index
    %40 = vector.load %arg7[%c4, %c0_14] : memref<11x256xf32, #tpu.memory_space<vmem>>, vector<1x256xf32>
    %41 = vector.broadcast %40 : vector<1x256xf32> to vector<128x256xf32>
    %42 = arith.addf %39, %41 : vector<128x256xf32>
    %43 = arith.truncf %42 : vector<128x256xf32> to vector<128x256xbf16>
    %44 = vector.extract_strided_slice %33 {offsets = [0, 0], sizes = [128, 128], strides = [1, 1]} : vector<128x256xbf16> to vector<128x128xbf16>
    %45 = vector.extract_strided_slice %38 {offsets = [0, 0], sizes = [128, 128], strides = [1, 1]} : vector<128x256xbf16> to vector<128x128xbf16>
    "tpu.trace_start"() <{level = 10 : i32, message = "qd,kd->qk"}> : () -> ()
    %cst_15 = arith.constant dense<0.000000e+00> : vector<128x128xf32>
    %46 = tpu.matmul %44, %45, %cst_15 {dimension_numbers = #tpu.dot_dimension_numbers<[1], [1], [0], [0], [0, 0, 1, 0], [], []>} : vector<128x128xbf16>, vector<128x128xbf16>, vector<128x128xf32> -> vector<128x128xf32>
    "tpu.trace_stop"() : () -> ()
    %cst_16 = arith.constant dense<0xFF800000> : vector<128xf32>
    %47 = vector.multi_reduction <maximumf>, %46, %cst_16 [1] : vector<128x128xf32> to vector<128xf32>
    %48 = vector.shape_cast %47 : vector<128xf32> to vector<128x1xf32>
    %49 = vector.broadcast %48 : vector<128x1xf32> to vector<128x128xf32>
    %50 = arith.subf %46, %49 : vector<128x128xf32>
    %51 = math.exp %50 : vector<128x128xf32>
    %cst_17 = arith.constant dense<0.000000e+00> : vector<128xf32>
    %52 = vector.multi_reduction <add>, %51, %cst_17 [1] : vector<128x128xf32> to vector<128xf32>
    %53 = vector.shape_cast %52 : vector<128xf32> to vector<128x1xf32>
    %54 = tpu.reciprocal %53 {approx = true} : vector<128x1xf32> -> vector<128x1xf32>
    %55 = vector.broadcast %54 : vector<128x1xf32> to vector<128x128xf32>
    %56 = arith.mulf %51, %55 : vector<128x128xf32>
    %57 = arith.truncf %56 : vector<128x128xf32> to vector<128x128xbf16>
    %58 = vector.extract_strided_slice %43 {offsets = [0, 0], sizes = [128, 128], strides = [1, 1]} : vector<128x256xbf16> to vector<128x128xbf16>
    %cst_18 = arith.constant dense<0.000000e+00> : vector<128x128xf32>
    %59 = tpu.matmul %57, %58, %cst_18 {dimension_numbers = #tpu.dot_dimension_numbers<[1], [0], [0], [1], [0, 0, 1, 1], [], []>} : vector<128x128xbf16>, vector<128x128xbf16>, vector<128x128xf32> -> vector<128x128xf32>
    %60 = vector.extract_strided_slice %33 {offsets = [0, 128], sizes = [128, 128], strides = [1, 1]} : vector<128x256xbf16> to vector<128x128xbf16>
    %61 = vector.extract_strided_slice %38 {offsets = [0, 128], sizes = [128, 128], strides = [1, 1]} : vector<128x256xbf16> to vector<128x128xbf16>
    "tpu.trace_start"() <{level = 10 : i32, message = "qd,kd->qk"}> : () -> ()
    %cst_19 = arith.constant dense<0.000000e+00> : vector<128x128xf32>
    %62 = tpu.matmul %60, %61, %cst_19 {dimension_numbers = #tpu.dot_dimension_numbers<[1], [1], [0], [0], [0, 0, 1, 0], [], []>} : vector<128x128xbf16>, vector<128x128xbf16>, vector<128x128xf32> -> vector<128x128xf32>
    "tpu.trace_stop"() : () -> ()
    %cst_20 = arith.constant dense<0xFF800000> : vector<128xf32>
    %63 = vector.multi_reduction <maximumf>, %62, %cst_20 [1] : vector<128x128xf32> to vector<128xf32>
    %64 = vector.shape_cast %63 : vector<128xf32> to vector<128x1xf32>
    %65 = vector.broadcast %64 : vector<128x1xf32> to vector<128x128xf32>
    %66 = arith.subf %62, %65 : vector<128x128xf32>
    %67 = math.exp %66 : vector<128x128xf32>
    %cst_21 = arith.constant dense<0.000000e+00> : vector<128xf32>
    %68 = vector.multi_reduction <add>, %67, %cst_21 [1] : vector<128x128xf32> to vector<128xf32>
    %69 = vector.shape_cast %68 : vector<128xf32> to vector<128x1xf32>
    %70 = tpu.reciprocal %69 {approx = true} : vector<128x1xf32> -> vector<128x1xf32>
    %71 = vector.broadcast %70 : vector<128x1xf32> to vector<128x128xf32>
    %72 = arith.mulf %67, %71 : vector<128x128xf32>
    %73 = arith.truncf %72 : vector<128x128xf32> to vector<128x128xbf16>
    %74 = vector.extract_strided_slice %43 {offsets = [0, 128], sizes = [128, 128], strides = [1, 1]} : vector<128x256xbf16> to vector<128x128xbf16>
    %cst_22 = arith.constant dense<0.000000e+00> : vector<128x128xf32>
    %75 = tpu.matmul %73, %74, %cst_22 {dimension_numbers = #tpu.dot_dimension_numbers<[1], [0], [0], [1], [0, 0, 1, 1], [], []>} : vector<128x128xbf16>, vector<128x128xbf16>, vector<128x128xf32> -> vector<128x128xf32>
    %76 = tpu.concatenate %59, %75 in 1 : vector<128x128xf32>, vector<128x128xf32> -> vector<128x256xf32>
    %77 = arith.truncf %76 : vector<128x256xf32> to vector<128x256xbf16>
    %c0_23 = arith.constant 0 : index
    %c0_24 = arith.constant 0 : index
    %78 = vector.load %arg3[%c0_23, %c0_24] : memref<256x256xbf16, #tpu.memory_space<vmem>>, vector<256x256xbf16>
    %cst_25 = arith.constant dense<0.000000e+00> : vector<128x256xf32>
    %79 = tpu.matmul %77, %78, %cst_25 {dimension_numbers = #tpu.dot_dimension_numbers<[1], [0], [0], [1], [0, 0, 1, 1], [], []>} : vector<128x256xbf16>, vector<256x256xbf16>, vector<128x256xf32> -> vector<128x256xf32>
    %c5 = arith.constant 5 : index
    %c0_26 = arith.constant 0 : index
    %80 = vector.load %arg7[%c5, %c0_26] : memref<11x256xf32, #tpu.memory_space<vmem>>, vector<1x256xf32>
    %81 = vector.broadcast %80 : vector<1x256xf32> to vector<128x256xf32>
    %82 = arith.addf %79, %81 : vector<128x256xf32>
    %83 = arith.addf %25, %82 : vector<128x256xf32>
    %c6 = arith.constant 6 : index
    %c0_27 = arith.constant 0 : index
    %84 = vector.load %arg7[%c6, %c0_27] : memref<11x256xf32, #tpu.memory_space<vmem>>, vector<1x256xf32>
    %c7 = arith.constant 7 : index
    %c0_28 = arith.constant 0 : index
    %85 = vector.load %arg7[%c7, %c0_28] : memref<11x256xf32, #tpu.memory_space<vmem>>, vector<1x256xf32>
    %cst_29 = arith.constant dense<0.000000e+00> : vector<128xf32>
    %86 = vector.multi_reduction <add>, %83, %cst_29 [1] : vector<128x256xf32> to vector<128xf32>
    %87 = vector.shape_cast %86 : vector<128xf32> to vector<128x1xf32>
    %cst_30 = arith.constant 2.560000e+02 : f32
    %88 = vector.broadcast %cst_30 : f32 to vector<128x1xf32>
    %89 = arith.divf %87, %88 : vector<128x1xf32>
    %90 = vector.broadcast %89 : vector<128x1xf32> to vector<128x256xf32>
    %91 = arith.subf %83, %90 : vector<128x256xf32>
    %92 = arith.mulf %91, %91 : vector<128x256xf32>
    %cst_31 = arith.constant dense<0.000000e+00> : vector<128xf32>
    %93 = vector.multi_reduction <add>, %92, %cst_31 [1] : vector<128x256xf32> to vector<128xf32>
    %94 = vector.shape_cast %93 : vector<128xf32> to vector<128x1xf32>
    %cst_32 = arith.constant 2.560000e+02 : f32
    %95 = vector.broadcast %cst_32 : f32 to vector<128x1xf32>
    %96 = arith.divf %94, %95 : vector<128x1xf32>
    %97 = vector.broadcast %89 : vector<128x1xf32> to vector<128x256xf32>
    %98 = arith.subf %83, %97 : vector<128x256xf32>
    %cst_33 = arith.constant 9.99999996E-13 : f32
    %99 = vector.broadcast %cst_33 : f32 to vector<128x1xf32>
    %100 = arith.addf %96, %99 : vector<128x1xf32>
    %101 = math.rsqrt %100 : vector<128x1xf32>
    %102 = vector.broadcast %101 : vector<128x1xf32> to vector<128x256xf32>
    %103 = arith.mulf %98, %102 : vector<128x256xf32>
    %104 = vector.broadcast %84 : vector<1x256xf32> to vector<128x256xf32>
    %105 = arith.mulf %103, %104 : vector<128x256xf32>
    %106 = vector.broadcast %85 : vector<1x256xf32> to vector<128x256xf32>
    %107 = arith.addf %105, %106 : vector<128x256xf32>
    %108 = arith.truncf %107 : vector<128x256xf32> to vector<128x256xbf16>
    %c0_34 = arith.constant 0 : index
    %c0_35 = arith.constant 0 : index
    %109 = vector.load %arg4[%c0_34, %c0_35] : memref<256x512xbf16, #tpu.memory_space<vmem>>, vector<256x512xbf16>
    %cst_36 = arith.constant dense<0.000000e+00> : vector<128x512xf32>
    %110 = tpu.matmul %108, %109, %cst_36 {dimension_numbers = #tpu.dot_dimension_numbers<[1], [0], [0], [1], [0, 0, 1, 1], [], []>} : vector<128x256xbf16>, vector<256x512xbf16>, vector<128x512xf32> -> vector<128x512xf32>
    %c0_37 = arith.constant 0 : index
    %c0_38 = arith.constant 0 : index
    %111 = vector.load %arg5[%c0_37, %c0_38] : memref<1x512xf32, #tpu.memory_space<vmem>>, vector<1x512xf32>
    %112 = vector.broadcast %111 : vector<1x512xf32> to vector<128x512xf32>
    %113 = arith.addf %110, %112 : vector<128x512xf32>
    %cst_39 = arith.constant 5.000000e-01 : f32
    %114 = vector.broadcast %cst_39 : f32 to vector<128x512xf32>
    %115 = arith.mulf %114, %113 : vector<128x512xf32>
    %cst_40 = arith.constant 4.471500e-02 : f32
    %116 = vector.broadcast %cst_40 : f32 to vector<128x512xf32>
    %117 = arith.mulf %116, %113 : vector<128x512xf32>
    %118 = arith.mulf %117, %113 : vector<128x512xf32>
    %119 = arith.mulf %118, %113 : vector<128x512xf32>
    %120 = arith.addf %113, %119 : vector<128x512xf32>
    %cst_41 = arith.constant 0.797884583 : f32
    %121 = vector.broadcast %cst_41 : f32 to vector<128x512xf32>
    %122 = arith.mulf %121, %120 : vector<128x512xf32>
    %123 = math.tanh %122 : vector<128x512xf32>
    %cst_42 = arith.constant 1.000000e+00 : f32
    %124 = vector.broadcast %cst_42 : f32 to vector<128x512xf32>
    %125 = arith.addf %124, %123 : vector<128x512xf32>
    %126 = arith.mulf %115, %125 : vector<128x512xf32>
    %127 = arith.truncf %126 : vector<128x512xf32> to vector<128x512xbf16>
    %c0_43 = arith.constant 0 : index
    %c0_44 = arith.constant 0 : index
    %128 = vector.load %arg6[%c0_43, %c0_44] : memref<512x256xbf16, #tpu.memory_space<vmem>>, vector<512x256xbf16>
    %cst_45 = arith.constant dense<0.000000e+00> : vector<128x256xf32>
    %129 = tpu.matmul %127, %128, %cst_45 {dimension_numbers = #tpu.dot_dimension_numbers<[1], [0], [0], [1], [0, 0, 1, 1], [], []>} : vector<128x512xbf16>, vector<512x256xbf16>, vector<128x256xf32> -> vector<128x256xf32>
    %c8 = arith.constant 8 : index
    %c0_46 = arith.constant 0 : index
    %130 = vector.load %arg7[%c8, %c0_46] : memref<11x256xf32, #tpu.memory_space<vmem>>, vector<1x256xf32>
    %131 = vector.broadcast %130 : vector<1x256xf32> to vector<128x256xf32>
    %132 = arith.addf %129, %131 : vector<128x256xf32>
    %133 = arith.addf %107, %132 : vector<128x256xf32>
    %c9 = arith.constant 9 : index
    %c0_47 = arith.constant 0 : index
    %134 = vector.load %arg7[%c9, %c0_47] : memref<11x256xf32, #tpu.memory_space<vmem>>, vector<1x256xf32>
    %c10 = arith.constant 10 : index
    %c0_48 = arith.constant 0 : index
    %135 = vector.load %arg7[%c10, %c0_48] : memref<11x256xf32, #tpu.memory_space<vmem>>, vector<1x256xf32>
    %cst_49 = arith.constant dense<0.000000e+00> : vector<128xf32>
    %136 = vector.multi_reduction <add>, %133, %cst_49 [1] : vector<128x256xf32> to vector<128xf32>
    %137 = vector.shape_cast %136 : vector<128xf32> to vector<128x1xf32>
    %cst_50 = arith.constant 2.560000e+02 : f32
    %138 = vector.broadcast %cst_50 : f32 to vector<128x1xf32>
    %139 = arith.divf %137, %138 : vector<128x1xf32>
    %140 = vector.broadcast %139 : vector<128x1xf32> to vector<128x256xf32>
    %141 = arith.subf %133, %140 : vector<128x256xf32>
    %142 = arith.mulf %141, %141 : vector<128x256xf32>
    %cst_51 = arith.constant dense<0.000000e+00> : vector<128xf32>
    %143 = vector.multi_reduction <add>, %142, %cst_51 [1] : vector<128x256xf32> to vector<128xf32>
    %144 = vector.shape_cast %143 : vector<128xf32> to vector<128x1xf32>
    %cst_52 = arith.constant 2.560000e+02 : f32
    %145 = vector.broadcast %cst_52 : f32 to vector<128x1xf32>
    %146 = arith.divf %144, %145 : vector<128x1xf32>
    %147 = vector.broadcast %139 : vector<128x1xf32> to vector<128x256xf32>
    %148 = arith.subf %133, %147 : vector<128x256xf32>
    %cst_53 = arith.constant 9.99999996E-13 : f32
    %149 = vector.broadcast %cst_53 : f32 to vector<128x1xf32>
    %150 = arith.addf %146, %149 : vector<128x1xf32>
    %151 = math.rsqrt %150 : vector<128x1xf32>
    %152 = vector.broadcast %151 : vector<128x1xf32> to vector<128x256xf32>
    %153 = arith.mulf %148, %152 : vector<128x256xf32>
    %154 = vector.broadcast %134 : vector<1x256xf32> to vector<128x256xf32>
    %155 = arith.mulf %153, %154 : vector<128x256xf32>
    %156 = vector.broadcast %135 : vector<1x256xf32> to vector<128x256xf32>
    %157 = arith.addf %155, %156 : vector<128x256xf32>
    %158 = arith.truncf %157 : vector<128x256xf32> to vector<128x256xbf16>
    %c0_54 = arith.constant 0 : index
    %c0_55 = arith.constant 0 : index
    %c0_56 = arith.constant 0 : index
    %159 = vector.load %arg8[%c0_54, %c0_55, %c0_56] : memref<1x128x256xbf16, #tpu.memory_space<vmem>>, vector<1x128x256xbf16>
    %160 = vector.shape_cast %159 : vector<1x128x256xbf16> to vector<128x256xbf16>
    %161 = vector.shape_cast %158 : vector<128x256xbf16> to vector<1x128x256xbf16>
    tpu.vector_store %arg8[%c0_54, %c0_55, %c0_56], %161 {strides = array<i32>} : memref<1x128x256xbf16, #tpu.memory_space<vmem>>, vector<1x128x256xbf16>,
    return
  }
  func.func @transform_0(%arg0: i32) -> (i32, i32, i32) {
    %c0_i32 = arith.constant 0 : i32
    %c0_i32_0 = arith.constant 0 : i32
    %c0_i32_1 = arith.constant 0 : i32
    return %arg0, %c0_i32, %c0_i32_0 : i32, i32, i32
  }
  func.func @transform_1(%arg0: i32) -> (i32, i32) {
    %c0_i32 = arith.constant 0 : i32
    %c0_i32_0 = arith.constant 0 : i32
    %c0_i32_1 = arith.constant 0 : i32
    return %c0_i32, %c0_i32_0 : i32, i32
  }
  func.func @transform_2(%arg0: i32) -> (i32, i32) {
    %c0_i32 = arith.constant 0 : i32
    %c0_i32_0 = arith.constant 0 : i32
    %c0_i32_1 = arith.constant 0 : i32
    return %c0_i32, %c0_i32_0 : i32, i32
  }
  func.func @transform_3(%arg0: i32) -> (i32, i32) {
    %c0_i32 = arith.constant 0 : i32
    %c0_i32_0 = arith.constant 0 : i32
    %c0_i32_1 = arith.constant 0 : i32
    return %c0_i32, %c0_i32_0 : i32, i32
  }
  func.func @transform_4(%arg0: i32) -> (i32, i32) {
    %c0_i32 = arith.constant 0 : i32
    %c0_i32_0 = arith.constant 0 : i32
    %c0_i32_1 = arith.constant 0 : i32
    return %c0_i32, %c0_i32_0 : i32, i32
  }
  func.func @transform_5(%arg0: i32) -> (i32, i32) {
    %c0_i32 = arith.constant 0 : i32
    %c0_i32_0 = arith.constant 0 : i32
    %c0_i32_1 = arith.constant 0 : i32
    return %c0_i32, %c0_i32_0 : i32, i32
  }
  func.func @transform_6(%arg0: i32) -> (i32, i32) {
    %c0_i32 = arith.constant 0 : i32
    %c0_i32_0 = arith.constant 0 : i32
    %c0_i32_1 = arith.constant 0 : i32
    return %c0_i32, %c0_i32_0 : i32, i32
  }
  func.func @transform_7(%arg0: i32) -> (i32, i32, i32) {
    %c0_i32 = arith.constant 0 : i32
    %c0_i32_0 = arith.constant 0 : i32
    %c0_i32_1 = arith.constant 0 : i32
    return %arg0, %c0_i32, %c0_i32_0 : i32, i32, i32
  }
}

</mosaic_0001>

<llo_original>
// kernel: tpu_custom_call.1
$region0: #{tpu_custom_call.1}
  #allocation0 [shape = 'u32[]', space=smem, size = 0x4, offset = 0x4, fixed_abs, tag = 'smem constant byte address 0x4 - core index']
  #allocation1 [shape = 'u32[144,128]{1,0:T(1,128)}', space=vmem, size = 0x12000, scoped, tag = 'internal scratch']
  %s0 = inlined_call_operand.hbm [shape: f32[2,128,256], index: 0, kind: input, shape index: {}]
  %s1 = inlined_call_operand.hbm [shape: bf16[256,768], index: 1, kind: input, shape index: {}]
  %s2 = inlined_call_operand.hbm [shape: bf16[256,256], index: 2, kind: input, shape index: {}]
  %s3 = inlined_call_operand.hbm [shape: bf16[256,512], index: 3, kind: input, shape index: {}]
  %s4 = inlined_call_operand.vmem [shape: f32[1,512], index: 4, kind: input, shape index: {}]
  %s5 = inlined_call_operand.hbm [shape: bf16[512,256], index: 5, kind: input, shape index: {}]
  %s6 = inlined_call_operand.hbm [shape: f32[11,256], index: 6, kind: input, shape index: {}]
  %s7 = inlined_call_operand.hbm [shape: bf16[2,128,256], index: 7, kind: output, shape index: {}]
  %s8 = sld [smem:[#allocation0]]
  $region85: #{tpu_custom_call.1} parent=0
    _
  %s10 = ssub.s32 1, %s8
  %s11 = scalar_select 0, %s10, %s8
  $region1: #{tpu_custom_call.1} parent=0
    #allocation2 [shape = 'u8[262144]{0}', space=vmem, size = 0x40000, scoped, tag = 'input window, operand 0']
    #allocation3 [shape = 's32[2]{0}', space=sflag, size = 0x8, scoped, tag = 'scoped memory for tpu_custom_call.1']
    #allocation4 [shape = 's32[2]{0}', space=sflag, size = 0x8, scoped, tag = 'scoped memory for tpu_custom_call.1']
    #allocation5 [shape = 'u8[393216]{0}', space=vmem, size = 0x60000, scoped, tag = 'input window, operand 1, single buffered']
    #allocation6 [shape = 's32[1]{0}', space=sflag, size = 0x4, scoped, tag = 'scoped memory for tpu_custom_call.1']
    #allocation7 [shape = 'u8[131072]{0}', space=vmem, size = 0x20000, scoped, tag = 'input window, operand 2, single buffered']
    #allocation8 [shape = 'u8[262144]{0}', space=vmem, size = 0x40000, scoped, tag = 'input window, operand 3, single buffered']
    #allocation9 [shape = 's32[1]{0}', space=sflag, size = 0x4, scoped, tag = 'scoped memory for tpu_custom_call.1']
    #allocation10 [shape = 'u8[262144]{0}', space=vmem, size = 0x40000, scoped, tag = 'input window, operand 5, single buffered']
    #allocation11 [shape = 'u8[16384]{0}', space=vmem, size = 0x4000, scoped, tag = 'input window, operand 6, single buffered']
    #allocation12 [shape = 's32[1]{0}', space=sflag, size = 0x4, scoped, tag = 'scoped memory for tpu_custom_call.1']
    #allocation13 [shape = 'u8[131072]{0}', space=vmem, size = 0x20000, scoped, tag = 'output window, operand 0']
    %12 = vsyncpa [#allocation3], 0
    %s13 = scalar_lea.sflag [#allocation3], 1
    %14 = vsyncpa %s13, 0
    %15 = vsyncpa [#allocation6], 0
    %16 = vsyncpa [#allocation9], 0
    %17 = vsyncpa [#allocation12], 0
    %18 = vsyncpa [#allocation4], 0
    %s19 = scalar_lea.sflag [#allocation4], 1
    %20 = vsyncpa %s19, 0
    loop: start=0, step=1, limit=4
    $region2: #{tpu_custom_call.1} parent=1 // loop_pre_header
      _
    $region3: #{tpu_custom_call.1} parent=1 // loop_header
      %s22 = sphi 0, %s26
      %p23 = scmp.ge.s32.totalorder %s22, 4
      %s32 = sphi 0, %s34
      %s35 = sphi 0, %s32
      %s36 = sphi 0, %s35
      %s52 = sphi 0, %s36
      %s56 = sphi 0, %s56
      %s58 = sphi 0, %s56
      %s59 = sphi 0, %s58
      %s73 = sphi 0, %s59
      %s77 = sphi 0, %s77
      %s79 = sphi 0, %s77
      %s80 = sphi 0, %s79
      %s94 = sphi 0, %s80
      %s98 = sphi 0, %s98
      %s100 = sphi 0, %s98
      %s101 = sphi 0, %s100
      %s115 = sphi 0, %s101
      %s119 = sphi 0, %s119
      %s121 = sphi 0, %s119
      %s122 = sphi 0, %s121
      %s136 = sphi 0, %s122
      %s140 = sphi 0, %s140
      %s142 = sphi 0, %s140
      %s143 = sphi 0, %s142
      %s157 = sphi 0, %s143
      %s161 = sphi 0, %s161
      %s163 = sphi 0, %s161
      %s164 = sphi 0, %s163
      %s178 = sphi 0, %s164
      %s184 = sphi 0, %s186
      %s187 = sphi 0, %s184
      %s188 = sphi 0, %s187
      %s204 = sphi 0, %s188
    $region4: #{tpu_custom_call.1} parent=1 // loop_header_branch
      %25 = sbr.rel (%p23) target = $region8
    $region5: #{tpu_custom_call.1} parent=1 // loop_body
      %s27 = ssub.s32 %s22, 1
      %s28 = ssub.s32 %s22, 2
      %s29 = sadd.s32 %s22, 1
      %s30 = ssub.s32 %s22, %s29
      %p31 = scmp.eq.s32.totalorder %s30, 0
      %s33 = sadd.s32 %s32, 1
      %s34 = scalar_select %p31, %s32, %s33
      %p37 = pneg %p31
      %p38 = scmp.eq.s32.totalorder %s22, 1
      %p39 = por %p37, %p38
      %p40 = scmp.ne.s32.totalorder %s32, %s35
      %p41 = scmp.eq.s32.totalorder %s22, 0
      %p42 = por %p40, %p41
      %p43 = scmp.ne.s32.totalorder %s32, %s35
      %p44 = scmp.eq.s32.totalorder %s27, 1
      %p45 = por %p43, %p44
      %p46 = scmp.ne.s32.totalorder %s35, %s36
      %p47 = scmp.eq.s32.totalorder %s27, 0
      %p48 = por %p46, %p47
      %p49 = scmp.ne.s32.totalorder %s35, %s36
      %p50 = scmp.eq.s32.totalorder %s28, 1
      %p51 = por %p49, %p50
      %p53 = scmp.ne.s32.totalorder %s36, %s52
      %p54 = scmp.eq.s32.totalorder %s28, 0
      %p55 = por %p53, %p54
      %s57 = sadd.s32 %s56, 1
      %p60 = scmp.eq.s32.totalorder %s22, 1
      %p61 = scmp.ne.s32.totalorder %s56, %s58
      %p62 = scmp.eq.s32.totalorder %s22, 0
      %p63 = por %p61, %p62
      %p64 = scmp.ne.s32.totalorder %s56, %s58
      %p65 = scmp.eq.s32.totalorder %s27, 1
      %p66 = por %p64, %p65
      %p67 = scmp.ne.s32.totalorder %s58, %s59
      %p68 = scmp.eq.s32.totalorder %s27, 0
      %p69 = por %p67, %p68
      %p70 = scmp.ne.s32.totalorder %s58, %s59
      %p71 = scmp.eq.s32.totalorder %s28, 1
      %p72 = por %p70, %p71
      %p74 = scmp.ne.s32.totalorder %s59, %s73
      %p75 = scmp.eq.s32.totalorder %s28, 0
      %p76 = por %p74, %p75
      %s78 = sadd.s32 %s77, 1
      %p81 = scmp.eq.s32.totalorder %s22, 1
      %p82 = scmp.ne.s32.totalorder %s77, %s79
      %p83 = scmp.eq.s32.totalorder %s22, 0
      %p84 = por %p82, %p83
      %p85 = scmp.ne.s32.totalorder %s77, %s79
      %p86 = scmp.eq.s32.totalorder %s27, 1
      %p87 = por %p85, %p86
      %p88 = scmp.ne.s32.totalorder %s79, %s80
      %p89 = scmp.eq.s32.totalorder %s27, 0
      %p90 = por %p88, %p89
      %p91 = scmp.ne.s32.totalorder %s79, %s80
      %p92 = scmp.eq.s32.totalorder %s28, 1
      %p93 = por %p91, %p92
      %p95 = scmp.ne.s32.totalorder %s80, %s94
      %p96 = scmp.eq.s32.totalorder %s28, 0
      %p97 = por %p95, %p96
      %s99 = sadd.s32 %s98, 1
      %p102 = scmp.eq.s32.totalorder %s22, 1
      %p103 = scmp.ne.s32.totalorder %s98, %s100
      %p104 = scmp.eq.s32.totalorder %s22, 0
      %p105 = por %p103, %p104
      %p106 = scmp.ne.s32.totalorder %s98, %s100
      %p107 = scmp.eq.s32.totalorder %s27, 1
      %p108 = por %p106, %p107
      %p109 = scmp.ne.s32.totalorder %s100, %s101
      %p110 = scmp.eq.s32.totalorder %s27, 0
      %p111 = por %p109, %p110
      %p112 = scmp.ne.s32.totalorder %s100, %s101
      %p113 = scmp.eq.s32.totalorder %s28, 1
      %p114 = por %p112, %p113
      %p116 = scmp.ne.s32.totalorder %s101, %s115
      %p117 = scmp.eq.s32.totalorder %s28, 0
      %p118 = por %p116, %p117
      %s120 = sadd.s32 %s119, 1
      %p123 = scmp.eq.s32.totalorder %s22, 1
      %p124 = scmp.ne.s32.totalorder %s119, %s121
      %p125 = scmp.eq.s32.totalorder %s22, 0
      %p126 = por %p124, %p125
      %p127 = scmp.ne.s32.totalorder %s119, %s121
      %p128 = scmp.eq.s32.totalorder %s27, 1
      %p129 = por %p127, %p128
      %p130 = scmp.ne.s32.totalorder %s121, %s122
      %p131 = scmp.eq.s32.totalorder %s27, 0
      %p132 = por %p130, %p131
      %p133 = scmp.ne.s32.totalorder %s121, %s122
      %p134 = scmp.eq.s32.totalorder %s28, 1
      %p135 = por %p133, %p134
      %p137 = scmp.ne.s32.totalorder %s122, %s136
      %p138 = scmp.eq.s32.totalorder %s28, 0
      %p139 = por %p137, %p138
      %s141 = sadd.s32 %s140, 1
      %p144 = scmp.eq.s32.totalorder %s22, 1
      %p145 = scmp.ne.s32.totalorder %s140, %s142
      %p146 = scmp.eq.s32.totalorder %s22, 0
      %p147 = por %p145, %p146
      %p148 = scmp.ne.s32.totalorder %s140, %s142
      %p149 = scmp.eq.s32.totalorder %s27, 1
      %p150 = por %p148, %p149
      %p151 = scmp.ne.s32.totalorder %s142, %s143
      %p152 = scmp.eq.s32.totalorder %s27, 0
      %p153 = por %p151, %p152
      %p154 = scmp.ne.s32.totalorder %s142, %s143
      %p155 = scmp.eq.s32.totalorder %s28, 1
      %p156 = por %p154, %p155
      %p158 = scmp.ne.s32.totalorder %s143, %s157
      %p159 = scmp.eq.s32.totalorder %s28, 0
      %p160 = por %p158, %p159
      %s162 = sadd.s32 %s161, 1
      %p165 = scmp.eq.s32.totalorder %s22, 1
      %p166 = scmp.ne.s32.totalorder %s161, %s163
      %p167 = scmp.eq.s32.totalorder %s22, 0
      %p168 = por %p166, %p167
      %p169 = scmp.ne.s32.totalorder %s161, %s163
      %p170 = scmp.eq.s32.totalorder %s27, 1
      %p171 = por %p169, %p170
      %p172 = scmp.ne.s32.totalorder %s163, %s164
      %p173 = scmp.eq.s32.totalorder %s27, 0
      %p174 = por %p172, %p173
      %p175 = scmp.ne.s32.totalorder %s163, %s164
      %p176 = scmp.eq.s32.totalorder %s28, 1
      %p177 = por %p175, %p176
      %p179 = scmp.ne.s32.totalorder %s164, %s178
      %p180 = scmp.eq.s32.totalorder %s28, 0
      %p181 = por %p179, %p180
      %s182 = ssub.s32 %s22, %s29
      %p183 = scmp.eq.s32.totalorder %s182, 0
      %s185 = sadd.s32 %s184, 1
      %s186 = scalar_select %p183, %s184, %s185
      %p189 = pneg %p183
      %p190 = scmp.eq.s32.totalorder %s22, 1
      %p191 = por %p189, %p190
      %p192 = scmp.ne.s32.totalorder %s184, %s187
      %p193 = scmp.eq.s32.totalorder %s22, 0
      %p194 = por %p192, %p193
      %p195 = scmp.ne.s32.totalorder %s184, %s187
      %p196 = scmp.eq.s32.totalorder %s27, 1
      %p197 = por %p195, %p196
      %p198 = scmp.ne.s32.totalorder %s187, %s188
      %p199 = scmp.eq.s32.totalorder %s27, 0
      %p200 = por %p198, %p199
      %p201 = scmp.ne.s32.totalorder %s187, %s188
      %p202 = scmp.eq.s32.totalorder %s28, 1
      %p203 = por %p201, %p202
      %p205 = scmp.ne.s32.totalorder %s188, %s204
      %p206 = scmp.eq.s32.totalorder %s28, 0
      %p207 = por %p205, %p206
      %p208 = scmp.le.s32.totalorder 1, %s22
      %p209 = scmp.lt.s32.totalorder %s22, 3
      %p210 = pnand %p208, %p209
      %p211 = pneg %p210
      // Predicated region
      $region9: #{tpu_custom_call.1} parent=5 // pred_check
        _
      $region10: #{tpu_custom_call.1} parent=5 // pred_check_branch
        %213 = sbr.rel (%p210) target = $region12
      $region11: #{tpu_custom_call.1} parent=5 // pred_region
        %s214 = ssub.s32 %s22, 1
        // Predicated region
        $region13: #{tpu_custom_call.1} parent=11 // pred_check
          %p215 = pneg %p69
        $region14: #{tpu_custom_call.1} parent=11 // pred_check_branch
          %217 = sbr.rel (%p215) target = $region16
        $region15: #{tpu_custom_call.1} parent=11 // pred_region
          %s219 = ssub.s32 12288, 12288
          %220 = vsyncadd [#allocation6], %s219
          %s221 = sshll.u32 [#allocation5], 4
          %s222 = int_to_ptr.vmem [resolvable:$true] %s221
          %227 = dma.hbm_to_vmem [thread:$0]  %s1, 12288, %s222, [#allocation6], 384, 384, 24
        $region16: #{tpu_custom_call.1} parent=11 // pred_fallthru
          _
        // Predicated region
        $region17: #{tpu_custom_call.1} parent=11 // pred_check
          %p228 = pneg %p90
        $region18: #{tpu_custom_call.1} parent=11 // pred_check_branch
          %230 = sbr.rel (%p228) target = $region20
        $region19: #{tpu_custom_call.1} parent=11 // pred_region
          %s232 = ssub.s32 4096, 4096
          %233 = vsyncadd [#allocation6], %s232
          %s234 = sshll.u32 [#allocation7], 4
          %s235 = int_to_ptr.vmem [resolvable:$true] %s234
          %240 = dma.hbm_to_vmem [thread:$0]  %s2, 4096, %s235, [#allocation6], 128, 128, 8
        $region20: #{tpu_custom_call.1} parent=11 // pred_fallthru
          _
        // Predicated region
        $region21: #{tpu_custom_call.1} parent=11 // pred_check
          %p241 = pneg %p111
        $region22: #{tpu_custom_call.1} parent=11 // pred_check_branch
          %243 = sbr.rel (%p241) target = $region24
        $region23: #{tpu_custom_call.1} parent=11 // pred_region
          %s245 = ssub.s32 8192, 8192
          %246 = vsyncadd [#allocation9], %s245
          %s247 = sshll.u32 [#allocation8], 4
          %s248 = int_to_ptr.vmem [resolvable:$true] %s247
          %253 = dma.hbm_to_vmem [thread:$0]  %s3, 8192, %s248, [#allocation9], 256, 256, 16
        $region24: #{tpu_custom_call.1} parent=11 // pred_fallthru
          _
        // Predicated region
        $region25: #{tpu_custom_call.1} parent=11 // pred_check
          %p254 = pneg %p132
        $region26: #{tpu_custom_call.1} parent=11 // pred_check_branch
          %256 = sbr.rel (%p254) target = $region28
        $region27: #{tpu_custom_call.1} parent=11 // pred_region
          _
        $region28: #{tpu_custom_call.1} parent=11 // pred_fallthru
          _
        // Predicated region
        $region29: #{tpu_custom_call.1} parent=11 // pred_check
          %p257 = pneg %p153
        $region30: #{tpu_custom_call.1} parent=11 // pred_check_branch
          %259 = sbr.rel (%p257) target = $region32
        $region31: #{tpu_custom_call.1} parent=11 // pred_region
          %s261 = ssub.s32 8192, 8192
          %262 = vsyncadd [#allocation9], %s261
          %s263 = sshll.u32 [#allocation10], 4
          %s264 = int_to_ptr.vmem [resolvable:$true] %s263
          %269 = dma.hbm_to_vmem [thread:$0]  %s5, 8192, %s264, [#allocation9], 128, 128, 8
        $region32: #{tpu_custom_call.1} parent=11 // pred_fallthru
          _
        // Predicated region
        $region33: #{tpu_custom_call.1} parent=11 // pred_check
          %p270 = pneg %p174
        $region34: #{tpu_custom_call.1} parent=11 // pred_check_branch
          %272 = sbr.rel (%p270) target = $region36
        $region35: #{tpu_custom_call.1} parent=11 // pred_region
          %s274 = ssub.s32 512, 512
          %275 = vsyncadd [#allocation12], %s274
          %s276 = sshll.u32 [#allocation11], 4
          %s277 = int_to_ptr.vmem [resolvable:$true] %s276
          %282 = dma.hbm_to_vmem [thread:$0]  %s6, 512, %s277, [#allocation12], 256, 256, 16
        $region36: #{tpu_custom_call.1} parent=11 // pred_fallthru
          _
      $region12: #{tpu_custom_call.1} parent=5 // pred_fallthru
        _
      %p283 = scmp.lt.s32.totalorder %s22, 2
      // Predicated region
      $region37: #{tpu_custom_call.1} parent=5 // pred_check
        %p284 = pneg %p283
      $region38: #{tpu_custom_call.1} parent=5 // pred_check_branch
        %286 = sbr.rel (%p284) target = $region40
      $region39: #{tpu_custom_call.1} parent=5 // pred_region
        // Predicated region
        $region41: #{tpu_custom_call.1} parent=39 // pred_check
          %p287 = pneg %p42
        $region42: #{tpu_custom_call.1} parent=39 // pred_check_branch
          %289 = sbr.rel (%p287) target = $region44
        $region43: #{tpu_custom_call.1} parent=39 // pred_region
          %s290 = sand.u32 %s32, 1
          %s291 = scalar_lea.sflag [#allocation3], %s290
          %s292 = sand.u32 %s32, 1
          %s293 = smul.addr %s292, 256
          %s294 = scalar_lea.vmem [#allocation2], %s293
          %s296 = ssub.s32 4096, 4096
          %297 = vsyncadd %s291, %s296
          %s298 = smul.addr %s22, 32
          %s299 = smul.addr %s298, 128
          %s300 = scalar_lea.hbm %s0, %s299
          %s301 = sshll.u32 %s294, 4
          %s302 = int_to_ptr.vmem [resolvable:$true] %s301
          %307 = dma.hbm_to_vmem [thread:$0]  %s300, 4096, %s302, %s291, 256, 256, 16
        $region44: #{tpu_custom_call.1} parent=39 // pred_fallthru
          _
      $region40: #{tpu_custom_call.1} parent=5 // pred_fallthru
        _
      %p308 = scmp.le.s32.totalorder 1, %s22
      %p309 = scmp.lt.s32.totalorder %s22, 3
      %p310 = pnand %p308, %p309
      %p311 = pneg %p310
      // Predicated region
      $region45: #{tpu_custom_call.1} parent=5 // pred_check
        _
      $region46: #{tpu_custom_call.1} parent=5 // pred_check_branch
        %313 = sbr.rel (%p310) target = $region48
      $region47: #{tpu_custom_call.1} parent=5 // pred_region
        %s314 = ssub.s32 %s22, 1
        %s315 = sand.u32 %s35, 1
        %s316 = scalar_lea.sflag [#allocation3], %s315
        %s317 = sand.u32 %s35, 1
        %s318 = smul.addr %s317, 256
        %s319 = scalar_lea.vmem [#allocation2], %s318
        // Predicated region
        $region49: #{tpu_custom_call.1} parent=47 // pred_check
          %p320 = pneg %p48
        $region50: #{tpu_custom_call.1} parent=47 // pred_check_branch
          %322 = sbr.rel (%p320) target = $region52
        $region51: #{tpu_custom_call.1} parent=47 // pred_region
          %323 = dma.done %s316, 4096
        $region52: #{tpu_custom_call.1} parent=47 // pred_fallthru
          _
        // Predicated region
        $region53: #{tpu_custom_call.1} parent=47 // pred_check
          %p324 = pneg %p69
        $region54: #{tpu_custom_call.1} parent=47 // pred_check_branch
          %326 = sbr.rel (%p324) target = $region56
        $region55: #{tpu_custom_call.1} parent=47 // pred_region
          %327 = dma.done [#allocation6], 12288
        $region56: #{tpu_custom_call.1} parent=47 // pred_fallthru
          _
        // Predicated region
        $region57: #{tpu_custom_call.1} parent=47 // pred_check
          %p328 = pneg %p90
        $region58: #{tpu_custom_call.1} parent=47 // pred_check_branch
          %330 = sbr.rel (%p328) target = $region60
        $region59: #{tpu_custom_call.1} parent=47 // pred_region
          %331 = dma.done [#allocation6], 4096
        $region60: #{tpu_custom_call.1} parent=47 // pred_fallthru
          _
        // Predicated region
        $region61: #{tpu_custom_call.1} parent=47 // pred_check
          %p332 = pneg %p111
        $region62: #{tpu_custom_call.1} parent=47 // pred_check_branch
          %334 = sbr.rel (%p332) target = $region64
        $region63: #{tpu_custom_call.1} parent=47 // pred_region
          %335 = dma.done [#allocation9], 8192
        $region64: #{tpu_custom_call.1} parent=47 // pred_fallthru
          _
        // Predicated region
        $region65: #{tpu_custom_call.1} parent=47 // pred_check
          %p336 = pneg %p153
        $region66: #{tpu_custom_call.1} parent=47 // pred_check_branch
          %338 = sbr.rel (%p336) target = $region68
        $region67: #{tpu_custom_call.1} parent=47 // pred_region
          %339 = dma.done [#allocation9], 8192
        $region68: #{tpu_custom_call.1} parent=47 // pred_fallthru
          _
        // Predicated region
        $region69: #{tpu_custom_call.1} parent=47 // pred_check
          %p340 = pneg %p174
        $region70: #{tpu_custom_call.1} parent=47 // pred_check_branch
          %342 = sbr.rel (%p340) target = $region72
        $region71: #{tpu_custom_call.1} parent=47 // pred_region
          %343 = dma.done [#allocation12], 512
        $region72: #{tpu_custom_call.1} parent=47 // pred_fallthru
          _
        %s344 = sand.u32 %s35, 1
        %s345 = scalar_lea.sflag [#allocation3], %s344
        %s346 = sand.u32 %s35, 1
        %s347 = smul.addr %s346, 256
        %s348 = scalar_lea.vmem [#allocation2], %s347
        %p349 = pneg %p48
        %p350 = pneg %p45
        %p351 = pneg %p69
        %p352 = pneg %p66
        %p353 = pneg %p90
        %p354 = pneg %p87
        %p355 = pneg %p111
        %p356 = pneg %p108
        %p357 = pneg %p132
        %p358 = pneg %p129
        %p359 = pneg %p153
        %p360 = pneg %p150
        %p361 = pneg %p174
        %p362 = pneg %p171
        %p363 = pneg %p200
        %p364 = pneg %p197
        %s365 = sand.u32 %s187, 1
        %s366 = scalar_lea.sflag [#allocation4], %s365
        %s367 = sand.u32 %s187, 1
        %s368 = smul.addr %s367, 128
        %s369 = scalar_lea.vmem [#allocation13], %s368
        %v371 = vld [vmem:[%s319] sm:$0xff]
        %v372 = vld [vmem:[%s319 + $0x8] sm:$0xff]
        %v373 = vld [vmem:[%s319 + $0x10] sm:$0xff]
        %v374 = vld [vmem:[%s319 + $0x18] sm:$0xff]
        %v375 = vld [vmem:[%s319 + $0x20] sm:$0xff]
        %v376 = vld [vmem:[%s319 + $0x28] sm:$0xff]
        %v377 = vld [vmem:[%s319 + $0x30] sm:$0xff]
        %v378 = vld [vmem:[%s319 + $0x38] sm:$0xff]
        %v379 = vld [vmem:[%s319 + $0x40] sm:$0xff]
        %v380 = vld [vmem:[%s319 + $0x48] sm:$0xff]
        %v381 = vld [vmem:[%s319 + $0x50] sm:$0xff]
        %v382 = vld [vmem:[%s319 + $0x58] sm:$0xff]
        %v383 = vld [vmem:[%s319 + $0x60] sm:$0xff]
        %v384 = vld [vmem:[%s319 + $0x68] sm:$0xff]
        %v385 = vld [vmem:[%s319 + $0x70] sm:$0xff]
        %v386 = vld [vmem:[%s319 + $0x78] sm:$0xff]
        %v387 = vld [vmem:[%s319 + $0x80] sm:$0xff]
        %v388 = vld [vmem:[%s319 + $0x88] sm:$0xff]
        %v389 = vld [vmem:[%s319 + $0x90] sm:$0xff]
        %v390 = vld [vmem:[%s319 + $0x98] sm:$0xff]
        %v391 = vld [vmem:[%s319 + $0xa0] sm:$0xff]
        %v392 = vld [vmem:[%s319 + $0xa8] sm:$0xff]
        %v393 = vld [vmem:[%s319 + $0xb0] sm:$0xff]
        %v394 = vld [vmem:[%s319 + $0xb8] sm:$0xff]
        %v395 = vld [vmem:[%s319 + $0xc0] sm:$0xff]
        %v396 = vld [vmem:[%s319 + $0xc8] sm:$0xff]
        %v397 = vld [vmem:[%s319 + $0xd0] sm:$0xff]
        %v398 = vld [vmem:[%s319 + $0xd8] sm:$0xff]
        %v399 = vld [vmem:[%s319 + $0xe0] sm:$0xff]
        %v400 = vld [vmem:[%s319 + $0xe8] sm:$0xff]
        %v401 = vld [vmem:[%s319 + $0xf0] sm:$0xff]
        %v402 = vld [vmem:[%s319 + $0xf8] sm:$0xff]
        %v403 = vld [vmem:[#allocation11] ss:$8 sm:$0x3]
        %s404 = scalar_lea.vmem [#allocation11], 1
        %v405 = vld [vmem:[%s404] ss:$8 sm:$0x3]
        %v406 = vadd.f32 %v371, %v372
        %407 = vadd.xlane.f32.xlu0 %v406
        %v408 = vpop.xlane.xlu0 %407
        %v409 = vadd.f32 %v373, %v374
        %410 = vadd.xlane.f32.xlu0 %v409
        %v411 = vpop.xlane.xlu0 %410
        %v412 = vadd.f32 %v375, %v376
        %413 = vadd.xlane.f32.xlu0 %v412
        %v414 = vpop.xlane.xlu0 %413
        %v415 = vadd.f32 %v377, %v378
        %416 = vadd.xlane.f32.xlu0 %v415
        %v417 = vpop.xlane.xlu0 %416
        %v418 = vadd.f32 %v379, %v380
        %419 = vadd.xlane.f32.xlu0 %v418
        %v420 = vpop.xlane.xlu0 %419
        %v421 = vadd.f32 %v381, %v382
        %422 = vadd.xlane.f32.xlu0 %v421
        %v423 = vpop.xlane.xlu0 %422
        %v424 = vadd.f32 %v383, %v384
        %425 = vadd.xlane.f32.xlu0 %v424
        %v426 = vpop.xlane.xlu0 %425
        %v427 = vadd.f32 %v385, %v386
        %428 = vadd.xlane.f32.xlu0 %v427
        %v429 = vpop.xlane.xlu0 %428
        %v430 = vadd.f32 %v387, %v388
        %431 = vadd.xlane.f32.xlu0 %v430
        %v432 = vpop.xlane.xlu0 %431
        %v433 = vadd.f32 %v389, %v390
        %434 = vadd.xlane.f32.xlu0 %v433
        %v435 = vpop.xlane.xlu0 %434
        %v436 = vadd.f32 %v391, %v392
        %437 = vadd.xlane.f32.xlu0 %v436
        %v438 = vpop.xlane.xlu0 %437
        %v439 = vadd.f32 %v393, %v394
        %440 = vadd.xlane.f32.xlu0 %v439
        %v441 = vpop.xlane.xlu0 %440
        %v442 = vadd.f32 %v395, %v396
        %443 = vadd.xlane.f32.xlu0 %v442
        %v444 = vpop.xlane.xlu0 %443
        %v445 = vadd.f32 %v397, %v398
        %446 = vadd.xlane.f32.xlu0 %v445
        %v447 = vpop.xlane.xlu0 %446
        %v448 = vadd.f32 %v399, %v400
        %449 = vadd.xlane.f32.xlu0 %v448
        %v450 = vpop.xlane.xlu0 %449
        %v451 = vadd.f32 %v401, %v402
        %452 = vadd.xlane.f32.xlu0 %v451
        %v453 = vpop.xlane.xlu0 %452
        %v454 = vrcp.pop 256.0
        %v455 = vmul.f32 %v408, %v454
        %v456 = vmul.f32 %v411, %v454
        %v457 = vmul.f32 %v414, %v454
        %v458 = vmul.f32 %v417, %v454
        %v459 = vmul.f32 %v420, %v454
        %v460 = vmul.f32 %v423, %v454
        %v461 = vmul.f32 %v426, %v454
        %v462 = vmul.f32 %v429, %v454
        %v463 = vmul.f32 %v432, %v454
        %v464 = vmul.f32 %v435, %v454
        %v465 = vmul.f32 %v438, %v454
        %v466 = vmul.f32 %v441, %v454
        %v467 = vmul.f32 %v444, %v454
        %v468 = vmul.f32 %v447, %v454
        %v469 = vmul.f32 %v450, %v454
        %v470 = vmul.f32 %v453, %v454
        %v471 = vsub.f32 %v371, %v455
        %v472 = vsub.f32 %v372, %v455
        %v473 = vsub.f32 %v373, %v456
        %v474 = vsub.f32 %v374, %v456
        %v475 = vsub.f32 %v375, %v457
        %v476 = vsub.f32 %v376, %v457
        %v477 = vsub.f32 %v377, %v458
        %v478 = vsub.f32 %v378, %v458
        %v479 = vsub.f32 %v379, %v459
        %v480 = vsub.f32 %v380, %v459
        %v481 = vsub.f32 %v381, %v460
        %v482 = vsub.f32 %v382, %v460
        %v483 = vsub.f32 %v383, %v461
        %v484 = vsub.f32 %v384, %v461
        %v485 = vsub.f32 %v385, %v462
        %v486 = vsub.f32 %v386, %v462
        %v487 = vsub.f32 %v387, %v463
        %v488 = vsub.f32 %v388, %v463
        %v489 = vsub.f32 %v389, %v464
        %v490 = vsub.f32 %v390, %v464
        %v491 = vsub.f32 %v391, %v465
        %v492 = vsub.f32 %v392, %v465
        %v493 = vsub.f32 %v393, %v466
        %v494 = vsub.f32 %v394, %v466
        %v495 = vsub.f32 %v395, %v467
        %v496 = vsub.f32 %v396, %v467
        %v497 = vsub.f32 %v397, %v468
        %v498 = vsub.f32 %v398, %v468
        %v499 = vsub.f32 %v399, %v469
        %v500 = vsub.f32 %v400, %v469
        %v501 = vsub.f32 %v401, %v470
        %v502 = vsub.f32 %v402, %v470
        %v503 = vmul.f32 %v471, %v471
        %v504 = vmul.f32 %v472, %v472
        %v505 = vmul.f32 %v473, %v473
        %v506 = vmul.f32 %v474, %v474
        %v507 = vmul.f32 %v475, %v475
        %v508 = vmul.f32 %v476, %v476
        %v509 = vmul.f32 %v477, %v477
        %v510 = vmul.f32 %v478, %v478
        %v511 = vmul.f32 %v479, %v479
        %v512 = vmul.f32 %v480, %v480
        %v513 = vmul.f32 %v481, %v481
        %v514 = vmul.f32 %v482, %v482
        %v515 = vmul.f32 %v483, %v483
        %v516 = vmul.f32 %v484, %v484
        %v517 = vmul.f32 %v485, %v485
        %v518 = vmul.f32 %v486, %v486
        %v519 = vmul.f32 %v487, %v487
        %v520 = vmul.f32 %v488, %v488
        %v521 = vmul.f32 %v489, %v489
        %v522 = vmul.f32 %v490, %v490
        %v523 = vmul.f32 %v491, %v491
        %v524 = vmul.f32 %v492, %v492
        %v525 = vmul.f32 %v493, %v493
        %v526 = vmul.f32 %v494, %v494
        %v527 = vmul.f32 %v495, %v495
        %v528 = vmul.f32 %v496, %v496
        %v529 = vmul.f32 %v497, %v497
        %v530 = vmul.f32 %v498, %v498
        %v531 = vmul.f32 %v499, %v499
        %v532 = vmul.f32 %v500, %v500
        %v533 = vmul.f32 %v501, %v501
        %v534 = vmul.f32 %v502, %v502
        %v535 = vadd.f32 %v503, %v504
        %536 = vadd.xlane.f32.xlu0 %v535
        %v537 = vpop.xlane.xlu0 %536
        %v538 = vadd.f32 %v505, %v506
        %539 = vadd.xlane.f32.xlu0 %v538
        %v540 = vpop.xlane.xlu0 %539
        %v541 = vadd.f32 %v507, %v508
        %542 = vadd.xlane.f32.xlu0 %v541
        %v543 = vpop.xlane.xlu0 %542
        %v544 = vadd.f32 %v509, %v510
        %545 = vadd.xlane.f32.xlu0 %v544
        %v546 = vpop.xlane.xlu0 %545
        %v547 = vadd.f32 %v511, %v512
        %548 = vadd.xlane.f32.xlu0 %v547
        %v549 = vpop.xlane.xlu0 %548
        %v550 = vadd.f32 %v513, %v514
        %551 = vadd.xlane.f32.xlu0 %v550
        %v552 = vpop.xlane.xlu0 %551
        %v553 = vadd.f32 %v515, %v516
        %554 = vadd.xlane.f32.xlu0 %v553
        %v555 = vpop.xlane.xlu0 %554
        %v556 = vadd.f32 %v517, %v518
        %557 = vadd.xlane.f32.xlu0 %v556
        %v558 = vpop.xlane.xlu0 %557
        %v559 = vadd.f32 %v519, %v520
        %560 = vadd.xlane.f32.xlu0 %v559
        %v561 = vpop.xlane.xlu0 %560
        %v562 = vadd.f32 %v521, %v522
        %563 = vadd.xlane.f32.xlu0 %v562
        %v564 = vpop.xlane.xlu0 %563
        %v565 = vadd.f32 %v523, %v524
        %566 = vadd.xlane.f32.xlu0 %v565
        %v567 = vpop.xlane.xlu0 %566
        %v568 = vadd.f32 %v525, %v526
        %569 = vadd.xlane.f32.xlu0 %v568
        %v570 = vpop.xlane.xlu0 %569
        %v571 = vadd.f32 %v527, %v528
        %572 = vadd.xlane.f32.xlu0 %v571
        %v573 = vpop.xlane.xlu0 %572
        %v574 = vadd.f32 %v529, %v530
        %575 = vadd.xlane.f32.xlu0 %v574
        %v576 = vpop.xlane.xlu0 %575
        %v577 = vadd.f32 %v531, %v532
        %578 = vadd.xlane.f32.xlu0 %v577
        %v579 = vpop.xlane.xlu0 %578
        %v580 = vadd.f32 %v533, %v534
        %581 = vadd.xlane.f32.xlu0 %v580
        %v582 = vpop.xlane.xlu0 %581
        %v583 = vmul.f32 %v537, %v454
        %v584 = vmul.f32 %v540, %v454
        %v585 = vmul.f32 %v543, %v454
        %v586 = vmul.f32 %v546, %v454
        %v587 = vmul.f32 %v549, %v454
        %v588 = vmul.f32 %v552, %v454
        %v589 = vmul.f32 %v555, %v454
        %v590 = vmul.f32 %v558, %v454
        %v591 = vmul.f32 %v561, %v454
        %v592 = vmul.f32 %v564, %v454
        %v593 = vmul.f32 %v567, %v454
        %v594 = vmul.f32 %v570, %v454
        %v595 = vmul.f32 %v573, %v454
        %v596 = vmul.f32 %v576, %v454
        %v597 = vmul.f32 %v579, %v454
        %v598 = vmul.f32 %v582, %v454
        %v599 = vadd.f32 %v583, 1e-12
        %v600 = vadd.f32 %v584, 1e-12
        %v601 = vadd.f32 %v585, 1e-12
        %v602 = vadd.f32 %v586, 1e-12
        %v603 = vadd.f32 %v587, 1e-12
        %v604 = vadd.f32 %v588, 1e-12
        %v605 = vadd.f32 %v589, 1e-12
        %v606 = vadd.f32 %v590, 1e-12
        %v607 = vadd.f32 %v591, 1e-12
        %v608 = vadd.f32 %v592, 1e-12
        %v609 = vadd.f32 %v593, 1e-12
        %v610 = vadd.f32 %v594, 1e-12
        %v611 = vadd.f32 %v595, 1e-12
        %v612 = vadd.f32 %v596, 1e-12
        %v613 = vadd.f32 %v597, 1e-12
        %v614 = vadd.f32 %v598, 1e-12
        %v615 = vrsqrt.pop %v599
        %v616 = vrsqrt.pop %v600
        %v617 = vrsqrt.pop %v601
        %v618 = vrsqrt.pop %v602
        %v619 = vrsqrt.pop %v603
        %v620 = vrsqrt.pop %v604
        %v621 = vrsqrt.pop %v605
        %v622 = vrsqrt.pop %v606
        %v623 = vrsqrt.pop %v607
        %v624 = vrsqrt.pop %v608
        %v625 = vrsqrt.pop %v609
        %v626 = vrsqrt.pop %v610
        %v627 = vrsqrt.pop %v611
        %v628 = vrsqrt.pop %v612
        %v629 = vrsqrt.pop %v613
        %v630 = vrsqrt.pop %v614
        %v631 = vmul.f32 %v471, %v615
        %v632 = vmul.f32 %v472, %v615
        %v633 = vmul.f32 %v473, %v616
        %v634 = vmul.f32 %v474, %v616
        %v635 = vmul.f32 %v475, %v617
        %v636 = vmul.f32 %v476, %v617
        %v637 = vmul.f32 %v477, %v618
        %v638 = vmul.f32 %v478, %v618
        %v639 = vmul.f32 %v479, %v619
        %v640 = vmul.f32 %v480, %v619
        %v641 = vmul.f32 %v481, %v620
        %v642 = vmul.f32 %v482, %v620
        %v643 = vmul.f32 %v483, %v621
        %v644 = vmul.f32 %v484, %v621
        %v645 = vmul.f32 %v485, %v622
        %v646 = vmul.f32 %v486, %v622
        %v647 = vmul.f32 %v487, %v623
        %v648 = vmul.f32 %v488, %v623
        %v649 = vmul.f32 %v489, %v624
        %v650 = vmul.f32 %v490, %v624
        %v651 = vmul.f32 %v491, %v625
        %v652 = vmul.f32 %v492, %v625
        %v653 = vmul.f32 %v493, %v626
        %v654 = vmul.f32 %v494, %v626
        %v655 = vmul.f32 %v495, %v627
        %v656 = vmul.f32 %v496, %v627
        %v657 = vmul.f32 %v497, %v628
        %v658 = vmul.f32 %v498, %v628
        %v659 = vmul.f32 %v499, %v629
        %v660 = vmul.f32 %v500, %v629
        %v661 = vmul.f32 %v501, %v630
        %v662 = vmul.f32 %v502, %v630
        %v664 = vlaneseq
        %v665 = vshrl.u32 %v664, 7
        %v666 = vsub.s32 0, %v665
        %v667 = vrot.slane %v403, %v666
        %v668 = vlaneseq
        %v669 = vshrl.u32 %v668, 7
        %v670 = vsub.s32 1, %v669
        %v671 = vrot.slane %v403, %v670
        %v674 = vmul.f32 %v631, %v667
        %v675 = vmul.f32 %v632, %v671
        %v676 = vmul.f32 %v633, %v667
        %v677 = vmul.f32 %v634, %v671
        %v678 = vmul.f32 %v635, %v667
        %v679 = vmul.f32 %v636, %v671
        %v680 = vmul.f32 %v637, %v667
        %v681 = vmul.f32 %v638, %v671
        %v682 = vmul.f32 %v639, %v667
        %v683 = vmul.f32 %v640, %v671
        %v684 = vmul.f32 %v641, %v667
        %v685 = vmul.f32 %v642, %v671
        %v686 = vmul.f32 %v643, %v667
        %v687 = vmul.f32 %v644, %v671
        %v688 = vmul.f32 %v645, %v667
        %v689 = vmul.f32 %v646, %v671
        %v690 = vmul.f32 %v647, %v667
        %v691 = vmul.f32 %v648, %v671
        %v692 = vmul.f32 %v649, %v667
        %v693 = vmul.f32 %v650, %v671
        %v694 = vmul.f32 %v651, %v667
        %v695 = vmul.f32 %v652, %v671
        %v696 = vmul.f32 %v653, %v667
        %v697 = vmul.f32 %v654, %v671
        %v698 = vmul.f32 %v655, %v667
        %v699 = vmul.f32 %v656, %v671
        %v700 = vmul.f32 %v657, %v667
        %v701 = vmul.f32 %v658, %v671
        %v702 = vmul.f32 %v659, %v667
        %v703 = vmul.f32 %v660, %v671
        %v704 = vmul.f32 %v661, %v667
        %v705 = vmul.f32 %v662, %v671
        %v707 = vlaneseq
        %v708 = vshrl.u32 %v707, 7
        %v709 = vsub.s32 0, %v708
        %v710 = vrot.slane %v405, %v709
        %v711 = vlaneseq
        %v712 = vshrl.u32 %v711, 7
        %v713 = vsub.s32 1, %v712
        %v714 = vrot.slane %v405, %v713
        %v717 = vadd.f32 %v674, %v710
        %v718 = vadd.f32 %v675, %v714
        %v719 = vadd.f32 %v676, %v710
        %v720 = vadd.f32 %v677, %v714
        %v721 = vadd.f32 %v678, %v710
        %v722 = vadd.f32 %v679, %v714
        %v723 = vadd.f32 %v680, %v710
        %v724 = vadd.f32 %v681, %v714
        %v725 = vadd.f32 %v682, %v710
        %v726 = vadd.f32 %v683, %v714
        %v727 = vadd.f32 %v684, %v710
        %v728 = vadd.f32 %v685, %v714
        %v729 = vadd.f32 %v686, %v710
        %v730 = vadd.f32 %v687, %v714
        %v731 = vadd.f32 %v688, %v710
        %v732 = vadd.f32 %v689, %v714
        %v733 = vadd.f32 %v690, %v710
        %v734 = vadd.f32 %v691, %v714
        %v735 = vadd.f32 %v692, %v710
        %v736 = vadd.f32 %v693, %v714
        %v737 = vadd.f32 %v694, %v710
        %v738 = vadd.f32 %v695, %v714
        %v739 = vadd.f32 %v696, %v710
        %v740 = vadd.f32 %v697, %v714
        %v741 = vadd.f32 %v698, %v710
        %v742 = vadd.f32 %v699, %v714
        %v743 = vadd.f32 %v700, %v710
        %v744 = vadd.f32 %v701, %v714
        %v745 = vadd.f32 %v702, %v710
        %v746 = vadd.f32 %v703, %v714
        %v747 = vadd.f32 %v704, %v710
        %v748 = vadd.f32 %v705, %v714
        %v749 = vpack.c.bf16 %v719, %v717
        %v750 = vpack.c.bf16 %v720, %v718
        %v751 = vpack.c.bf16 %v723, %v721
        %v752 = vpack.c.bf16 %v724, %v722
        %v753 = vpack.c.bf16 %v727, %v725
        %v754 = vpack.c.bf16 %v728, %v726
        %v755 = vpack.c.bf16 %v731, %v729
        %v756 = vpack.c.bf16 %v732, %v730
        %v757 = vpack.c.bf16 %v735, %v733
        %v758 = vpack.c.bf16 %v736, %v734
        %v759 = vpack.c.bf16 %v739, %v737
        %v760 = vpack.c.bf16 %v740, %v738
        %v761 = vpack.c.bf16 %v743, %v741
        %v762 = vpack.c.bf16 %v744, %v742
        %v763 = vpack.c.bf16 %v747, %v745
        %v764 = vpack.c.bf16 %v748, %v746
        %v765 = vld [vmem:[#allocation5] sm:$0xff]
        %v766 = vld [vmem:[#allocation5 + $0x8] sm:$0xff]
        %v767 = vld [vmem:[#allocation5 + $0x10] sm:$0xff]
        %v768 = vld [vmem:[#allocation5 + $0x18] sm:$0xff]
        %v769 = vld [vmem:[#allocation5 + $0x20] sm:$0xff]
        %v770 = vld [vmem:[#allocation5 + $0x28] sm:$0xff]
        %v771 = vld [vmem:[#allocation5 + $0x30] sm:$0xff]
        %v772 = vld [vmem:[#allocation5 + $0x38] sm:$0xff]
        %v773 = vld [vmem:[#allocation5 + $0x40] sm:$0xff]
        %v774 = vld [vmem:[#allocation5 + $0x48] sm:$0xff]
        %v775 = vld [vmem:[#allocation5 + $0x50] sm:$0xff]
        %v776 = vld [vmem:[#allocation5 + $0x58] sm:$0xff]
        %v777 = vld [vmem:[#allocation5 + $0x60] sm:$0xff]
        %v778 = vld [vmem:[#allocation5 + $0x68] sm:$0xff]
        %v779 = vld [vmem:[#allocation5 + $0x70] sm:$0xff]
        %v780 = vld [vmem:[#allocation5 + $0x78] sm:$0xff]
        %v781 = vld [vmem:[#allocation5 + $0x80] sm:$0xff]
        %v782 = vld [vmem:[#allocation5 + $0x88] sm:$0xff]
        %v783 = vld [vmem:[#allocation5 + $0x90] sm:$0xff]
        %v784 = vld [vmem:[#allocation5 + $0x98] sm:$0xff]
        %v785 = vld [vmem:[#allocation5 + $0xa0] sm:$0xff]
        %v786 = vld [vmem:[#allocation5 + $0xa8] sm:$0xff]
        %v787 = vld [vmem:[#allocation5 + $0xb0] sm:$0xff]
        %v788 = vld [vmem:[#allocation5 + $0xb8] sm:$0xff]
        %v789 = vld [vmem:[#allocation5 + $0xc0] sm:$0xff]
        %v790 = vld [vmem:[#allocation5 + $0xc8] sm:$0xff]
        %v791 = vld [vmem:[#allocation5 + $0xd0] sm:$0xff]
        %v792 = vld [vmem:[#allocation5 + $0xd8] sm:$0xff]
        %v793 = vld [vmem:[#allocation5 + $0xe0] sm:$0xff]
        %v794 = vld [vmem:[#allocation5 + $0xe8] sm:$0xff]
        %v795 = vld [vmem:[#allocation5 + $0xf0] sm:$0xff]
        %v796 = vld [vmem:[#allocation5 + $0xf8] sm:$0xff]
        %v797 = vld [vmem:[#allocation5 + $0x100] sm:$0xff]
        %v798 = vld [vmem:[#allocation5 + $0x108] sm:$0xff]
        %v799 = vld [vmem:[#allocation5 + $0x110] sm:$0xff]
        %v800 = vld [vmem:[#allocation5 + $0x118] sm:$0xff]
        %v801 = vld [vmem:[#allocation5 + $0x120] sm:$0xff]
        %v802 = vld [vmem:[#allocation5 + $0x128] sm:$0xff]
        %v803 = vld [vmem:[#allocation5 + $0x130] sm:$0xff]
        %v804 = vld [vmem:[#allocation5 + $0x138] sm:$0xff]
        %v805 = vld [vmem:[#allocation5 + $0x140] sm:$0xff]
        %v806 = vld [vmem:[#allocation5 + $0x148] sm:$0xff]
        %v807 = vld [vmem:[#allocation5 + $0x150] sm:$0xff]
        %v808 = vld [vmem:[#allocation5 + $0x158] sm:$0xff]
        %v809 = vld [vmem:[#allocation5 + $0x160] sm:$0xff]
        %v810 = vld [vmem:[#allocation5 + $0x168] sm:$0xff]
        %v811 = vld [vmem:[#allocation5 + $0x170] sm:$0xff]
        %v812 = vld [vmem:[#allocation5 + $0x178] sm:$0xff]
        %v813 = vld [vmem:[#allocation5 + $0x180] sm:$0xff]
        %v814 = vld [vmem:[#allocation5 + $0x188] sm:$0xff]
        %v815 = vld [vmem:[#allocation5 + $0x190] sm:$0xff]
        %v816 = vld [vmem:[#allocation5 + $0x198] sm:$0xff]
        %v817 = vld [vmem:[#allocation5 + $0x1a0] sm:$0xff]
        %v818 = vld [vmem:[#allocation5 + $0x1a8] sm:$0xff]
        %v819 = vld [vmem:[#allocation5 + $0x1b0] sm:$0xff]
        %v820 = vld [vmem:[#allocation5 + $0x1b8] sm:$0xff]
        %v821 = vld [vmem:[#allocation5 + $0x1c0] sm:$0xff]
        %v822 = vld [vmem:[#allocation5 + $0x1c8] sm:$0xff]
        %v823 = vld [vmem:[#allocation5 + $0x1d0] sm:$0xff]
        %v824 = vld [vmem:[#allocation5 + $0x1d8] sm:$0xff]
        %v825 = vld [vmem:[#allocation5 + $0x1e0] sm:$0xff]
        %v826 = vld [vmem:[#allocation5 + $0x1e8] sm:$0xff]
        %v827 = vld [vmem:[#allocation5 + $0x1f0] sm:$0xff]
        %v828 = vld [vmem:[#allocation5 + $0x1f8] sm:$0xff]
        %v829 = vld [vmem:[#allocation5 + $0x200] sm:$0xff]
        %v830 = vld [vmem:[#allocation5 + $0x208] sm:$0xff]
        %v831 = vld [vmem:[#allocation5 + $0x210] sm:$0xff]
        %v832 = vld [vmem:[#allocation5 + $0x218] sm:$0xff]
        %v833 = vld [vmem:[#allocation5 + $0x220] sm:$0xff]
        %v834 = vld [vmem:[#allocation5 + $0x228] sm:$0xff]
        %v835 = vld [vmem:[#allocation5 + $0x230] sm:$0xff]
        %v836 = vld [vmem:[#allocation5 + $0x238] sm:$0xff]
        %v837 = vld [vmem:[#allocation5 + $0x240] sm:$0xff]
        %v838 = vld [vmem:[#allocation5 + $0x248] sm:$0xff]
        %v839 = vld [vmem:[#allocation5 + $0x250] sm:$0xff]
        %v840 = vld [vmem:[#allocation5 + $0x258] sm:$0xff]
        %v841 = vld [vmem:[#allocation5 + $0x260] sm:$0xff]
        %v842 = vld [vmem:[#allocation5 + $0x268] sm:$0xff]
        %v843 = vld [vmem:[#allocation5 + $0x270] sm:$0xff]
        %v844 = vld [vmem:[#allocation5 + $0x278] sm:$0xff]
        %v845 = vld [vmem:[#allocation5 + $0x280] sm:$0xff]
        %v846 = vld [vmem:[#allocation5 + $0x288] sm:$0xff]
        %v847 = vld [vmem:[#allocation5 + $0x290] sm:$0xff]
        %v848 = vld [vmem:[#allocation5 + $0x298] sm:$0xff]
        %v849 = vld [vmem:[#allocation5 + $0x2a0] sm:$0xff]
        %v850 = vld [vmem:[#allocation5 + $0x2a8] sm:$0xff]
        %v851 = vld [vmem:[#allocation5 + $0x2b0] sm:$0xff]
        %v852 = vld [vmem:[#allocation5 + $0x2b8] sm:$0xff]
        %v853 = vld [vmem:[#allocation5 + $0x2c0] sm:$0xff]
        %v854 = vld [vmem:[#allocation5 + $0x2c8] sm:$0xff]
        %v855 = vld [vmem:[#allocation5 + $0x2d0] sm:$0xff]
        %v856 = vld [vmem:[#allocation5 + $0x2d8] sm:$0xff]
        %v857 = vld [vmem:[#allocation5 + $0x2e0] sm:$0xff]
        %v858 = vld [vmem:[#allocation5 + $0x2e8] sm:$0xff]
        %v859 = vld [vmem:[#allocation5 + $0x2f0] sm:$0xff]
        %v860 = vld [vmem:[#allocation5 + $0x2f8] sm:$0xff]
        %v957 = vunpack.c.l.b16 %v765
        %v958 = vunpack.c.h.b16 %v765
        %v959 = vunpack.c.l.b16 %v766
        %v960 = vunpack.c.h.b16 %v766
        %v961 = vunpack.c.l.b16 %v767
        %v962 = vunpack.c.h.b16 %v767
        %v963 = vunpack.c.l.b16 %v768
        %v964 = vunpack.c.h.b16 %v768
        %v965 = vunpack.c.l.b16 %v769
        %v966 = vunpack.c.h.b16 %v769
        %v967 = vunpack.c.l.b16 %v770
        %v968 = vunpack.c.h.b16 %v770
        %v969 = vunpack.c.l.b16 %v771
        %v970 = vunpack.c.h.b16 %v771
        %v971 = vunpack.c.l.b16 %v772
        %v972 = vunpack.c.h.b16 %v772
        %v973 = vunpack.c.l.b16 %v773
        %v974 = vunpack.c.h.b16 %v773
        %v975 = vunpack.c.l.b16 %v774
        %v976 = vunpack.c.h.b16 %v774
        %v977 = vunpack.c.l.b16 %v775
        %v978 = vunpack.c.h.b16 %v775
        %v979 = vunpack.c.l.b16 %v776
        %v980 = vunpack.c.h.b16 %v776
        %v981 = vunpack.c.l.b16 %v777
        %v982 = vunpack.c.h.b16 %v777
        %v983 = vunpack.c.l.b16 %v778
        %v984 = vunpack.c.h.b16 %v778
        %v985 = vunpack.c.l.b16 %v779
        %v986 = vunpack.c.h.b16 %v779
        %v987 = vunpack.c.l.b16 %v780
        %v988 = vunpack.c.h.b16 %v780
        %v989 = vunpack.c.l.b16 %v781
        %v990 = vunpack.c.h.b16 %v781
        %v991 = vunpack.c.l.b16 %v782
        %v992 = vunpack.c.h.b16 %v782
        %v993 = vunpack.c.l.b16 %v783
        %v994 = vunpack.c.h.b16 %v783
        %v995 = vunpack.c.l.b16 %v784
        %v996 = vunpack.c.h.b16 %v784
        %v997 = vunpack.c.l.b16 %v785
        %v998 = vunpack.c.h.b16 %v785
        %v999 = vunpack.c.l.b16 %v786
        %v1000 = vunpack.c.h.b16 %v786
        %v1001 = vunpack.c.l.b16 %v787
        %v1002 = vunpack.c.h.b16 %v787
        %v1003 = vunpack.c.l.b16 %v788
        %v1004 = vunpack.c.h.b16 %v788
        %v1005 = vunpack.c.l.b16 %v789
        %v1006 = vunpack.c.h.b16 %v789
        %v1007 = vunpack.c.l.b16 %v790
        %v1008 = vunpack.c.h.b16 %v790
        %v1009 = vunpack.c.l.b16 %v791
        %v1010 = vunpack.c.h.b16 %v791
        %v1011 = vunpack.c.l.b16 %v792
        %v1012 = vunpack.c.h.b16 %v792
        %v1013 = vunpack.c.l.b16 %v793
        %v1014 = vunpack.c.h.b16 %v793
        %v1015 = vunpack.c.l.b16 %v794
        %v1016 = vunpack.c.h.b16 %v794
        %v1017 = vunpack.c.l.b16 %v795
        %v1018 = vunpack.c.h.b16 %v795
        %v1019 = vunpack.c.l.b16 %v796
        %v1020 = vunpack.c.h.b16 %v796
        %v1021 = vunpack.c.l.b16 %v797
        %v1022 = vunpack.c.h.b16 %v797
        %v1023 = vunpack.c.l.b16 %v798
        %v1024 = vunpack.c.h.b16 %v798
        %v1025 = vunpack.c.l.b16 %v799
        %v1026 = vunpack.c.h.b16 %v799
        %v1027 = vunpack.c.l.b16 %v800
        %v1028 = vunpack.c.h.b16 %v800
        %v1029 = vunpack.c.l.b16 %v801
        %v1030 = vunpack.c.h.b16 %v801
        %v1031 = vunpack.c.l.b16 %v802
        %v1032 = vunpack.c.h.b16 %v802
        %v1033 = vunpack.c.l.b16 %v803
        %v1034 = vunpack.c.h.b16 %v803
        %v1035 = vunpack.c.l.b16 %v804
        %v1036 = vunpack.c.h.b16 %v804
        %v1037 = vunpack.c.l.b16 %v805
        %v1038 = vunpack.c.h.b16 %v805
        %v1039 = vunpack.c.l.b16 %v806
        %v1040 = vunpack.c.h.b16 %v806
        %v1041 = vunpack.c.l.b16 %v807
        %v1042 = vunpack.c.h.b16 %v807
        %v1043 = vunpack.c.l.b16 %v808
        %v1044 = vunpack.c.h.b16 %v808
        %v1045 = vunpack.c.l.b16 %v809
        %v1046 = vunpack.c.h.b16 %v809
        %v1047 = vunpack.c.l.b16 %v810
        %v1048 = vunpack.c.h.b16 %v810
        %v1049 = vunpack.c.l.b16 %v811
        %v1050 = vunpack.c.h.b16 %v811
        %v1051 = vunpack.c.l.b16 %v812
        %v1052 = vunpack.c.h.b16 %v812
        %v1053 = vunpack.c.l.b16 %v813
        %v1054 = vunpack.c.h.b16 %v813
        %v1055 = vunpack.c.l.b16 %v814
        %v1056 = vunpack.c.h.b16 %v814
        %v1057 = vunpack.c.l.b16 %v815
        %v1058 = vunpack.c.h.b16 %v815
        %v1059 = vunpack.c.l.b16 %v816
        %v1060 = vunpack.c.h.b16 %v816
        %v1061 = vunpack.c.l.b16 %v817
        %v1062 = vunpack.c.h.b16 %v817
        %v1063 = vunpack.c.l.b16 %v818
        %v1064 = vunpack.c.h.b16 %v818
        %v1065 = vunpack.c.l.b16 %v819
        %v1066 = vunpack.c.h.b16 %v819
        %v1067 = vunpack.c.l.b16 %v820
        %v1068 = vunpack.c.h.b16 %v820
        %v1069 = vunpack.c.l.b16 %v821
        %v1070 = vunpack.c.h.b16 %v821
        %v1071 = vunpack.c.l.b16 %v822
        %v1072 = vunpack.c.h.b16 %v822
        %v1073 = vunpack.c.l.b16 %v823
        %v1074 = vunpack.c.h.b16 %v823
        %v1075 = vunpack.c.l.b16 %v824
        %v1076 = vunpack.c.h.b16 %v824
        %v1077 = vunpack.c.l.b16 %v825
        %v1078 = vunpack.c.h.b16 %v825
        %v1079 = vunpack.c.l.b16 %v826
        %v1080 = vunpack.c.h.b16 %v826
        %v1081 = vunpack.c.l.b16 %v827
        %v1082 = vunpack.c.h.b16 %v827
        %v1083 = vunpack.c.l.b16 %v828
        %v1084 = vunpack.c.h.b16 %v828
        %v1085 = vunpack.c.l.b16 %v829
        %v1086 = vunpack.c.h.b16 %v829
        %v1087 = vunpack.c.l.b16 %v830
        %v1088 = vunpack.c.h.b16 %v830
        %v1089 = vunpack.c.l.b16 %v831
        %v1090 = vunpack.c.h.b16 %v831
        %v1091 = vunpack.c.l.b16 %v832
        %v1092 = vunpack.c.h.b16 %v832
        %v1093 = vunpack.c.l.b16 %v833
        %v1094 = vunpack.c.h.b16 %v833
        %v1095 = vunpack.c.l.b16 %v834
        %v1096 = vunpack.c.h.b16 %v834
        %v1097 = vunpack.c.l.b16 %v835
        %v1098 = vunpack.c.h.b16 %v835
        %v1099 = vunpack.c.l.b16 %v836
        %v1100 = vunpack.c.h.b16 %v836
        %v1101 = vunpack.c.l.b16 %v837
        %v1102 = vunpack.c.h.b16 %v837
        %v1103 = vunpack.c.l.b16 %v838
        %v1104 = vunpack.c.h.b16 %v838
        %v1105 = vunpack.c.l.b16 %v839
        %v1106 = vunpack.c.h.b16 %v839
        %v1107 = vunpack.c.l.b16 %v840
        %v1108 = vunpack.c.h.b16 %v840
        %v1109 = vunpack.c.l.b16 %v841
        %v1110 = vunpack.c.h.b16 %v841
        %v1111 = vunpack.c.l.b16 %v842
        %v1112 = vunpack.c.h.b16 %v842
        %v1113 = vunpack.c.l.b16 %v843
        %v1114 = vunpack.c.h.b16 %v843
        %v1115 = vunpack.c.l.b16 %v844
        %v1116 = vunpack.c.h.b16 %v844
        %v1117 = vunpack.c.l.b16 %v845
        %v1118 = vunpack.c.h.b16 %v845
        %v1119 = vunpack.c.l.b16 %v846
        %v1120 = vunpack.c.h.b16 %v846
        %v1121 = vunpack.c.l.b16 %v847
        %v1122 = vunpack.c.h.b16 %v847
        %v1123 = vunpack.c.l.b16 %v848
        %v1124 = vunpack.c.h.b16 %v848
        %v1125 = vunpack.c.l.b16 %v849
        %v1126 = vunpack.c.h.b16 %v849
        %v1127 = vunpack.c.l.b16 %v850
        %v1128 = vunpack.c.h.b16 %v850
        %v1129 = vunpack.c.l.b16 %v851
        %v1130 = vunpack.c.h.b16 %v851
        %v1131 = vunpack.c.l.b16 %v852
        %v1132 = vunpack.c.h.b16 %v852
        %v1133 = vunpack.c.l.b16 %v853
        %v1134 = vunpack.c.h.b16 %v853
        %v1135 = vunpack.c.l.b16 %v854
        %v1136 = vunpack.c.h.b16 %v854
        %v1137 = vunpack.c.l.b16 %v855
        %v1138 = vunpack.c.h.b16 %v855
        %v1139 = vunpack.c.l.b16 %v856
        %v1140 = vunpack.c.h.b16 %v856
        %v1141 = vunpack.c.l.b16 %v857
        %v1142 = vunpack.c.h.b16 %v857
        %v1143 = vunpack.c.l.b16 %v858
        %v1144 = vunpack.c.h.b16 %v858
        %v1145 = vunpack.c.l.b16 %v859
        %v1146 = vunpack.c.h.b16 %v859
        %v1147 = vunpack.c.l.b16 %v860
        %v1148 = vunpack.c.h.b16 %v860
        %v1149 = vpack.c.b16 %v963, %v957
        %v1150 = vpack.c.b16 %v964, %v958
        %v1151 = vpack.c.b16 %v965, %v959
        %v1152 = vpack.c.b16 %v966, %v960
        %v1153 = vpack.c.b16 %v967, %v961
        %v1154 = vpack.c.b16 %v968, %v962
        %v1155 = vpack.c.b16 %v975, %v969
        %v1156 = vpack.c.b16 %v976, %v970
        %v1157 = vpack.c.b16 %v977, %v971
        %v1158 = vpack.c.b16 %v978, %v972
        %v1159 = vpack.c.b16 %v979, %v973
        %v1160 = vpack.c.b16 %v980, %v974
        %v1161 = vpack.c.b16 %v987, %v981
        %v1162 = vpack.c.b16 %v988, %v982
        %v1163 = vpack.c.b16 %v989, %v983
        %v1164 = vpack.c.b16 %v990, %v984
        %v1165 = vpack.c.b16 %v991, %v985
        %v1166 = vpack.c.b16 %v992, %v986
        %v1167 = vpack.c.b16 %v999, %v993
        %v1168 = vpack.c.b16 %v1000, %v994
        %v1169 = vpack.c.b16 %v1001, %v995
        %v1170 = vpack.c.b16 %v1002, %v996
        %v1171 = vpack.c.b16 %v1003, %v997
        %v1172 = vpack.c.b16 %v1004, %v998
        %v1173 = vpack.c.b16 %v1011, %v1005
        %v1174 = vpack.c.b16 %v1012, %v1006
        %v1175 = vpack.c.b16 %v1013, %v1007
        %v1176 = vpack.c.b16 %v1014, %v1008
        %v1177 = vpack.c.b16 %v1015, %v1009
        %v1178 = vpack.c.b16 %v1016, %v1010
        %v1179 = vpack.c.b16 %v1023, %v1017
        %v1180 = vpack.c.b16 %v1024, %v1018
        %v1181 = vpack.c.b16 %v1025, %v1019
        %v1182 = vpack.c.b16 %v1026, %v1020
        %v1183 = vpack.c.b16 %v1027, %v1021
        %v1184 = vpack.c.b16 %v1028, %v1022
        %v1185 = vpack.c.b16 %v1035, %v1029
        %v1186 = vpack.c.b16 %v1036, %v1030
        %v1187 = vpack.c.b16 %v1037, %v1031
        %v1188 = vpack.c.b16 %v1038, %v1032
        %v1189 = vpack.c.b16 %v1039, %v1033
        %v1190 = vpack.c.b16 %v1040, %v1034
        %v1191 = vpack.c.b16 %v1047, %v1041
        %v1192 = vpack.c.b16 %v1048, %v1042
        %v1193 = vpack.c.b16 %v1049, %v1043
        %v1194 = vpack.c.b16 %v1050, %v1044
        %v1195 = vpack.c.b16 %v1051, %v1045
        %v1196 = vpack.c.b16 %v1052, %v1046
        %v1197 = vpack.c.b16 %v1059, %v1053
        %v1198 = vpack.c.b16 %v1060, %v1054
        %v1199 = vpack.c.b16 %v1061, %v1055
        %v1200 = vpack.c.b16 %v1062, %v1056
        %v1201 = vpack.c.b16 %v1063, %v1057
        %v1202 = vpack.c.b16 %v1064, %v1058
        %v1203 = vpack.c.b16 %v1071, %v1065
        %v1204 = vpack.c.b16 %v1072, %v1066
        %v1205 = vpack.c.b16 %v1073, %v1067
        %v1206 = vpack.c.b16 %v1074, %v1068
        %v1207 = vpack.c.b16 %v1075, %v1069
        %v1208 = vpack.c.b16 %v1076, %v1070
        %v1209 = vpack.c.b16 %v1083, %v1077
        %v1210 = vpack.c.b16 %v1084, %v1078
        %v1211 = vpack.c.b16 %v1085, %v1079
        %v1212 = vpack.c.b16 %v1086, %v1080
        %v1213 = vpack.c.b16 %v1087, %v1081
        %v1214 = vpack.c.b16 %v1088, %v1082
        %v1215 = vpack.c.b16 %v1095, %v1089
        %v1216 = vpack.c.b16 %v1096, %v1090
        %v1217 = vpack.c.b16 %v1097, %v1091
        %v1218 = vpack.c.b16 %v1098, %v1092
        %v1219 = vpack.c.b16 %v1099, %v1093
        %v1220 = vpack.c.b16 %v1100, %v1094
        %v1221 = vpack.c.b16 %v1107, %v1101
        %v1222 = vpack.c.b16 %v1108, %v1102
        %v1223 = vpack.c.b16 %v1109, %v1103
        %v1224 = vpack.c.b16 %v1110, %v1104
        %v1225 = vpack.c.b16 %v1111, %v1105
        %v1226 = vpack.c.b16 %v1112, %v1106
        %v1227 = vpack.c.b16 %v1119, %v1113
        %v1228 = vpack.c.b16 %v1120, %v1114
        %v1229 = vpack.c.b16 %v1121, %v1115
        %v1230 = vpack.c.b16 %v1122, %v1116
        %v1231 = vpack.c.b16 %v1123, %v1117
        %v1232 = vpack.c.b16 %v1124, %v1118
        %v1233 = vpack.c.b16 %v1131, %v1125
        %v1234 = vpack.c.b16 %v1132, %v1126
        %v1235 = vpack.c.b16 %v1133, %v1127
        %v1236 = vpack.c.b16 %v1134, %v1128
        %v1237 = vpack.c.b16 %v1135, %v1129
        %v1238 = vpack.c.b16 %v1136, %v1130
        %v1239 = vpack.c.b16 %v1143, %v1137
        %v1240 = vpack.c.b16 %v1144, %v1138
        %v1241 = vpack.c.b16 %v1145, %v1139
        %v1242 = vpack.c.b16 %v1146, %v1140
        %v1243 = vpack.c.b16 %v1147, %v1141
        %v1244 = vpack.c.b16 %v1148, %v1142
        %1341 = vmatprep.subr.bf16.mxu0 %v1150
        %1342 = vmatpush1.bf16.msra.mxu0 %v1149
        %1343 = vmatprep.subr.bf16.mxu0 %v1156
        %1344 = vmatpush1.bf16.msra.mxu0 %v1155
        %1345 = vmatprep.subr.bf16.mxu0 %v1162
        %1346 = vmatpush1.bf16.msra.mxu0 %v1161
        %1347 = vmatprep.subr.bf16.mxu0 %v1168
        %1348 = vmatpush1.bf16.msra.mxu0 %v1167
        %1349 = vmatprep.subr.bf16.mxu0 %v1174
        %1350 = vmatpush1.bf16.msra.mxu0 %v1173
        %1351 = vmatprep.subr.bf16.mxu0 %v1180
        %1352 = vmatpush1.bf16.msra.mxu0 %v1179
        %1353 = vmatprep.subr.bf16.mxu0 %v1186
        %1354 = vmatpush1.bf16.msra.mxu0 %v1185
        %1355 = vmatprep.subr.bf16.mxu0 %v1192
        %1356 = vmatpush1.bf16.msra.mxu0 %v1191
        %1357 = vmatprep.subr.bf16.mxu0 %v1198
        %1358 = vmatpush1.bf16.msra.mxu0 %v1197
        %1359 = vmatprep.subr.bf16.mxu0 %v1204
        %1360 = vmatpush1.bf16.msra.mxu0 %v1203
        %1361 = vmatprep.subr.bf16.mxu0 %v1210
        %1362 = vmatpush1.bf16.msra.mxu0 %v1209
        %1363 = vmatprep.subr.bf16.mxu0 %v1216
        %1364 = vmatpush1.bf16.msra.mxu0 %v1215
        %1365 = vmatprep.subr.bf16.mxu0 %v1222
        %1366 = vmatpush1.bf16.msra.mxu0 %v1221
        %1367 = vmatprep.subr.bf16.mxu0 %v1228
        %1368 = vmatpush1.bf16.msra.mxu0 %v1227
        %1369 = vmatprep.subr.bf16.mxu0 %v1234
        %1370 = vmatpush1.bf16.msra.mxu0 %v1233
        %1371 = vmatprep.subr.bf16.mxu0 %v1240
        %1372 = vmatpush1.bf16.msra.mxu0 %v1239
        %1373 = vmatprep.mubr.bf16.mxu0 %v750
        %1374 = vmatmul.mubr.bf16.gmra.mrb[0].mxu0 %v749
        %v1375 = vpop.f32.mrb[0].mxu0
        %v1376 = vadd.f32 0.0, %v1375
        %v1377 = vpop.f32.mrb[0].mxu0
        %v1378 = vadd.f32 0.0, %v1377
        %v1379 = vpop.f32.mrb[0].mxu0
        %v1380 = vadd.f32 0.0, %v1379
        %v1381 = vpop.f32.mrb[0].mxu0
        %v1382 = vadd.f32 0.0, %v1381
        %1383 = vmatprep.mubr.bf16.mxu0 %v752
        %1384 = vmatmul.mubr.bf16.gmra.mrb[0].mxu0 %v751
        %v1385 = vpop.f32.mrb[0].mxu0
        %v1386 = vadd.f32 0.0, %v1385
        %v1387 = vpop.f32.mrb[0].mxu0
        %v1388 = vadd.f32 0.0, %v1387
        %v1389 = vpop.f32.mrb[0].mxu0
        %v1390 = vadd.f32 0.0, %v1389
        %v1391 = vpop.f32.mrb[0].mxu0
        %v1392 = vadd.f32 0.0, %v1391
        %1393 = vmatprep.mubr.bf16.mxu0 %v754
        %1394 = vmatmul.mubr.bf16.gmra.mrb[0].mxu0 %v753
        %v1395 = vpop.f32.mrb[0].mxu0
        %v1396 = vadd.f32 0.0, %v1395
        %v1397 = vpop.f32.mrb[0].mxu0
        %v1398 = vadd.f32 0.0, %v1397
        %v1399 = vpop.f32.mrb[0].mxu0
        %v1400 = vadd.f32 0.0, %v1399
        %v1401 = vpop.f32.mrb[0].mxu0
        %v1402 = vadd.f32 0.0, %v1401
        %1403 = vmatprep.mubr.bf16.mxu0 %v756
        %1404 = vmatmul.mubr.bf16.gmra.mrb[0].mxu0 %v755
        %v1405 = vpop.f32.mrb[0].mxu0
        %v1406 = vadd.f32 0.0, %v1405
        %v1407 = vpop.f32.mrb[0].mxu0
        %v1408 = vadd.f32 0.0, %v1407
        %v1409 = vpop.f32.mrb[0].mxu0
        %v1410 = vadd.f32 0.0, %v1409
        %v1411 = vpop.f32.mrb[0].mxu0
        %v1412 = vadd.f32 0.0, %v1411
        %1413 = vmatprep.mubr.bf16.mxu0 %v758
        %1414 = vmatmul.mubr.bf16.gmra.mrb[0].mxu0 %v757
        %v1415 = vpop.f32.mrb[0].mxu0
        %v1416 = vadd.f32 0.0, %v1415
        %v1417 = vpop.f32.mrb[0].mxu0
        %v1418 = vadd.f32 0.0, %v1417
        %v1419 = vpop.f32.mrb[0].mxu0
        %v1420 = vadd.f32 0.0, %v1419
        %v1421 = vpop.f32.mrb[0].mxu0
        %v1422 = vadd.f32 0.0, %v1421
        %1423 = vmatprep.mubr.bf16.mxu0 %v760
        %1424 = vmatmul.mubr.bf16.gmra.mrb[0].mxu0 %v759
        %v1425 = vpop.f32.mrb[0].mxu0
        %v1426 = vadd.f32 0.0, %v1425
        %v1427 = vpop.f32.mrb[0].mxu0
        %v1428 = vadd.f32 0.0, %v1427
        %v1429 = vpop.f32.mrb[0].mxu0
        %v1430 = vadd.f32 0.0, %v1429
        %v1431 = vpop.f32.mrb[0].mxu0
        %v1432 = vadd.f32 0.0, %v1431
        %1433 = vmatprep.mubr.bf16.mxu0 %v762
        %1434 = vmatmul.mubr.bf16.gmra.mrb[0].mxu0 %v761
        %v1435 = vpop.f32.mrb[0].mxu0
        %v1436 = vadd.f32 0.0, %v1435
        %v1437 = vpop.f32.mrb[0].mxu0
        %v1438 = vadd.f32 0.0, %v1437
        %v1439 = vpop.f32.mrb[0].mxu0
        %v1440 = vadd.f32 0.0, %v1439
        %v1441 = vpop.f32.mrb[0].mxu0
        %v1442 = vadd.f32 0.0, %v1441
        %1443 = vmatprep.mubr.bf16.mxu0 %v764
        %1444 = vmatmul.mubr.bf16.gmra.mrb[0].mxu0 %v763
        %v1445 = vpop.f32.mrb[0].mxu0
        %v1446 = vadd.f32 0.0, %v1445
        %v1447 = vpop.f32.mrb[0].mxu0
        %v1448 = vadd.f32 0.0, %v1447
        %v1449 = vpop.f32.mrb[0].mxu0
        %v1450 = vadd.f32 0.0, %v1449
        %v1451 = vpop.f32.mrb[0].mxu0
        %v1452 = vadd.f32 0.0, %v1451
        %1453 = vdwg.mxu0
        %1454 = vmatprep.subr.bf16.mxu0 %v1152
        %1455 = vmatpush1.bf16.msra.mxu0 %v1151
        %1456 = vmatprep.subr.bf16.mxu0 %v1158
        %1457 = vmatpush1.bf16.msra.mxu0 %v1157
        %1458 = vmatprep.subr.bf16.mxu0 %v1164
        %1459 = vmatpush1.bf16.msra.mxu0 %v1163
        %1460 = vmatprep.subr.bf16.mxu0 %v1170
        %1461 = vmatpush1.bf16.msra.mxu0 %v1169
        %1462 = vmatprep.subr.bf16.mxu0 %v1176
        %1463 = vmatpush1.bf16.msra.mxu0 %v1175
        %1464 = vmatprep.subr.bf16.mxu0 %v1182
        %1465 = vmatpush1.bf16.msra.mxu0 %v1181
        %1466 = vmatprep.subr.bf16.mxu0 %v1188
        %1467 = vmatpush1.bf16.msra.mxu0 %v1187
        %1468 = vmatprep.subr.bf16.mxu0 %v1194
        %1469 = vmatpush1.bf16.msra.mxu0 %v1193
        %1470 = vmatprep.subr.bf16.mxu0 %v1200
        %1471 = vmatpush1.bf16.msra.mxu0 %v1199
        %1472 = vmatprep.subr.bf16.mxu0 %v1206
        %1473 = vmatpush1.bf16.msra.mxu0 %v1205
        %1474 = vmatprep.subr.bf16.mxu0 %v1212
        %1475 = vmatpush1.bf16.msra.mxu0 %v1211
        %1476 = vmatprep.subr.bf16.mxu0 %v1218
        %1477 = vmatpush1.bf16.msra.mxu0 %v1217
        %1478 = vmatprep.subr.bf16.mxu0 %v1224
        %1479 = vmatpush1.bf16.msra.mxu0 %v1223
        %1480 = vmatprep.subr.bf16.mxu0 %v1230
        %1481 = vmatpush1.bf16.msra.mxu0 %v1229
        %1482 = vmatprep.subr.bf16.mxu0 %v1236
        %1483 = vmatpush1.bf16.msra.mxu0 %v1235
        %1484 = vmatprep.subr.bf16.mxu0 %v1242
        %1485 = vmatpush1.bf16.msra.mxu0 %v1241
        %1486 = vmatprep.mubr.bf16.mxu0 %v750
        %1487 = vmatmul.mubr.bf16.gmra.mrb[0].mxu0 %v749
        %v1488 = vpop.f32.mrb[0].mxu0
        %v1489 = vadd.f32 0.0, %v1488
        %v1490 = vpop.f32.mrb[0].mxu0
        %v1491 = vadd.f32 0.0, %v1490
        %v1492 = vpop.f32.mrb[0].mxu0
        %v1493 = vadd.f32 0.0, %v1492
        %v1494 = vpop.f32.mrb[0].mxu0
        %v1495 = vadd.f32 0.0, %v1494
        %1496 = vmatprep.mubr.bf16.mxu0 %v752
        %1497 = vmatmul.mubr.bf16.gmra.mrb[0].mxu0 %v751
        %v1498 = vpop.f32.mrb[0].mxu0
        %v1499 = vadd.f32 0.0, %v1498
        %v1500 = vpop.f32.mrb[0].mxu0
        %v1501 = vadd.f32 0.0, %v1500
        %v1502 = vpop.f32.mrb[0].mxu0
        %v1503 = vadd.f32 0.0, %v1502
        %v1504 = vpop.f32.mrb[0].mxu0
        %v1505 = vadd.f32 0.0, %v1504
        %1506 = vmatprep.mubr.bf16.mxu0 %v754
        %1507 = vmatmul.mubr.bf16.gmra.mrb[0].mxu0 %v753
        %v1508 = vpop.f32.mrb[0].mxu0
        %v1509 = vadd.f32 0.0, %v1508
        %v1510 = vpop.f32.mrb[0].mxu0
        %v1511 = vadd.f32 0.0, %v1510
        %v1512 = vpop.f32.mrb[0].mxu0
        %v1513 = vadd.f32 0.0, %v1512
        %v1514 = vpop.f32.mrb[0].mxu0
        %v1515 = vadd.f32 0.0, %v1514
        %1516 = vmatprep.mubr.bf16.mxu0 %v756
        %1517 = vmatmul.mubr.bf16.gmra.mrb[0].mxu0 %v755
        %v1518 = vpop.f32.mrb[0].mxu0
        %v1519 = vadd.f32 0.0, %v1518
        %v1520 = vpop.f32.mrb[0].mxu0
        %v1521 = vadd.f32 0.0, %v1520
        %v1522 = vpop.f32.mrb[0].mxu0
        %v1523 = vadd.f32 0.0, %v1522
        %v1524 = vpop.f32.mrb[0].mxu0
        %v1525 = vadd.f32 0.0, %v1524
        %1526 = vmatprep.mubr.bf16.mxu0 %v758
        %1527 = vmatmul.mubr.bf16.gmra.mrb[0].mxu0 %v757
        %v1528 = vpop.f32.mrb[0].mxu0
        %v1529 = vadd.f32 0.0, %v1528
        %v1530 = vpop.f32.mrb[0].mxu0
        %v1531 = vadd.f32 0.0, %v1530
        %v1532 = vpop.f32.mrb[0].mxu0
        %v1533 = vadd.f32 0.0, %v1532
        %v1534 = vpop.f32.mrb[0].mxu0
        %v1535 = vadd.f32 0.0, %v1534
        %1536 = vmatprep.mubr.bf16.mxu0 %v760
        %1537 = vmatmul.mubr.bf16.gmra.mrb[0].mxu0 %v759
        %v1538 = vpop.f32.mrb[0].mxu0
        %v1539 = vadd.f32 0.0, %v1538
        %v1540 = vpop.f32.mrb[0].mxu0
        %v1541 = vadd.f32 0.0, %v1540
        %v1542 = vpop.f32.mrb[0].mxu0
        %v1543 = vadd.f32 0.0, %v1542
        %v1544 = vpop.f32.mrb[0].mxu0
        %v1545 = vadd.f32 0.0, %v1544
        %1546 = vmatprep.mubr.bf16.mxu0 %v762
        %1547 = vmatmul.mubr.bf16.gmra.mrb[0].mxu0 %v761
        %v1548 = vpop.f32.mrb[0].mxu0
        %v1549 = vadd.f32 0.0, %v1548
        %v1550 = vpop.f32.mrb[0].mxu0
        %v1551 = vadd.f32 0.0, %v1550
        %v1552 = vpop.f32.mrb[0].mxu0
        %v1553 = vadd.f32 0.0, %v1552
        %v1554 = vpop.f32.mrb[0].mxu0
        %v1555 = vadd.f32 0.0, %v1554
        %1556 = vmatprep.mubr.bf16.mxu0 %v764
        %1557 = vmatmul.mubr.bf16.gmra.mrb[0].mxu0 %v763
        %v1558 = vpop.f32.mrb[0].mxu0
        %v1559 = vadd.f32 0.0, %v1558
        %v1560 = vpop.f32.mrb[0].mxu0
        %v1561 = vadd.f32 0.0, %v1560
        %v1562 = vpop.f32.mrb[0].mxu0
        %v1563 = vadd.f32 0.0, %v1562
        %v1564 = vpop.f32.mrb[0].mxu0
        %v1565 = vadd.f32 0.0, %v1564
        %1566 = vdwg.mxu0
        %1567 = vmatprep.subr.bf16.mxu0 %v1154
        %1568 = vmatpush1.bf16.msra.mxu0 %v1153
        %1569 = vmatprep.subr.bf16.mxu0 %v1160
        %1570 = vmatpush1.bf16.msra.mxu0 %v1159
        %1571 = vmatprep.subr.bf16.mxu0 %v1166
        %1572 = vmatpush1.bf16.msra.mxu0 %v1165
        %1573 = vmatprep.subr.bf16.mxu0 %v1172
        %1574 = vmatpush1.bf16.msra.mxu0 %v1171
        %1575 = vmatprep.subr.bf16.mxu0 %v1178
        %1576 = vmatpush1.bf16.msra.mxu0 %v1177
        %1577 = vmatprep.subr.bf16.mxu0 %v1184
        %1578 = vmatpush1.bf16.msra.mxu0 %v1183
        %1579 = vmatprep.subr.bf16.mxu0 %v1190
        %1580 = vmatpush1.bf16.msra.mxu0 %v1189
        %1581 = vmatprep.subr.bf16.mxu0 %v1196
        %1582 = vmatpush1.bf16.msra.mxu0 %v1195
        %1583 = vmatprep.subr.bf16.mxu0 %v1202
        %1584 = vmatpush1.bf16.msra.mxu0 %v1201
        %1585 = vmatprep.subr.bf16.mxu0 %v1208
        %1586 = vmatpush1.bf16.msra.mxu0 %v1207
        %1587 = vmatprep.subr.bf16.mxu0 %v1214
        %1588 = vmatpush1.bf16.msra.mxu0 %v1213
        %1589 = vmatprep.subr.bf16.mxu0 %v1220
        %1590 = vmatpush1.bf16.msra.mxu0 %v1219
        %1591 = vmatprep.subr.bf16.mxu0 %v1226
        %1592 = vmatpush1.bf16.msra.mxu0 %v1225
        %1593 = vmatprep.subr.bf16.mxu0 %v1232
        %1594 = vmatpush1.bf16.msra.mxu0 %v1231
        %1595 = vmatprep.subr.bf16.mxu0 %v1238
        %1596 = vmatpush1.bf16.msra.mxu0 %v1237
        %1597 = vmatprep.subr.bf16.mxu0 %v1244
        %1598 = vmatpush1.bf16.msra.mxu0 %v1243
        %1599 = vmatprep.mubr.bf16.mxu0 %v750
        %1600 = vmatmul.mubr.bf16.gmra.mrb[0].mxu0 %v749
        %v1601 = vpop.f32.mrb[0].mxu0
        %v1602 = vadd.f32 0.0, %v1601
        %v1603 = vpop.f32.mrb[0].mxu0
        %v1604 = vadd.f32 0.0, %v1603
        %v1605 = vpop.f32.mrb[0].mxu0
        %v1606 = vadd.f32 0.0, %v1605
        %v1607 = vpop.f32.mrb[0].mxu0
        %v1608 = vadd.f32 0.0, %v1607
        %1609 = vmatprep.mubr.bf16.mxu0 %v752
        %1610 = vmatmul.mubr.bf16.gmra.mrb[0].mxu0 %v751
        %v1611 = vpop.f32.mrb[0].mxu0
        %v1612 = vadd.f32 0.0, %v1611
        %v1613 = vpop.f32.mrb[0].mxu0
        %v1614 = vadd.f32 0.0, %v1613
        %v1615 = vpop.f32.mrb[0].mxu0
        %v1616 = vadd.f32 0.0, %v1615
        %v1617 = vpop.f32.mrb[0].mxu0
        %v1618 = vadd.f32 0.0, %v1617
        %1619 = vmatprep.mubr.bf16.mxu0 %v754
        %1620 = vmatmul.mubr.bf16.gmra.mrb[0].mxu0 %v753
        %v1621 = vpop.f32.mrb[0].mxu0
        %v1622 = vadd.f32 0.0, %v1621
        %v1623 = vpop.f32.mrb[0].mxu0
        %v1624 = vadd.f32 0.0, %v1623
        %v1625 = vpop.f32.mrb[0].mxu0
        %v1626 = vadd.f32 0.0, %v1625
        %v1627 = vpop.f32.mrb[0].mxu0
        %v1628 = vadd.f32 0.0, %v1627
        %1629 = vmatprep.mubr.bf16.mxu0 %v756
        %1630 = vmatmul.mubr.bf16.gmra.mrb[0].mxu0 %v755
        %v1631 = vpop.f32.mrb[0].mxu0
        %v1632 = vadd.f32 0.0, %v1631
        %v1633 = vpop.f32.mrb[0].mxu0
        %v1634 = vadd.f32 0.0, %v1633
        %v1635 = vpop.f32.mrb[0].mxu0
        %v1636 = vadd.f32 0.0, %v1635
        %v1637 = vpop.f32.mrb[0].mxu0
        %v1638 = vadd.f32 0.0, %v1637
        %1639 = vmatprep.mubr.bf16.mxu0 %v758
        %1640 = vmatmul.mubr.bf16.gmra.mrb[0].mxu0 %v757
        %v1641 = vpop.f32.mrb[0].mxu0
        %v1642 = vadd.f32 0.0, %v1641
        %v1643 = vpop.f32.mrb[0].mxu0
        %v1644 = vadd.f32 0.0, %v1643
        %v1645 = vpop.f32.mrb[0].mxu0
        %v1646 = vadd.f32 0.0, %v1645
        %v1647 = vpop.f32.mrb[0].mxu0
        %v1648 = vadd.f32 0.0, %v1647
        %1649 = vmatprep.mubr.bf16.mxu0 %v760
        %1650 = vmatmul.mubr.bf16.gmra.mrb[0].mxu0 %v759
        %v1651 = vpop.f32.mrb[0].mxu0
        %v1652 = vadd.f32 0.0, %v1651
        %v1653 = vpop.f32.mrb[0].mxu0
        %v1654 = vadd.f32 0.0, %v1653
        %v1655 = vpop.f32.mrb[0].mxu0
        %v1656 = vadd.f32 0.0, %v1655
        %v1657 = vpop.f32.mrb[0].mxu0
        %v1658 = vadd.f32 0.0, %v1657
        %1659 = vmatprep.mubr.bf16.mxu0 %v762
        %1660 = vmatmul.mubr.bf16.gmra.mrb[0].mxu0 %v761
        %v1661 = vpop.f32.mrb[0].mxu0
        %v1662 = vadd.f32 0.0, %v1661
        %v1663 = vpop.f32.mrb[0].mxu0
        %v1664 = vadd.f32 0.0, %v1663
        %v1665 = vpop.f32.mrb[0].mxu0
        %v1666 = vadd.f32 0.0, %v1665
        %v1667 = vpop.f32.mrb[0].mxu0
        %v1668 = vadd.f32 0.0, %v1667
        %1669 = vmatprep.mubr.bf16.mxu0 %v764
        %1670 = vmatmul.mubr.bf16.gmra.mrb[0].mxu0 %v763
        %v1671 = vpop.f32.mrb[0].mxu0
        %v1672 = vadd.f32 0.0, %v1671
        %v1673 = vpop.f32.mrb[0].mxu0
        %v1674 = vadd.f32 0.0, %v1673
        %v1675 = vpop.f32.mrb[0].mxu0
        %v1676 = vadd.f32 0.0, %v1675
        %v1677 = vpop.f32.mrb[0].mxu0
        %v1678 = vadd.f32 0.0, %v1677
        %1679 = vdwg.mxu0
        %s1680 = scalar_lea.vmem [#allocation11], 2
        %v1681 = vld [vmem:[%s1680] ss:$8 sm:$0x3]
        %v1683 = vlaneseq
        %v1684 = vshrl.u32 %v1683, 7
        %v1685 = vsub.s32 0, %v1684
        %v1686 = vrot.slane %v1681, %v1685
        %v1687 = vlaneseq
        %v1688 = vshrl.u32 %v1687, 7
        %v1689 = vsub.s32 1, %v1688
        %v1690 = vrot.slane %v1681, %v1689
        %v1693 = vadd.f32 %v1376, %v1686
        %v1694 = vadd.f32 %v1378, %v1690
        %v1695 = vadd.f32 %v1380, %v1686
        %v1696 = vadd.f32 %v1382, %v1690
        %v1697 = vadd.f32 %v1386, %v1686
        %v1698 = vadd.f32 %v1388, %v1690
        %v1699 = vadd.f32 %v1390, %v1686
        %v1700 = vadd.f32 %v1392, %v1690
        %v1701 = vadd.f32 %v1396, %v1686
        %v1702 = vadd.f32 %v1398, %v1690
        %v1703 = vadd.f32 %v1400, %v1686
        %v1704 = vadd.f32 %v1402, %v1690
        %v1705 = vadd.f32 %v1406, %v1686
        %v1706 = vadd.f32 %v1408, %v1690
        %v1707 = vadd.f32 %v1410, %v1686
        %v1708 = vadd.f32 %v1412, %v1690
        %v1709 = vadd.f32 %v1416, %v1686
        %v1710 = vadd.f32 %v1418, %v1690
        %v1711 = vadd.f32 %v1420, %v1686
        %v1712 = vadd.f32 %v1422, %v1690
        %v1713 = vadd.f32 %v1426, %v1686
        %v1714 = vadd.f32 %v1428, %v1690
        %v1715 = vadd.f32 %v1430, %v1686
        %v1716 = vadd.f32 %v1432, %v1690
        %v1717 = vadd.f32 %v1436, %v1686
        %v1718 = vadd.f32 %v1438, %v1690
        %v1719 = vadd.f32 %v1440, %v1686
        %v1720 = vadd.f32 %v1442, %v1690
        %v1721 = vadd.f32 %v1446, %v1686
        %v1722 = vadd.f32 %v1448, %v1690
        %v1723 = vadd.f32 %v1450, %v1686
        %v1724 = vadd.f32 %v1452, %v1690
        %v1725 = vpack.c.bf16 %v1695, %v1693
        %v1726 = vpack.c.bf16 %v1696, %v1694
        %v1727 = vpack.c.bf16 %v1699, %v1697
        %v1728 = vpack.c.bf16 %v1700, %v1698
        %v1729 = vpack.c.bf16 %v1703, %v1701
        %v1730 = vpack.c.bf16 %v1704, %v1702
        %v1731 = vpack.c.bf16 %v1707, %v1705
        %v1732 = vpack.c.bf16 %v1708, %v1706
        %v1733 = vpack.c.bf16 %v1711, %v1709
        %v1734 = vpack.c.bf16 %v1712, %v1710
        %v1735 = vpack.c.bf16 %v1715, %v1713
        %v1736 = vpack.c.bf16 %v1716, %v1714
        %v1737 = vpack.c.bf16 %v1719, %v1717
        %v1738 = vpack.c.bf16 %v1720, %v1718
        %v1739 = vpack.c.bf16 %v1723, %v1721
        %v1740 = vpack.c.bf16 %v1724, %v1722
        %s1741 = scalar_lea.vmem [#allocation11], 3
        %v1742 = vld [vmem:[%s1741] ss:$8 sm:$0x3]
        %v1744 = vlaneseq
        %v1745 = vshrl.u32 %v1744, 7
        %v1746 = vsub.s32 0, %v1745
        %v1747 = vrot.slane %v1742, %v1746
        %v1748 = vlaneseq
        %v1749 = vshrl.u32 %v1748, 7
        %v1750 = vsub.s32 1, %v1749
        %v1751 = vrot.slane %v1742, %v1750
        %v1754 = vadd.f32 %v1489, %v1747
        %v1755 = vadd.f32 %v1491, %v1751
        %v1756 = vadd.f32 %v1493, %v1747
        %v1757 = vadd.f32 %v1495, %v1751
        %v1758 = vadd.f32 %v1499, %v1747
        %v1759 = vadd.f32 %v1501, %v1751
        %v1760 = vadd.f32 %v1503, %v1747
        %v1761 = vadd.f32 %v1505, %v1751
        %v1762 = vadd.f32 %v1509, %v1747
        %v1763 = vadd.f32 %v1511, %v1751
        %v1764 = vadd.f32 %v1513, %v1747
        %v1765 = vadd.f32 %v1515, %v1751
        %v1766 = vadd.f32 %v1519, %v1747
        %v1767 = vadd.f32 %v1521, %v1751
        %v1768 = vadd.f32 %v1523, %v1747
        %v1769 = vadd.f32 %v1525, %v1751
        %v1770 = vadd.f32 %v1529, %v1747
        %v1771 = vadd.f32 %v1531, %v1751
        %v1772 = vadd.f32 %v1533, %v1747
        %v1773 = vadd.f32 %v1535, %v1751
        %v1774 = vadd.f32 %v1539, %v1747
        %v1775 = vadd.f32 %v1541, %v1751
        %v1776 = vadd.f32 %v1543, %v1747
        %v1777 = vadd.f32 %v1545, %v1751
        %v1778 = vadd.f32 %v1549, %v1747
        %v1779 = vadd.f32 %v1551, %v1751
        %v1780 = vadd.f32 %v1553, %v1747
        %v1781 = vadd.f32 %v1555, %v1751
        %v1782 = vadd.f32 %v1559, %v1747
        %v1783 = vadd.f32 %v1561, %v1751
        %v1784 = vadd.f32 %v1563, %v1747
        %v1785 = vadd.f32 %v1565, %v1751
        %v1786 = vpack.c.bf16 %v1756, %v1754
        %v1787 = vpack.c.bf16 %v1757, %v1755
        %v1788 = vpack.c.bf16 %v1760, %v1758
        %v1789 = vpack.c.bf16 %v1761, %v1759
        %v1790 = vpack.c.bf16 %v1764, %v1762
        %v1791 = vpack.c.bf16 %v1765, %v1763
        %v1792 = vpack.c.bf16 %v1768, %v1766
        %v1793 = vpack.c.bf16 %v1769, %v1767
        %v1794 = vpack.c.bf16 %v1772, %v1770
        %v1795 = vpack.c.bf16 %v1773, %v1771
        %v1796 = vpack.c.bf16 %v1776, %v1774
        %v1797 = vpack.c.bf16 %v1777, %v1775
        %v1798 = vpack.c.bf16 %v1780, %v1778
        %v1799 = vpack.c.bf16 %v1781, %v1779
        %v1800 = vpack.c.bf16 %v1784, %v1782
        %v1801 = vpack.c.bf16 %v1785, %v1783
        %s1802 = scalar_lea.vmem [#allocation11], 4
        %v1803 = vld [vmem:[%s1802] ss:$8 sm:$0x3]
        %v1805 = vlaneseq
        %v1806 = vshrl.u32 %v1805, 7
        %v1807 = vsub.s32 0, %v1806
        %v1808 = vrot.slane %v1803, %v1807
        %v1809 = vlaneseq
        %v1810 = vshrl.u32 %v1809, 7
        %v1811 = vsub.s32 1, %v1810
        %v1812 = vrot.slane %v1803, %v1811
        %v1815 = vadd.f32 %v1602, %v1808
        %v1816 = vadd.f32 %v1604, %v1812
        %v1817 = vadd.f32 %v1606, %v1808
        %v1818 = vadd.f32 %v1608, %v1812
        %v1819 = vadd.f32 %v1612, %v1808
        %v1820 = vadd.f32 %v1614, %v1812
        %v1821 = vadd.f32 %v1616, %v1808
        %v1822 = vadd.f32 %v1618, %v1812
        %v1823 = vadd.f32 %v1622, %v1808
        %v1824 = vadd.f32 %v1624, %v1812
        %v1825 = vadd.f32 %v1626, %v1808
        %v1826 = vadd.f32 %v1628, %v1812
        %v1827 = vadd.f32 %v1632, %v1808
        %v1828 = vadd.f32 %v1634, %v1812
        %v1829 = vadd.f32 %v1636, %v1808
        %v1830 = vadd.f32 %v1638, %v1812
        %v1831 = vadd.f32 %v1642, %v1808
        %v1832 = vadd.f32 %v1644, %v1812
        %v1833 = vadd.f32 %v1646, %v1808
        %v1834 = vadd.f32 %v1648, %v1812
        %v1835 = vadd.f32 %v1652, %v1808
        %v1836 = vadd.f32 %v1654, %v1812
        %v1837 = vadd.f32 %v1656, %v1808
        %v1838 = vadd.f32 %v1658, %v1812
        %v1839 = vadd.f32 %v1662, %v1808
        %v1840 = vadd.f32 %v1664, %v1812
        %v1841 = vadd.f32 %v1666, %v1808
        %v1842 = vadd.f32 %v1668, %v1812
        %v1843 = vadd.f32 %v1672, %v1808
        %v1844 = vadd.f32 %v1674, %v1812
        %v1845 = vadd.f32 %v1676, %v1808
        %v1846 = vadd.f32 %v1678, %v1812
        %v1847 = vpack.c.bf16 %v1817, %v1815
        %v1848 = vpack.c.bf16 %v1818, %v1816
        %v1849 = vpack.c.bf16 %v1821, %v1819
        %v1850 = vpack.c.bf16 %v1822, %v1820
        %v1851 = vpack.c.bf16 %v1825, %v1823
        %v1852 = vpack.c.bf16 %v1826, %v1824
        %v1853 = vpack.c.bf16 %v1829, %v1827
        %v1854 = vpack.c.bf16 %v1830, %v1828
        %v1855 = vpack.c.bf16 %v1833, %v1831
        %v1856 = vpack.c.bf16 %v1834, %v1832
        %v1857 = vpack.c.bf16 %v1837, %v1835
        %v1858 = vpack.c.bf16 %v1838, %v1836
        %v1859 = vpack.c.bf16 %v1841, %v1839
        %v1860 = vpack.c.bf16 %v1842, %v1840
        %v1861 = vpack.c.bf16 %v1845, %v1843
        %v1862 = vpack.c.bf16 %v1846, %v1844
        %1863 = vmatprep.subr.bf16.mxu0 0
        %1864 = vmatpush1.bf16.xpose.msra.mxu0 %v1786
        %1865 = vmatprep.subr.bf16.mxu0 0
        %1866 = vmatpush1.bf16.xpose.msra.mxu0 %v1788
        %1867 = vmatprep.subr.bf16.mxu0 0
        %1868 = vmatpush1.bf16.xpose.msra.mxu0 %v1790
        %1869 = vmatprep.subr.bf16.mxu0 0
        %1870 = vmatpush1.bf16.xpose.msra.mxu0 %v1792
        %1871 = vmatprep.subr.bf16.mxu0 0
        %1872 = vmatpush1.bf16.xpose.msra.mxu0 %v1794
        %1873 = vmatprep.subr.bf16.mxu0 0
        %1874 = vmatpush1.bf16.xpose.msra.mxu0 %v1796
        %1875 = vmatprep.subr.bf16.mxu0 0
        %1876 = vmatpush1.bf16.xpose.msra.mxu0 %v1798
        %1877 = vmatprep.subr.bf16.mxu0 0
        %1878 = vmatpush1.bf16.xpose.msra.mxu0 %v1800
        %1879 = vmatprep.subr.bf16.mxu0 0
        %1880 = vmatpush1.bf16.xpose.msra.mxu0 0
        %1881 = vmatprep.subr.bf16.mxu0 0
        %1882 = vmatpush1.bf16.xpose.msra.mxu0 0
        %1883 = vmatprep.subr.bf16.mxu0 0
        %1884 = vmatpush1.bf16.xpose.msra.mxu0 0
        %1885 = vmatprep.subr.bf16.mxu0 0
        %1886 = vmatpush1.bf16.xpose.msra.mxu0 0
        %1887 = vmatprep.subr.bf16.mxu0 0
        %1888 = vmatpush1.bf16.xpose.msra.mxu0 0
        %1889 = vmatprep.subr.bf16.mxu0 0
        %1890 = vmatpush1.bf16.xpose.msra.mxu0 0
        %1891 = vmatprep.subr.bf16.mxu0 0
        %1892 = vmatpush1.bf16.xpose.msra.mxu0 0
        %1893 = vmatprep.subr.bf16.mxu0 0
        %1894 = vmatpush1.bf16.xpose.msra.mxu0 0
        %1895 = vmatprep.mubr.bf16.mxu0 0
        %1896 = vmatmul.mubr.bf16.gmra.mrb[0].mxu0 %v1725
        %v1897 = vpop.f32.mrb[0].mxu0
        %v1898 = vadd.f32 0.0, %v1897
        %v1899 = vpop.f32.mrb[0].mxu0
        %v1900 = vpop.f32.mrb[0].mxu0
        %v1901 = vadd.f32 0.0, %v1900
        %v1902 = vpop.f32.mrb[0].mxu0
        %1903 = vmatprep.mubr.bf16.mxu0 0
        %1904 = vmatmul.mubr.bf16.gmra.mrb[0].mxu0 %v1727
        %v1905 = vpop.f32.mrb[0].mxu0
        %v1906 = vadd.f32 0.0, %v1905
        %v1907 = vpop.f32.mrb[0].mxu0
        %v1908 = vpop.f32.mrb[0].mxu0
        %v1909 = vadd.f32 0.0, %v1908
        %v1910 = vpop.f32.mrb[0].mxu0
        %1911 = vmatprep.mubr.bf16.mxu0 0
        %1912 = vmatmul.mubr.bf16.gmra.mrb[0].mxu0 %v1729
        %v1913 = vpop.f32.mrb[0].mxu0
        %v1914 = vadd.f32 0.0, %v1913
        %v1915 = vpop.f32.mrb[0].mxu0
        %v1916 = vpop.f32.mrb[0].mxu0
        %v1917 = vadd.f32 0.0, %v1916
        %v1918 = vpop.f32.mrb[0].mxu0
        %1919 = vmatprep.mubr.bf16.mxu0 0
        %1920 = vmatmul.mubr.bf16.gmra.mrb[0].mxu0 %v1731
        %v1921 = vpop.f32.mrb[0].mxu0
        %v1922 = vadd.f32 0.0, %v1921
        %v1923 = vpop.f32.mrb[0].mxu0
        %v1924 = vpop.f32.mrb[0].mxu0
        %v1925 = vadd.f32 0.0, %v1924
        %v1926 = vpop.f32.mrb[0].mxu0
        %1927 = vmatprep.mubr.bf16.mxu0 0
        %1928 = vmatmul.mubr.bf16.gmra.mrb[0].mxu0 %v1733
        %v1929 = vpop.f32.mrb[0].mxu0
        %v1930 = vadd.f32 0.0, %v1929
        %v1931 = vpop.f32.mrb[0].mxu0
        %v1932 = vpop.f32.mrb[0].mxu0
        %v1933 = vadd.f32 0.0, %v1932
        %v1934 = vpop.f32.mrb[0].mxu0
        %1935 = vmatprep.mubr.bf16.mxu0 0
        %1936 = vmatmul.mubr.bf16.gmra.mrb[0].mxu0 %v1735
        %v1937 = vpop.f32.mrb[0].mxu0
        %v1938 = vadd.f32 0.0, %v1937
        %v1939 = vpop.f32.mrb[0].mxu0
        %v1940 = vpop.f32.mrb[0].mxu0
        %v1941 = vadd.f32 0.0, %v1940
        %v1942 = vpop.f32.mrb[0].mxu0
        %1943 = vmatprep.mubr.bf16.mxu0 0
        %1944 = vmatmul.mubr.bf16.gmra.mrb[0].mxu0 %v1737
        %v1945 = vpop.f32.mrb[0].mxu0
        %v1946 = vadd.f32 0.0, %v1945
        %v1947 = vpop.f32.mrb[0].mxu0
        %v1948 = vpop.f32.mrb[0].mxu0
        %v1949 = vadd.f32 0.0, %v1948
        %v1950 = vpop.f32.mrb[0].mxu0
        %1951 = vmatprep.mubr.bf16.mxu0 0
        %1952 = vmatmul.mubr.bf16.gmra.mrb[0].mxu0 %v1739
        %v1953 = vpop.f32.mrb[0].mxu0
        %v1954 = vadd.f32 0.0, %v1953
        %v1955 = vpop.f32.mrb[0].mxu0
        %v1956 = vpop.f32.mrb[0].mxu0
        %v1957 = vadd.f32 0.0, %v1956
        %v1958 = vpop.f32.mrb[0].mxu0
        %1959 = vdwg.mxu0
        %1960 = vmax.xlane.f32.xlu0 %v1898
        %v1961 = vpop.xlane.xlu0 %1960
        %1962 = vmax.xlane.f32.xlu0 %v1901
        %v1963 = vpop.xlane.xlu0 %1962
        %1964 = vmax.xlane.f32.xlu0 %v1906
        %v1965 = vpop.xlane.xlu0 %1964
        %1966 = vmax.xlane.f32.xlu0 %v1909
        %v1967 = vpop.xlane.xlu0 %1966
        %1968 = vmax.xlane.f32.xlu0 %v1914
        %v1969 = vpop.xlane.xlu0 %1968
        %1970 = vmax.xlane.f32.xlu0 %v1917
        %v1971 = vpop.xlane.xlu0 %1970
        %1972 = vmax.xlane.f32.xlu0 %v1922
        %v1973 = vpop.xlane.xlu0 %1972
        %1974 = vmax.xlane.f32.xlu0 %v1925
        %v1975 = vpop.xlane.xlu0 %1974
        %1976 = vmax.xlane.f32.xlu0 %v1930
        %v1977 = vpop.xlane.xlu0 %1976
        %1978 = vmax.xlane.f32.xlu0 %v1933
        %v1979 = vpop.xlane.xlu0 %1978
        %1980 = vmax.xlane.f32.xlu0 %v1938
        %v1981 = vpop.xlane.xlu0 %1980
        %1982 = vmax.xlane.f32.xlu0 %v1941
        %v1983 = vpop.xlane.xlu0 %1982
        %1984 = vmax.xlane.f32.xlu0 %v1946
        %v1985 = vpop.xlane.xlu0 %1984
        %1986 = vmax.xlane.f32.xlu0 %v1949
        %v1987 = vpop.xlane.xlu0 %1986
        %1988 = vmax.xlane.f32.xlu0 %v1954
        %v1989 = vpop.xlane.xlu0 %1988
        %1990 = vmax.xlane.f32.xlu0 %v1957
        %v1991 = vpop.xlane.xlu0 %1990
        %v1992 = vsub.f32 %v1898, %v1961
        %v1993 = vsub.f32 %v1901, %v1963
        %v1994 = vsub.f32 %v1906, %v1965
        %v1995 = vsub.f32 %v1909, %v1967
        %v1996 = vsub.f32 %v1914, %v1969
        %v1997 = vsub.f32 %v1917, %v1971
        %v1998 = vsub.f32 %v1922, %v1973
        %v1999 = vsub.f32 %v1925, %v1975
        %v2000 = vsub.f32 %v1930, %v1977
        %v2001 = vsub.f32 %v1933, %v1979
        %v2002 = vsub.f32 %v1938, %v1981
        %v2003 = vsub.f32 %v1941, %v1983
        %v2004 = vsub.f32 %v1946, %v1985
        %v2005 = vsub.f32 %v1949, %v1987
        %v2006 = vsub.f32 %v1954, %v1989
        %v2007 = vsub.f32 %v1957, %v1991
        %v2008 = vmul.f32 %v1992, 1.442695
        %v2009 = vpow.pop %v2008
        %v2010 = vmul.f32 %v1993, 1.442695
        %v2011 = vpow.pop %v2010
        %v2012 = vmul.f32 %v1994, 1.442695
        %v2013 = vpow.pop %v2012
        %v2014 = vmul.f32 %v1995, 1.442695
        %v2015 = vpow.pop %v2014
        %v2016 = vmul.f32 %v1996, 1.442695
        %v2017 = vpow.pop %v2016
        %v2018 = vmul.f32 %v1997, 1.442695
        %v2019 = vpow.pop %v2018
        %v2020 = vmul.f32 %v1998, 1.442695
        %v2021 = vpow.pop %v2020
        %v2022 = vmul.f32 %v1999, 1.442695
        %v2023 = vpow.pop %v2022
        %v2024 = vmul.f32 %v2000, 1.442695
        %v2025 = vpow.pop %v2024
        %v2026 = vmul.f32 %v2001, 1.442695
        %v2027 = vpow.pop %v2026
        %v2028 = vmul.f32 %v2002, 1.442695
        %v2029 = vpow.pop %v2028
        %v2030 = vmul.f32 %v2003, 1.442695
        %v2031 = vpow.pop %v2030
        %v2032 = vmul.f32 %v2004, 1.442695
        %v2033 = vpow.pop %v2032
        %v2034 = vmul.f32 %v2005, 1.442695
        %v2035 = vpow.pop %v2034
        %v2036 = vmul.f32 %v2006, 1.442695
        %v2037 = vpow.pop %v2036
        %v2038 = vmul.f32 %v2007, 1.442695
        %v2039 = vpow.pop %v2038
        %2040 = vadd.xlane.f32.xlu0 %v2009
        %v2041 = vpop.xlane.xlu0 %2040
        %2042 = vadd.xlane.f32.xlu0 %v2011
        %v2043 = vpop.xlane.xlu0 %2042
        %2044 = vadd.xlane.f32.xlu0 %v2013
        %v2045 = vpop.xlane.xlu0 %2044
        %2046 = vadd.xlane.f32.xlu0 %v2015
        %v2047 = vpop.xlane.xlu0 %2046
        %2048 = vadd.xlane.f32.xlu0 %v2017
        %v2049 = vpop.xlane.xlu0 %2048
        %2050 = vadd.xlane.f32.xlu0 %v2019
        %v2051 = vpop.xlane.xlu0 %2050
        %2052 = vadd.xlane.f32.xlu0 %v2021
        %v2053 = vpop.xlane.xlu0 %2052
        %2054 = vadd.xlane.f32.xlu0 %v2023
        %v2055 = vpop.xlane.xlu0 %2054
        %2056 = vadd.xlane.f32.xlu0 %v2025
        %v2057 = vpop.xlane.xlu0 %2056
        %2058 = vadd.xlane.f32.xlu0 %v2027
        %v2059 = vpop.xlane.xlu0 %2058
        %2060 = vadd.xlane.f32.xlu0 %v2029
        %v2061 = vpop.xlane.xlu0 %2060
        %2062 = vadd.xlane.f32.xlu0 %v2031
        %v2063 = vpop.xlane.xlu0 %2062
        %2064 = vadd.xlane.f32.xlu0 %v2033
        %v2065 = vpop.xlane.xlu0 %2064
        %2066 = vadd.xlane.f32.xlu0 %v2035
        %v2067 = vpop.xlane.xlu0 %2066
        %2068 = vadd.xlane.f32.xlu0 %v2037
        %v2069 = vpop.xlane.xlu0 %2068
        %2070 = vadd.xlane.f32.xlu0 %v2039
        %v2071 = vpop.xlane.xlu0 %2070
        %v2072 = vrcp.pop %v2041
        %v2073 = vrcp.pop %v2043
        %v2074 = vrcp.pop %v2045
        %v2075 = vrcp.pop %v2047
        %v2076 = vrcp.pop %v2049
        %v2077 = vrcp.pop %v2051
        %v2078 = vrcp.pop %v2053
        %v2079 = vrcp.pop %v2055
        %v2080 = vrcp.pop %v2057
        %v2081 = vrcp.pop %v2059
        %v2082 = vrcp.pop %v2061
        %v2083 = vrcp.pop %v2063
        %v2084 = vrcp.pop %v2065
        %v2085 = vrcp.pop %v2067
        %v2086 = vrcp.pop %v2069
        %v2087 = vrcp.pop %v2071
        %v2088 = vmul.f32 %v2009, %v2072
        %v2089 = vmul.f32 %v2011, %v2073
        %v2090 = vmul.f32 %v2013, %v2074
        %v2091 = vmul.f32 %v2015, %v2075
        %v2092 = vmul.f32 %v2017, %v2076
        %v2093 = vmul.f32 %v2019, %v2077
        %v2094 = vmul.f32 %v2021, %v2078
        %v2095 = vmul.f32 %v2023, %v2079
        %v2096 = vmul.f32 %v2025, %v2080
        %v2097 = vmul.f32 %v2027, %v2081
        %v2098 = vmul.f32 %v2029, %v2082
        %v2099 = vmul.f32 %v2031, %v2083
        %v2100 = vmul.f32 %v2033, %v2084
        %v2101 = vmul.f32 %v2035, %v2085
        %v2102 = vmul.f32 %v2037, %v2086
        %v2103 = vmul.f32 %v2039, %v2087
        %v2104 = vpack.c.bf16 %v2089, %v2088
        %v2105 = vpack.c.bf16 %v2091, %v2090
        %v2106 = vpack.c.bf16 %v2093, %v2092
        %v2107 = vpack.c.bf16 %v2095, %v2094
        %v2108 = vpack.c.bf16 %v2097, %v2096
        %v2109 = vpack.c.bf16 %v2099, %v2098
        %v2110 = vpack.c.bf16 %v2101, %v2100
        %v2111 = vpack.c.bf16 %v2103, %v2102
        %2112 = vmatprep.subr.bf16.mxu0 0
        %2113 = vmatpush1.bf16.msra.mxu0 %v1847
        %2114 = vmatprep.subr.bf16.mxu0 0
        %2115 = vmatpush1.bf16.msra.mxu0 %v1849
        %2116 = vmatprep.subr.bf16.mxu0 0
        %2117 = vmatpush1.bf16.msra.mxu0 %v1851
        %2118 = vmatprep.subr.bf16.mxu0 0
        %2119 = vmatpush1.bf16.msra.mxu0 %v1853
        %2120 = vmatprep.subr.bf16.mxu0 0
        %2121 = vmatpush1.bf16.msra.mxu0 %v1855
        %2122 = vmatprep.subr.bf16.mxu0 0
        %2123 = vmatpush1.bf16.msra.mxu0 %v1857
        %2124 = vmatprep.subr.bf16.mxu0 0
        %2125 = vmatpush1.bf16.msra.mxu0 %v1859
        %2126 = vmatprep.subr.bf16.mxu0 0
        %2127 = vmatpush1.bf16.msra.mxu0 %v1861
        %2128 = vmatprep.subr.bf16.mxu0 0
        %2129 = vmatpush1.bf16.msra.mxu0 0
        %2130 = vmatprep.subr.bf16.mxu0 0
        %2131 = vmatpush1.bf16.msra.mxu0 0
        %2132 = vmatprep.subr.bf16.mxu0 0
        %2133 = vmatpush1.bf16.msra.mxu0 0
        %2134 = vmatprep.subr.bf16.mxu0 0
        %2135 = vmatpush1.bf16.msra.mxu0 0
        %2136 = vmatprep.subr.bf16.mxu0 0
        %2137 = vmatpush1.bf16.msra.mxu0 0
        %2138 = vmatprep.subr.bf16.mxu0 0
        %2139 = vmatpush1.bf16.msra.mxu0 0
        %2140 = vmatprep.subr.bf16.mxu0 0
        %2141 = vmatpush1.bf16.msra.mxu0 0
        %2142 = vmatprep.subr.bf16.mxu0 0
        %2143 = vmatpush1.bf16.msra.mxu0 0
        %2144 = vmatprep.mubr.bf16.mxu0 0
        %2145 = vmatmul.mubr.bf16.gmra.mrb[0].mxu0 %v2104
        %v2146 = vpop.f32.mrb[0].mxu0
        %v2147 = vadd.f32 0.0, %v2146
        %v2148 = vpop.f32.mrb[0].mxu0
        %v2149 = vpop.f32.mrb[0].mxu0
        %v2150 = vadd.f32 0.0, %v2149
        %v2151 = vpop.f32.mrb[0].mxu0
        %2152 = vmatprep.mubr.bf16.mxu0 0
        %2153 = vmatmul.mubr.bf16.gmra.mrb[0].mxu0 %v2105
        %v2154 = vpop.f32.mrb[0].mxu0
        %v2155 = vadd.f32 0.0, %v2154
        %v2156 = vpop.f32.mrb[0].mxu0
        %v2157 = vpop.f32.mrb[0].mxu0
        %v2158 = vadd.f32 0.0, %v2157
        %v2159 = vpop.f32.mrb[0].mxu0
        %2160 = vmatprep.mubr.bf16.mxu0 0
        %2161 = vmatmul.mubr.bf16.gmra.mrb[0].mxu0 %v2106
        %v2162 = vpop.f32.mrb[0].mxu0
        %v2163 = vadd.f32 0.0, %v2162
        %v2164 = vpop.f32.mrb[0].mxu0
        %v2165 = vpop.f32.mrb[0].mxu0
        %v2166 = vadd.f32 0.0, %v2165
        %v2167 = vpop.f32.mrb[0].mxu0
        %2168 = vmatprep.mubr.bf16.mxu0 0
        %2169 = vmatmul.mubr.bf16.gmra.mrb[0].mxu0 %v2107
        %v2170 = vpop.f32.mrb[0].mxu0
        %v2171 = vadd.f32 0.0, %v2170
        %v2172 = vpop.f32.mrb[0].mxu0
        %v2173 = vpop.f32.mrb[0].mxu0
        %v2174 = vadd.f32 0.0, %v2173
        %v2175 = vpop.f32.mrb[0].mxu0
        %2176 = vmatprep.mubr.bf16.mxu0 0
        %2177 = vmatmul.mubr.bf16.gmra.mrb[0].mxu0 %v2108
        %v2178 = vpop.f32.mrb[0].mxu0
        %v2179 = vadd.f32 0.0, %v2178
        %v2180 = vpop.f32.mrb[0].mxu0
        %v2181 = vpop.f32.mrb[0].mxu0
        %v2182 = vadd.f32 0.0, %v2181
        %v2183 = vpop.f32.mrb[0].mxu0
        %2184 = vmatprep.mubr.bf16.mxu0 0
        %2185 = vmatmul.mubr.bf16.gmra.mrb[0].mxu0 %v2109
        %v2186 = vpop.f32.mrb[0].mxu0
        %v2187 = vadd.f32 0.0, %v2186
        %v2188 = vpop.f32.mrb[0].mxu0
        %v2189 = vpop.f32.mrb[0].mxu0
        %v2190 = vadd.f32 0.0, %v2189
        %v2191 = vpop.f32.mrb[0].mxu0
        %2192 = vmatprep.mubr.bf16.mxu0 0
        %2193 = vmatmul.mubr.bf16.gmra.mrb[0].mxu0 %v2110
        %v2194 = vpop.f32.mrb[0].mxu0
        %v2195 = vadd.f32 0.0, %v2194
        %v2196 = vpop.f32.mrb[0].mxu0
        %v2197 = vpop.f32.mrb[0].mxu0
        %v2198 = vadd.f32 0.0, %v2197
        %v2199 = vpop.f32.mrb[0].mxu0
        %2200 = vmatprep.mubr.bf16.mxu0 0
        %2201 = vmatmul.mubr.bf16.gmra.mrb[0].mxu0 %v2111
        %v2202 = vpop.f32.mrb[0].mxu0
        %v2203 = vadd.f32 0.0, %v2202
        %v2204 = vpop.f32.mrb[0].mxu0
        %v2205 = vpop.f32.mrb[0].mxu0
        %v2206 = vadd.f32 0.0, %v2205
        %v2207 = vpop.f32.mrb[0].mxu0
        %2208 = vdwg.mxu0
        %2209 = vmatprep.subr.bf16.mxu0 0
        %2210 = vmatpush1.bf16.xpose.msra.mxu0 %v1787
        %2211 = vmatprep.subr.bf16.mxu0 0
        %2212 = vmatpush1.bf16.xpose.msra.mxu0 %v1789
        %2213 = vmatprep.subr.bf16.mxu0 0
        %2214 = vmatpush1.bf16.xpose.msra.mxu0 %v1791
        %2215 = vmatprep.subr.bf16.mxu0 0
        %2216 = vmatpush1.bf16.xpose.msra.mxu0 %v1793
        %2217 = vmatprep.subr.bf16.mxu0 0
        %2218 = vmatpush1.bf16.xpose.msra.mxu0 %v1795
        %2219 = vmatprep.subr.bf16.mxu0 0
        %2220 = vmatpush1.bf16.xpose.msra.mxu0 %v1797
        %2221 = vmatprep.subr.bf16.mxu0 0
        %2222 = vmatpush1.bf16.xpose.msra.mxu0 %v1799
        %2223 = vmatprep.subr.bf16.mxu0 0
        %2224 = vmatpush1.bf16.xpose.msra.mxu0 %v1801
        %2225 = vmatprep.subr.bf16.mxu0 0
        %2226 = vmatpush1.bf16.xpose.msra.mxu0 0
        %2227 = vmatprep.subr.bf16.mxu0 0
        %2228 = vmatpush1.bf16.xpose.msra.mxu0 0
        %2229 = vmatprep.subr.bf16.mxu0 0
        %2230 = vmatpush1.bf16.xpose.msra.mxu0 0
        %2231 = vmatprep.subr.bf16.mxu0 0
        %2232 = vmatpush1.bf16.xpose.msra.mxu0 0
        %2233 = vmatprep.subr.bf16.mxu0 0
        %2234 = vmatpush1.bf16.xpose.msra.mxu0 0
        %2235 = vmatprep.subr.bf16.mxu0 0
        %2236 = vmatpush1.bf16.xpose.msra.mxu0 0
        %2237 = vmatprep.subr.bf16.mxu0 0
        %2238 = vmatpush1.bf16.xpose.msra.mxu0 0
        %2239 = vmatprep.subr.bf16.mxu0 0
        %2240 = vmatpush1.bf16.xpose.msra.mxu0 0
        %2241 = vmatprep.mubr.bf16.mxu0 0
        %2242 = vmatmul.mubr.bf16.gmra.mrb[0].mxu0 %v1726
        %v2243 = vpop.f32.mrb[0].mxu0
        %v2244 = vadd.f32 0.0, %v2243
        %v2245 = vpop.f32.mrb[0].mxu0
        %v2246 = vpop.f32.mrb[0].mxu0
        %v2247 = vadd.f32 0.0, %v2246
        %v2248 = vpop.f32.mrb[0].mxu0
        %2249 = vmatprep.mubr.bf16.mxu0 0
        %2250 = vmatmul.mubr.bf16.gmra.mrb[0].mxu0 %v1728
        %v2251 = vpop.f32.mrb[0].mxu0
        %v2252 = vadd.f32 0.0, %v2251
        %v2253 = vpop.f32.mrb[0].mxu0
        %v2254 = vpop.f32.mrb[0].mxu0
        %v2255 = vadd.f32 0.0, %v2254
        %v2256 = vpop.f32.mrb[0].mxu0
        %2257 = vmatprep.mubr.bf16.mxu0 0
        %2258 = vmatmul.mubr.bf16.gmra.mrb[0].mxu0 %v1730
        %v2259 = vpop.f32.mrb[0].mxu0
        %v2260 = vadd.f32 0.0, %v2259
        %v2261 = vpop.f32.mrb[0].mxu0
        %v2262 = vpop.f32.mrb[0].mxu0
        %v2263 = vadd.f32 0.0, %v2262
        %v2264 = vpop.f32.mrb[0].mxu0
        %2265 = vmatprep.mubr.bf16.mxu0 0
        %2266 = vmatmul.mubr.bf16.gmra.mrb[0].mxu0 %v1732
        %v2267 = vpop.f32.mrb[0].mxu0
        %v2268 = vadd.f32 0.0, %v2267
        %v2269 = vpop.f32.mrb[0].mxu0
        %v2270 = vpop.f32.mrb[0].mxu0
        %v2271 = vadd.f32 0.0, %v2270
        %v2272 = vpop.f32.mrb[0].mxu0
        %2273 = vmatprep.mubr.bf16.mxu0 0
        %2274 = vmatmul.mubr.bf16.gmra.mrb[0].mxu0 %v1734
        %v2275 = vpop.f32.mrb[0].mxu0
        %v2276 = vadd.f32 0.0, %v2275
        %v2277 = vpop.f32.mrb[0].mxu0
        %v2278 = vpop.f32.mrb[0].mxu0
        %v2279 = vadd.f32 0.0, %v2278
        %v2280 = vpop.f32.mrb[0].mxu0
        %2281 = vmatprep.mubr.bf16.mxu0 0
        %2282 = vmatmul.mubr.bf16.gmra.mrb[0].mxu0 %v1736
        %v2283 = vpop.f32.mrb[0].mxu0
        %v2284 = vadd.f32 0.0, %v2283
        %v2285 = vpop.f32.mrb[0].mxu0
        %v2286 = vpop.f32.mrb[0].mxu0
        %v2287 = vadd.f32 0.0, %v2286
        %v2288 = vpop.f32.mrb[0].mxu0
        %2289 = vmatprep.mubr.bf16.mxu0 0
        %2290 = vmatmul.mubr.bf16.gmra.mrb[0].mxu0 %v1738
        %v2291 = vpop.f32.mrb[0].mxu0
        %v2292 = vadd.f32 0.0, %v2291
        %v2293 = vpop.f32.mrb[0].mxu0
        %v2294 = vpop.f32.mrb[0].mxu0
        %v2295 = vadd.f32 0.0, %v2294
        %v2296 = vpop.f32.mrb[0].mxu0
        %2297 = vmatprep.mubr.bf16.mxu0 0
        %2298 = vmatmul.mubr.bf16.gmra.mrb[0].mxu0 %v1740
        %v2299 = vpop.f32.mrb[0].mxu0
        %v2300 = vadd.f32 0.0, %v2299
        %v2301 = vpop.f32.mrb[0].mxu0
        %v2302 = vpop.f32.mrb[0].mxu0
        %v2303 = vadd.f32 0.0, %v2302
        %v2304 = vpop.f32.mrb[0].mxu0
        %2305 = vdwg.mxu0
        %2306 = vmax.xlane.f32.xlu0 %v2244
        %v2307 = vpop.xlane.xlu0 %2306
        %2308 = vmax.xlane.f32.xlu0 %v2247
        %v2309 = vpop.xlane.xlu0 %2308
        %2310 = vmax.xlane.f32.xlu0 %v2252
        %v2311 = vpop.xlane.xlu0 %2310
        %2312 = vmax.xlane.f32.xlu0 %v2255
        %v2313 = vpop.xlane.xlu0 %2312
        %2314 = vmax.xlane.f32.xlu0 %v2260
        %v2315 = vpop.xlane.xlu0 %2314
        %2316 = vmax.xlane.f32.xlu0 %v2263
        %v2317 = vpop.xlane.xlu0 %2316
        %2318 = vmax.xlane.f32.xlu0 %v2268
        %v2319 = vpop.xlane.xlu0 %2318
        %2320 = vmax.xlane.f32.xlu0 %v2271
        %v2321 = vpop.xlane.xlu0 %2320
        %2322 = vmax.xlane.f32.xlu0 %v2276
        %v2323 = vpop.xlane.xlu0 %2322
        %2324 = vmax.xlane.f32.xlu0 %v2279
        %v2325 = vpop.xlane.xlu0 %2324
        %2326 = vmax.xlane.f32.xlu0 %v2284
        %v2327 = vpop.xlane.xlu0 %2326
        %2328 = vmax.xlane.f32.xlu0 %v2287
        %v2329 = vpop.xlane.xlu0 %2328
        %2330 = vmax.xlane.f32.xlu0 %v2292
        %v2331 = vpop.xlane.xlu0 %2330
        %2332 = vmax.xlane.f32.xlu0 %v2295
        %v2333 = vpop.xlane.xlu0 %2332
        %2334 = vmax.xlane.f32.xlu0 %v2300
        %v2335 = vpop.xlane.xlu0 %2334
        %2336 = vmax.xlane.f32.xlu0 %v2303
        %v2337 = vpop.xlane.xlu0 %2336
        %v2338 = vsub.f32 %v2244, %v2307
        %v2339 = vsub.f32 %v2247, %v2309
        %v2340 = vsub.f32 %v2252, %v2311
        %v2341 = vsub.f32 %v2255, %v2313
        %v2342 = vsub.f32 %v2260, %v2315
        %v2343 = vsub.f32 %v2263, %v2317
        %v2344 = vsub.f32 %v2268, %v2319
        %v2345 = vsub.f32 %v2271, %v2321
        %v2346 = vsub.f32 %v2276, %v2323
        %v2347 = vsub.f32 %v2279, %v2325
        %v2348 = vsub.f32 %v2284, %v2327
        %v2349 = vsub.f32 %v2287, %v2329
        %v2350 = vsub.f32 %v2292, %v2331
        %v2351 = vsub.f32 %v2295, %v2333
        %v2352 = vsub.f32 %v2300, %v2335
        %v2353 = vsub.f32 %v2303, %v2337
        %v2354 = vmul.f32 %v2338, 1.442695
        %v2355 = vpow.pop %v2354
        %v2356 = vmul.f32 %v2339, 1.442695
        %v2357 = vpow.pop %v2356
        %v2358 = vmul.f32 %v2340, 1.442695
        %v2359 = vpow.pop %v2358
        %v2360 = vmul.f32 %v2341, 1.442695
        %v2361 = vpow.pop %v2360
        %v2362 = vmul.f32 %v2342, 1.442695
        %v2363 = vpow.pop %v2362
        %v2364 = vmul.f32 %v2343, 1.442695
        %v2365 = vpow.pop %v2364
        %v2366 = vmul.f32 %v2344, 1.442695
        %v2367 = vpow.pop %v2366
        %v2368 = vmul.f32 %v2345, 1.442695
        %v2369 = vpow.pop %v2368
        %v2370 = vmul.f32 %v2346, 1.442695
        %v2371 = vpow.pop %v2370
        %v2372 = vmul.f32 %v2347, 1.442695
        %v2373 = vpow.pop %v2372
        %v2374 = vmul.f32 %v2348, 1.442695
        %v2375 = vpow.pop %v2374
        %v2376 = vmul.f32 %v2349, 1.442695
        %v2377 = vpow.pop %v2376
        %v2378 = vmul.f32 %v2350, 1.442695
        %v2379 = vpow.pop %v2378
        %v2380 = vmul.f32 %v2351, 1.442695
        %v2381 = vpow.pop %v2380
        %v2382 = vmul.f32 %v2352, 1.442695
        %v2383 = vpow.pop %v2382
        %v2384 = vmul.f32 %v2353, 1.442695
        %v2385 = vpow.pop %v2384
        %2386 = vadd.xlane.f32.xlu0 %v2355
        %v2387 = vpop.xlane.xlu0 %2386
        %2388 = vadd.xlane.f32.xlu0 %v2357
        %v2389 = vpop.xlane.xlu0 %2388
        %2390 = vadd.xlane.f32.xlu0 %v2359
        %v2391 = vpop.xlane.xlu0 %2390
        %2392 = vadd.xlane.f32.xlu0 %v2361
        %v2393 = vpop.xlane.xlu0 %2392
        %2394 = vadd.xlane.f32.xlu0 %v2363
        %v2395 = vpop.xlane.xlu0 %2394
        %2396 = vadd.xlane.f32.xlu0 %v2365
        %v2397 = vpop.xlane.xlu0 %2396
        %2398 = vadd.xlane.f32.xlu0 %v2367
        %v2399 = vpop.xlane.xlu0 %2398
        %2400 = vadd.xlane.f32.xlu0 %v2369
        %v2401 = vpop.xlane.xlu0 %2400
        %2402 = vadd.xlane.f32.xlu0 %v2371
        %v2403 = vpop.xlane.xlu0 %2402
        %2404 = vadd.xlane.f32.xlu0 %v2373
        %v2405 = vpop.xlane.xlu0 %2404
        %2406 = vadd.xlane.f32.xlu0 %v2375
        %v2407 = vpop.xlane.xlu0 %2406
        %2408 = vadd.xlane.f32.xlu0 %v2377
        %v2409 = vpop.xlane.xlu0 %2408
        %2410 = vadd.xlane.f32.xlu0 %v2379
        %v2411 = vpop.xlane.xlu0 %2410
        %2412 = vadd.xlane.f32.xlu0 %v2381
        %v2413 = vpop.xlane.xlu0 %2412
        %2414 = vadd.xlane.f32.xlu0 %v2383
        %v2415 = vpop.xlane.xlu0 %2414
        %2416 = vadd.xlane.f32.xlu0 %v2385
        %v2417 = vpop.xlane.xlu0 %2416
        %v2418 = vrcp.pop %v2387
        %v2419 = vrcp.pop %v2389
        %v2420 = vrcp.pop %v2391
        %v2421 = vrcp.pop %v2393
        %v2422 = vrcp.pop %v2395
        %v2423 = vrcp.pop %v2397
        %v2424 = vrcp.pop %v2399
        %v2425 = vrcp.pop %v2401
        %v2426 = vrcp.pop %v2403
        %v2427 = vrcp.pop %v2405
        %v2428 = vrcp.pop %v2407
        %v2429 = vrcp.pop %v2409
        %v2430 = vrcp.pop %v2411
        %v2431 = vrcp.pop %v2413
        %v2432 = vrcp.pop %v2415
        %v2433 = vrcp.pop %v2417
        %v2434 = vmul.f32 %v2355, %v2418
        %v2435 = vmul.f32 %v2357, %v2419
        %v2436 = vmul.f32 %v2359, %v2420
        %v2437 = vmul.f32 %v2361, %v2421
        %v2438 = vmul.f32 %v2363, %v2422
        %v2439 = vmul.f32 %v2365, %v2423
        %v2440 = vmul.f32 %v2367, %v2424
        %v2441 = vmul.f32 %v2369, %v2425
        %v2442 = vmul.f32 %v2371, %v2426
        %v2443 = vmul.f32 %v2373, %v2427
        %v2444 = vmul.f32 %v2375, %v2428
        %v2445 = vmul.f32 %v2377, %v2429
        %v2446 = vmul.f32 %v2379, %v2430
        %v2447 = vmul.f32 %v2381, %v2431
        %v2448 = vmul.f32 %v2383, %v2432
        %v2449 = vmul.f32 %v2385, %v2433
        %v2450 = vpack.c.bf16 %v2435, %v2434
        %v2451 = vpack.c.bf16 %v2437, %v2436
        %v2452 = vpack.c.bf16 %v2439, %v2438
        %v2453 = vpack.c.bf16 %v2441, %v2440
        %v2454 = vpack.c.bf16 %v2443, %v2442
        %v2455 = vpack.c.bf16 %v2445, %v2444
        %v2456 = vpack.c.bf16 %v2447, %v2446
        %v2457 = vpack.c.bf16 %v2449, %v2448
        %2458 = vmatprep.subr.bf16.mxu0 0
        %2459 = vmatpush1.bf16.msra.mxu0 %v1848
        %2460 = vmatprep.subr.bf16.mxu0 0
        %2461 = vmatpush1.bf16.msra.mxu0 %v1850
        %2462 = vmatprep.subr.bf16.mxu0 0
        %2463 = vmatpush1.bf16.msra.mxu0 %v1852
        %2464 = vmatprep.subr.bf16.mxu0 0
        %2465 = vmatpush1.bf16.msra.mxu0 %v1854
        %2466 = vmatprep.subr.bf16.mxu0 0
        %2467 = vmatpush1.bf16.msra.mxu0 %v1856
        %2468 = vmatprep.subr.bf16.mxu0 0
        %2469 = vmatpush1.bf16.msra.mxu0 %v1858
        %2470 = vmatprep.subr.bf16.mxu0 0
        %2471 = vmatpush1.bf16.msra.mxu0 %v1860
        %2472 = vmatprep.subr.bf16.mxu0 0
        %2473 = vmatpush1.bf16.msra.mxu0 %v1862
        %2474 = vmatprep.subr.bf16.mxu0 0
        %2475 = vmatpush1.bf16.msra.mxu0 0
        %2476 = vmatprep.subr.bf16.mxu0 0
        %2477 = vmatpush1.bf16.msra.mxu0 0
        %2478 = vmatprep.subr.bf16.mxu0 0
        %2479 = vmatpush1.bf16.msra.mxu0 0
        %2480 = vmatprep.subr.bf16.mxu0 0
        %2481 = vmatpush1.bf16.msra.mxu0 0
        %2482 = vmatprep.subr.bf16.mxu0 0
        %2483 = vmatpush1.bf16.msra.mxu0 0
        %2484 = vmatprep.subr.bf16.mxu0 0
        %2485 = vmatpush1.bf16.msra.mxu0 0
        %2486 = vmatprep.subr.bf16.mxu0 0
        %2487 = vmatpush1.bf16.msra.mxu0 0
        %2488 = vmatprep.subr.bf16.mxu0 0
        %2489 = vmatpush1.bf16.msra.mxu0 0
        %2490 = vmatprep.mubr.bf16.mxu0 0
        %2491 = vmatmul.mubr.bf16.gmra.mrb[0].mxu0 %v2450
        %v2492 = vpop.f32.mrb[0].mxu0
        %v2493 = vadd.f32 0.0, %v2492
        %v2494 = vpop.f32.mrb[0].mxu0
        %v2495 = vpop.f32.mrb[0].mxu0
        %v2496 = vadd.f32 0.0, %v2495
        %v2497 = vpop.f32.mrb[0].mxu0
        %2498 = vmatprep.mubr.bf16.mxu0 0
        %2499 = vmatmul.mubr.bf16.gmra.mrb[0].mxu0 %v2451
        %v2500 = vpop.f32.mrb[0].mxu0
        %v2501 = vadd.f32 0.0, %v2500
        %v2502 = vpop.f32.mrb[0].mxu0
        %v2503 = vpop.f32.mrb[0].mxu0
        %v2504 = vadd.f32 0.0, %v2503
        %v2505 = vpop.f32.mrb[0].mxu0
        %2506 = vmatprep.mubr.bf16.mxu0 0
        %2507 = vmatmul.mubr.bf16.gmra.mrb[0].mxu0 %v2452
        %v2508 = vpop.f32.mrb[0].mxu0
        %v2509 = vadd.f32 0.0, %v2508
        %v2510 = vpop.f32.mrb[0].mxu0
        %v2511 = vpop.f32.mrb[0].mxu0
        %v2512 = vadd.f32 0.0, %v2511
        %v2513 = vpop.f32.mrb[0].mxu0
        %2514 = vmatprep.mubr.bf16.mxu0 0
        %2515 = vmatmul.mubr.bf16.gmra.mrb[0].mxu0 %v2453
        %v2516 = vpop.f32.mrb[0].mxu0
        %v2517 = vadd.f32 0.0, %v2516
        %v2518 = vpop.f32.mrb[0].mxu0
        %v2519 = vpop.f32.mrb[0].mxu0
        %v2520 = vadd.f32 0.0, %v2519
        %v2521 = vpop.f32.mrb[0].mxu0
        %2522 = vmatprep.mubr.bf16.mxu0 0
        %2523 = vmatmul.mubr.bf16.gmra.mrb[0].mxu0 %v2454
        %v2524 = vpop.f32.mrb[0].mxu0
        %v2525 = vadd.f32 0.0, %v2524
        %v2526 = vpop.f32.mrb[0].mxu0
        %v2527 = vpop.f32.mrb[0].mxu0
        %v2528 = vadd.f32 0.0, %v2527
        %v2529 = vpop.f32.mrb[0].mxu0
        %2530 = vmatprep.mubr.bf16.mxu0 0
        %2531 = vmatmul.mubr.bf16.gmra.mrb[0].mxu0 %v2455
        %v2532 = vpop.f32.mrb[0].mxu0
        %v2533 = vadd.f32 0.0, %v2532
        %v2534 = vpop.f32.mrb[0].mxu0
        %v2535 = vpop.f32.mrb[0].mxu0
        %v2536 = vadd.f32 0.0, %v2535
        %v2537 = vpop.f32.mrb[0].mxu0
        %2538 = vmatprep.mubr.bf16.mxu0 0
        %2539 = vmatmul.mubr.bf16.gmra.mrb[0].mxu0 %v2456
        %v2540 = vpop.f32.mrb[0].mxu0
        %v2541 = vadd.f32 0.0, %v2540
        %v2542 = vpop.f32.mrb[0].mxu0
        %v2543 = vpop.f32.mrb[0].mxu0
        %v2544 = vadd.f32 0.0, %v2543
        %v2545 = vpop.f32.mrb[0].mxu0
        %2546 = vmatprep.mubr.bf16.mxu0 0
        %2547 = vmatmul.mubr.bf16.gmra.mrb[0].mxu0 %v2457
        %v2548 = vpop.f32.mrb[0].mxu0
        %v2549 = vadd.f32 0.0, %v2548
        %v2550 = vpop.f32.mrb[0].mxu0
        %v2551 = vpop.f32.mrb[0].mxu0
        %v2552 = vadd.f32 0.0, %v2551
        %v2553 = vpop.f32.mrb[0].mxu0
        %2554 = vdwg.mxu0
        %v2555 = vpack.c.bf16 %v2150, %v2147
        %v2556 = vpack.c.bf16 %v2496, %v2493
        %v2557 = vpack.c.bf16 %v2158, %v2155
        %v2558 = vpack.c.bf16 %v2504, %v2501
        %v2559 = vpack.c.bf16 %v2166, %v2163
        %v2560 = vpack.c.bf16 %v2512, %v2509
        %v2561 = vpack.c.bf16 %v2174, %v2171
        %v2562 = vpack.c.bf16 %v2520, %v2517
        %v2563 = vpack.c.bf16 %v2182, %v2179
        %v2564 = vpack.c.bf16 %v2528, %v2525
        %v2565 = vpack.c.bf16 %v2190, %v2187
        %v2566 = vpack.c.bf16 %v2536, %v2533
        %v2567 = vpack.c.bf16 %v2198, %v2195
        %v2568 = vpack.c.bf16 %v2544, %v2541
        %v2569 = vpack.c.bf16 %v2206, %v2203
        %v2570 = vpack.c.bf16 %v2552, %v2549
        %v2571 = vld [vmem:[#allocation7] sm:$0xff]
        %v2572 = vld [vmem:[#allocation7 + $0x8] sm:$0xff]
        %v2573 = vld [vmem:[#allocation7 + $0x10] sm:$0xff]
        %v2574 = vld [vmem:[#allocation7 + $0x18] sm:$0xff]
        %v2575 = vld [vmem:[#allocation7 + $0x20] sm:$0xff]
        %v2576 = vld [vmem:[#allocation7 + $0x28] sm:$0xff]
        %v2577 = vld [vmem:[#allocation7 + $0x30] sm:$0xff]
        %v2578 = vld [vmem:[#allocation7 + $0x38] sm:$0xff]
        %v2579 = vld [vmem:[#allocation7 + $0x40] sm:$0xff]
        %v2580 = vld [vmem:[#allocation7 + $0x48] sm:$0xff]
        %v2581 = vld [vmem:[#allocation7 + $0x50] sm:$0xff]
        %v2582 = vld [vmem:[#allocation7 + $0x58] sm:$0xff]
        %v2583 = vld [vmem:[#allocation7 + $0x60] sm:$0xff]
        %v2584 = vld [vmem:[#allocation7 + $0x68] sm:$0xff]
        %v2585 = vld [vmem:[#allocation7 + $0x70] sm:$0xff]
        %v2586 = vld [vmem:[#allocation7 + $0x78] sm:$0xff]
        %v2587 = vld [vmem:[#allocation7 + $0x80] sm:$0xff]
        %v2588 = vld [vmem:[#allocation7 + $0x88] sm:$0xff]
        %v2589 = vld [vmem:[#allocation7 + $0x90] sm:$0xff]
        %v2590 = vld [vmem:[#allocation7 + $0x98] sm:$0xff]
        %v2591 = vld [vmem:[#allocation7 + $0xa0] sm:$0xff]
        %v2592 = vld [vmem:[#allocation7 + $0xa8] sm:$0xff]
        %v2593 = vld [vmem:[#allocation7 + $0xb0] sm:$0xff]
        %v2594 = vld [vmem:[#allocation7 + $0xb8] sm:$0xff]
        %v2595 = vld [vmem:[#allocation7 + $0xc0] sm:$0xff]
        %v2596 = vld [vmem:[#allocation7 + $0xc8] sm:$0xff]
        %v2597 = vld [vmem:[#allocation7 + $0xd0] sm:$0xff]
        %v2598 = vld [vmem:[#allocation7 + $0xd8] sm:$0xff]
        %v2599 = vld [vmem:[#allocation7 + $0xe0] sm:$0xff]
        %v2600 = vld [vmem:[#allocation7 + $0xe8] sm:$0xff]
        %v2601 = vld [vmem:[#allocation7 + $0xf0] sm:$0xff]
        %v2602 = vld [vmem:[#allocation7 + $0xf8] sm:$0xff]
        %s2603 = scalar_lea.vmem [#allocation11], 5
        %v2604 = vld [vmem:[%s2603] ss:$8 sm:$0x3]
        %v2606 = vlaneseq
        %v2607 = vshrl.u32 %v2606, 7
        %v2608 = vsub.s32 0, %v2607
        %v2609 = vrot.slane %v2604, %v2608
        %v2610 = vlaneseq
        %v2611 = vshrl.u32 %v2610, 7
        %v2612 = vsub.s32 1, %v2611
        %v2613 = vrot.slane %v2604, %v2612
        %v2648 = vunpack.c.l.b16 %v2571
        %v2649 = vunpack.c.h.b16 %v2571
        %v2650 = vunpack.c.l.b16 %v2572
        %v2651 = vunpack.c.h.b16 %v2572
        %v2652 = vunpack.c.l.b16 %v2573
        %v2653 = vunpack.c.h.b16 %v2573
        %v2654 = vunpack.c.l.b16 %v2574
        %v2655 = vunpack.c.h.b16 %v2574
        %v2656 = vunpack.c.l.b16 %v2575
        %v2657 = vunpack.c.h.b16 %v2575
        %v2658 = vunpack.c.l.b16 %v2576
        %v2659 = vunpack.c.h.b16 %v2576
        %v2660 = vunpack.c.l.b16 %v2577
        %v2661 = vunpack.c.h.b16 %v2577
        %v2662 = vunpack.c.l.b16 %v2578
        %v2663 = vunpack.c.h.b16 %v2578
        %v2664 = vunpack.c.l.b16 %v2579
        %v2665 = vunpack.c.h.b16 %v2579
        %v2666 = vunpack.c.l.b16 %v2580
        %v2667 = vunpack.c.h.b16 %v2580
        %v2668 = vunpack.c.l.b16 %v2581
        %v2669 = vunpack.c.h.b16 %v2581
        %v2670 = vunpack.c.l.b16 %v2582
        %v2671 = vunpack.c.h.b16 %v2582
        %v2672 = vunpack.c.l.b16 %v2583
        %v2673 = vunpack.c.h.b16 %v2583
        %v2674 = vunpack.c.l.b16 %v2584
        %v2675 = vunpack.c.h.b16 %v2584
        %v2676 = vunpack.c.l.b16 %v2585
        %v2677 = vunpack.c.h.b16 %v2585
        %v2678 = vunpack.c.l.b16 %v2586
        %v2679 = vunpack.c.h.b16 %v2586
        %v2680 = vunpack.c.l.b16 %v2587
        %v2681 = vunpack.c.h.b16 %v2587
        %v2682 = vunpack.c.l.b16 %v2588
        %v2683 = vunpack.c.h.b16 %v2588
        %v2684 = vunpack.c.l.b16 %v2589
        %v2685 = vunpack.c.h.b16 %v2589
        %v2686 = vunpack.c.l.b16 %v2590
        %v2687 = vunpack.c.h.b16 %v2590
        %v2688 = vunpack.c.l.b16 %v2591
        %v2689 = vunpack.c.h.b16 %v2591
        %v2690 = vunpack.c.l.b16 %v2592
        %v2691 = vunpack.c.h.b16 %v2592
        %v2692 = vunpack.c.l.b16 %v2593
        %v2693 = vunpack.c.h.b16 %v2593
        %v2694 = vunpack.c.l.b16 %v2594
        %v2695 = vunpack.c.h.b16 %v2594
        %v2696 = vunpack.c.l.b16 %v2595
        %v2697 = vunpack.c.h.b16 %v2595
        %v2698 = vunpack.c.l.b16 %v2596
        %v2699 = vunpack.c.h.b16 %v2596
        %v2700 = vunpack.c.l.b16 %v2597
        %v2701 = vunpack.c.h.b16 %v2597
        %v2702 = vunpack.c.l.b16 %v2598
        %v2703 = vunpack.c.h.b16 %v2598
        %v2704 = vunpack.c.l.b16 %v2599
        %v2705 = vunpack.c.h.b16 %v2599
        %v2706 = vunpack.c.l.b16 %v2600
        %v2707 = vunpack.c.h.b16 %v2600
        %v2708 = vunpack.c.l.b16 %v2601
        %v2709 = vunpack.c.h.b16 %v2601
        %v2710 = vunpack.c.l.b16 %v2602
        %v2711 = vunpack.c.h.b16 %v2602
        %v2712 = vpack.c.b16 %v2650, %v2648
        %v2713 = vpack.c.b16 %v2651, %v2649
        %v2714 = vpack.c.b16 %v2654, %v2652
        %v2715 = vpack.c.b16 %v2655, %v2653
        %v2716 = vpack.c.b16 %v2658, %v2656
        %v2717 = vpack.c.b16 %v2659, %v2657
        %v2718 = vpack.c.b16 %v2662, %v2660
        %v2719 = vpack.c.b16 %v2663, %v2661
        %v2720 = vpack.c.b16 %v2666, %v2664
        %v2721 = vpack.c.b16 %v2667, %v2665
        %v2722 = vpack.c.b16 %v2670, %v2668
        %v2723 = vpack.c.b16 %v2671, %v2669
        %v2724 = vpack.c.b16 %v2674, %v2672
        %v2725 = vpack.c.b16 %v2675, %v2673
        %v2726 = vpack.c.b16 %v2678, %v2676
        %v2727 = vpack.c.b16 %v2679, %v2677
        %v2728 = vpack.c.b16 %v2682, %v2680
        %v2729 = vpack.c.b16 %v2683, %v2681
        %v2730 = vpack.c.b16 %v2686, %v2684
        %v2731 = vpack.c.b16 %v2687, %v2685
        %v2732 = vpack.c.b16 %v2690, %v2688
        %v2733 = vpack.c.b16 %v2691, %v2689
        %v2734 = vpack.c.b16 %v2694, %v2692
        %v2735 = vpack.c.b16 %v2695, %v2693
        %v2736 = vpack.c.b16 %v2698, %v2696
        %v2737 = vpack.c.b16 %v2699, %v2697
        %v2738 = vpack.c.b16 %v2702, %v2700
        %v2739 = vpack.c.b16 %v2703, %v2701
        %v2740 = vpack.c.b16 %v2706, %v2704
        %v2741 = vpack.c.b16 %v2707, %v2705
        %v2742 = vpack.c.b16 %v2710, %v2708
        %v2743 = vpack.c.b16 %v2711, %v2709
        %2776 = vmatprep.subr.bf16.mxu0 %v2713
        %2777 = vmatpush1.bf16.msra.mxu0 %v2712
        %2778 = vmatprep.subr.bf16.mxu0 %v2715
        %2779 = vmatpush1.bf16.msra.mxu0 %v2714
        %2780 = vmatprep.subr.bf16.mxu0 %v2717
        %2781 = vmatpush1.bf16.msra.mxu0 %v2716
        %2782 = vmatprep.subr.bf16.mxu0 %v2719
        %2783 = vmatpush1.bf16.msra.mxu0 %v2718
        %2784 = vmatprep.subr.bf16.mxu0 %v2721
        %2785 = vmatpush1.bf16.msra.mxu0 %v2720
        %2786 = vmatprep.subr.bf16.mxu0 %v2723
        %2787 = vmatpush1.bf16.msra.mxu0 %v2722
        %2788 = vmatprep.subr.bf16.mxu0 %v2725
        %2789 = vmatpush1.bf16.msra.mxu0 %v2724
        %2790 = vmatprep.subr.bf16.mxu0 %v2727
        %2791 = vmatpush1.bf16.msra.mxu0 %v2726
        %2792 = vmatprep.subr.bf16.mxu0 %v2729
        %2793 = vmatpush1.bf16.msra.mxu0 %v2728
        %2794 = vmatprep.subr.bf16.mxu0 %v2731
        %2795 = vmatpush1.bf16.msra.mxu0 %v2730
        %2796 = vmatprep.subr.bf16.mxu0 %v2733
        %2797 = vmatpush1.bf16.msra.mxu0 %v2732
        %2798 = vmatprep.subr.bf16.mxu0 %v2735
        %2799 = vmatpush1.bf16.msra.mxu0 %v2734
        %2800 = vmatprep.subr.bf16.mxu0 %v2737
        %2801 = vmatpush1.bf16.msra.mxu0 %v2736
        %2802 = vmatprep.subr.bf16.mxu0 %v2739
        %2803 = vmatpush1.bf16.msra.mxu0 %v2738
        %2804 = vmatprep.subr.bf16.mxu0 %v2741
        %2805 = vmatpush1.bf16.msra.mxu0 %v2740
        %2806 = vmatprep.subr.bf16.mxu0 %v2743
        %2807 = vmatpush1.bf16.msra.mxu0 %v2742
        %2808 = vmatprep.mubr.bf16.mxu0 %v2556
        %2809 = vmatmul.mubr.bf16.gmra.mrb[0].mxu0 %v2555
        %v2810 = vpop.f32.mrb[0].mxu0
        %v2811 = vadd.f32 %v2609, %v2810
        %v2812 = vpop.f32.mrb[0].mxu0
        %v2813 = vadd.f32 %v2613, %v2812
        %v2814 = vpop.f32.mrb[0].mxu0
        %v2815 = vadd.f32 %v2609, %v2814
        %v2816 = vpop.f32.mrb[0].mxu0
        %v2817 = vadd.f32 %v2613, %v2816
        %2818 = vmatprep.mubr.bf16.mxu0 %v2558
        %2819 = vmatmul.mubr.bf16.gmra.mrb[0].mxu0 %v2557
        %v2820 = vpop.f32.mrb[0].mxu0
        %v2821 = vadd.f32 %v2609, %v2820
        %v2822 = vpop.f32.mrb[0].mxu0
        %v2823 = vadd.f32 %v2613, %v2822
        %v2824 = vpop.f32.mrb[0].mxu0
        %v2825 = vadd.f32 %v2609, %v2824
        %v2826 = vpop.f32.mrb[0].mxu0
        %v2827 = vadd.f32 %v2613, %v2826
        %2828 = vmatprep.mubr.bf16.mxu0 %v2560
        %2829 = vmatmul.mubr.bf16.gmra.mrb[0].mxu0 %v2559
        %v2830 = vpop.f32.mrb[0].mxu0
        %v2831 = vadd.f32 %v2609, %v2830
        %v2832 = vpop.f32.mrb[0].mxu0
        %v2833 = vadd.f32 %v2613, %v2832
        %v2834 = vpop.f32.mrb[0].mxu0
        %v2835 = vadd.f32 %v2609, %v2834
        %v2836 = vpop.f32.mrb[0].mxu0
        %v2837 = vadd.f32 %v2613, %v2836
        %2838 = vmatprep.mubr.bf16.mxu0 %v2562
        %2839 = vmatmul.mubr.bf16.gmra.mrb[0].mxu0 %v2561
        %v2840 = vpop.f32.mrb[0].mxu0
        %v2841 = vadd.f32 %v2609, %v2840
        %v2842 = vpop.f32.mrb[0].mxu0
        %v2843 = vadd.f32 %v2613, %v2842
        %v2844 = vpop.f32.mrb[0].mxu0
        %v2845 = vadd.f32 %v2609, %v2844
        %v2846 = vpop.f32.mrb[0].mxu0
        %v2847 = vadd.f32 %v2613, %v2846
        %2848 = vmatprep.mubr.bf16.mxu0 %v2564
        %2849 = vmatmul.mubr.bf16.gmra.mrb[0].mxu0 %v2563
        %v2850 = vpop.f32.mrb[0].mxu0
        %v2851 = vadd.f32 %v2609, %v2850
        %v2852 = vpop.f32.mrb[0].mxu0
        %v2853 = vadd.f32 %v2613, %v2852
        %v2854 = vpop.f32.mrb[0].mxu0
        %v2855 = vadd.f32 %v2609, %v2854
        %v2856 = vpop.f32.mrb[0].mxu0
        %v2857 = vadd.f32 %v2613, %v2856
        %2858 = vmatprep.mubr.bf16.mxu0 %v2566
        %2859 = vmatmul.mubr.bf16.gmra.mrb[0].mxu0 %v2565
        %v2860 = vpop.f32.mrb[0].mxu0
        %v2861 = vadd.f32 %v2609, %v2860
        %v2862 = vpop.f32.mrb[0].mxu0
        %v2863 = vadd.f32 %v2613, %v2862
        %v2864 = vpop.f32.mrb[0].mxu0
        %v2865 = vadd.f32 %v2609, %v2864
        %v2866 = vpop.f32.mrb[0].mxu0
        %v2867 = vadd.f32 %v2613, %v2866
        %2868 = vmatprep.mubr.bf16.mxu0 %v2568
        %2869 = vmatmul.mubr.bf16.gmra.mrb[0].mxu0 %v2567
        %v2870 = vpop.f32.mrb[0].mxu0
        %v2871 = vadd.f32 %v2609, %v2870
        %v2872 = vpop.f32.mrb[0].mxu0
        %v2873 = vadd.f32 %v2613, %v2872
        %v2874 = vpop.f32.mrb[0].mxu0
        %v2875 = vadd.f32 %v2609, %v2874
        %v2876 = vpop.f32.mrb[0].mxu0
        %v2877 = vadd.f32 %v2613, %v2876
        %2878 = vmatprep.mubr.bf16.mxu0 %v2570
        %2879 = vmatmul.mubr.bf16.gmra.mrb[0].mxu0 %v2569
        %v2880 = vpop.f32.mrb[0].mxu0
        %v2881 = vadd.f32 %v2609, %v2880
        %v2882 = vpop.f32.mrb[0].mxu0
        %v2883 = vadd.f32 %v2613, %v2882
        %v2884 = vpop.f32.mrb[0].mxu0
        %v2885 = vadd.f32 %v2609, %v2884
        %v2886 = vpop.f32.mrb[0].mxu0
        %v2887 = vadd.f32 %v2613, %v2886
        %2888 = vdwg.mxu0
        %v2889 = vadd.f32 %v717, %v2811
        %v2890 = vadd.f32 %v718, %v2813
        %v2891 = vadd.f32 %v719, %v2815
        %v2892 = vadd.f32 %v720, %v2817
        %v2893 = vadd.f32 %v721, %v2821
        %v2894 = vadd.f32 %v722, %v2823
        %v2895 = vadd.f32 %v723, %v2825
        %v2896 = vadd.f32 %v724, %v2827
        %v2897 = vadd.f32 %v725, %v2831
        %v2898 = vadd.f32 %v726, %v2833
        %v2899 = vadd.f32 %v727, %v2835
        %v2900 = vadd.f32 %v728, %v2837
        %v2901 = vadd.f32 %v729, %v2841
        %v2902 = vadd.f32 %v730, %v2843
        %v2903 = vadd.f32 %v731, %v2845
        %v2904 = vadd.f32 %v732, %v2847
        %v2905 = vadd.f32 %v733, %v2851
        %v2906 = vadd.f32 %v734, %v2853
        %v2907 = vadd.f32 %v735, %v2855
        %v2908 = vadd.f32 %v736, %v2857
        %v2909 = vadd.f32 %v737, %v2861
        %v2910 = vadd.f32 %v738, %v2863
        %v2911 = vadd.f32 %v739, %v2865
        %v2912 = vadd.f32 %v740, %v2867
        %v2913 = vadd.f32 %v741, %v2871
        %v2914 = vadd.f32 %v742, %v2873
        %v2915 = vadd.f32 %v743, %v2875
        %v2916 = vadd.f32 %v744, %v2877
        %v2917 = vadd.f32 %v745, %v2881
        %v2918 = vadd.f32 %v746, %v2883
        %v2919 = vadd.f32 %v747, %v2885
        %v2920 = vadd.f32 %v748, %v2887
        %s2921 = scalar_lea.vmem [#allocation11], 6
        %v2922 = vld [vmem:[%s2921] ss:$8 sm:$0x3]
        %s2923 = scalar_lea.vmem [#allocation11], 7
        %v2924 = vld [vmem:[%s2923] ss:$8 sm:$0x3]
        %v2925 = vadd.f32 %v2889, %v2890
        %2926 = vadd.xlane.f32.xlu0 %v2925
        %v2927 = vpop.xlane.xlu0 %2926
        %v2928 = vadd.f32 %v2891, %v2892
        %2929 = vadd.xlane.f32.xlu0 %v2928
        %v2930 = vpop.xlane.xlu0 %2929
        %v2931 = vadd.f32 %v2893, %v2894
        %2932 = vadd.xlane.f32.xlu0 %v2931
        %v2933 = vpop.xlane.xlu0 %2932
        %v2934 = vadd.f32 %v2895, %v2896
        %2935 = vadd.xlane.f32.xlu0 %v2934
        %v2936 = vpop.xlane.xlu0 %2935
        %v2937 = vadd.f32 %v2897, %v2898
        %2938 = vadd.xlane.f32.xlu0 %v2937
        %v2939 = vpop.xlane.xlu0 %2938
        %v2940 = vadd.f32 %v2899, %v2900
        %2941 = vadd.xlane.f32.xlu0 %v2940
        %v2942 = vpop.xlane.xlu0 %2941
        %v2943 = vadd.f32 %v2901, %v2902
        %2944 = vadd.xlane.f32.xlu0 %v2943
        %v2945 = vpop.xlane.xlu0 %2944
        %v2946 = vadd.f32 %v2903, %v2904
        %2947 = vadd.xlane.f32.xlu0 %v2946
        %v2948 = vpop.xlane.xlu0 %2947
        %v2949 = vadd.f32 %v2905, %v2906
        %2950 = vadd.xlane.f32.xlu0 %v2949
        %v2951 = vpop.xlane.xlu0 %2950
        %v2952 = vadd.f32 %v2907, %v2908
        %2953 = vadd.xlane.f32.xlu0 %v2952
        %v2954 = vpop.xlane.xlu0 %2953
        %v2955 = vadd.f32 %v2909, %v2910
        %2956 = vadd.xlane.f32.xlu0 %v2955
        %v2957 = vpop.xlane.xlu0 %2956
        %v2958 = vadd.f32 %v2911, %v2912
        %2959 = vadd.xlane.f32.xlu0 %v2958
        %v2960 = vpop.xlane.xlu0 %2959
        %v2961 = vadd.f32 %v2913, %v2914
        %2962 = vadd.xlane.f32.xlu0 %v2961
        %v2963 = vpop.xlane.xlu0 %2962
        %v2964 = vadd.f32 %v2915, %v2916
        %2965 = vadd.xlane.f32.xlu0 %v2964
        %v2966 = vpop.xlane.xlu0 %2965
        %v2967 = vadd.f32 %v2917, %v2918
        %2968 = vadd.xlane.f32.xlu0 %v2967
        %v2969 = vpop.xlane.xlu0 %2968
        %v2970 = vadd.f32 %v2919, %v2920
        %2971 = vadd.xlane.f32.xlu0 %v2970
        %v2972 = vpop.xlane.xlu0 %2971
        %v2973 = vmul.f32 %v2927, %v454
        %v2974 = vmul.f32 %v2930, %v454
        %v2975 = vmul.f32 %v2933, %v454
        %v2976 = vmul.f32 %v2936, %v454
        %v2977 = vmul.f32 %v2939, %v454
        %v2978 = vmul.f32 %v2942, %v454
        %v2979 = vmul.f32 %v2945, %v454
        %v2980 = vmul.f32 %v2948, %v454
        %v2981 = vmul.f32 %v2951, %v454
        %v2982 = vmul.f32 %v2954, %v454
        %v2983 = vmul.f32 %v2957, %v454
        %v2984 = vmul.f32 %v2960, %v454
        %v2985 = vmul.f32 %v2963, %v454
        %v2986 = vmul.f32 %v2966, %v454
        %v2987 = vmul.f32 %v2969, %v454
        %v2988 = vmul.f32 %v2972, %v454
        %v2989 = vsub.f32 %v2889, %v2973
        %v2990 = vsub.f32 %v2890, %v2973
        %v2991 = vsub.f32 %v2891, %v2974
        %v2992 = vsub.f32 %v2892, %v2974
        %v2993 = vsub.f32 %v2893, %v2975
        %v2994 = vsub.f32 %v2894, %v2975
        %v2995 = vsub.f32 %v2895, %v2976
        %v2996 = vsub.f32 %v2896, %v2976
        %v2997 = vsub.f32 %v2897, %v2977
        %v2998 = vsub.f32 %v2898, %v2977
        %v2999 = vsub.f32 %v2899, %v2978
        %v3000 = vsub.f32 %v2900, %v2978
        %v3001 = vsub.f32 %v2901, %v2979
        %v3002 = vsub.f32 %v2902, %v2979
        %v3003 = vsub.f32 %v2903, %v2980
        %v3004 = vsub.f32 %v2904, %v2980
        %v3005 = vsub.f32 %v2905, %v2981
        %v3006 = vsub.f32 %v2906, %v2981
        %v3007 = vsub.f32 %v2907, %v2982
        %v3008 = vsub.f32 %v2908, %v2982
        %v3009 = vsub.f32 %v2909, %v2983
        %v3010 = vsub.f32 %v2910, %v2983
        %v3011 = vsub.f32 %v2911, %v2984
        %v3012 = vsub.f32 %v2912, %v2984
        %v3013 = vsub.f32 %v2913, %v2985
        %v3014 = vsub.f32 %v2914, %v2985
        %v3015 = vsub.f32 %v2915, %v2986
        %v3016 = vsub.f32 %v2916, %v2986
        %v3017 = vsub.f32 %v2917, %v2987
        %v3018 = vsub.f32 %v2918, %v2987
        %v3019 = vsub.f32 %v2919, %v2988
        %v3020 = vsub.f32 %v2920, %v2988
        %v3021 = vmul.f32 %v2989, %v2989
        %v3022 = vmul.f32 %v2990, %v2990
        %v3023 = vmul.f32 %v2991, %v2991
        %v3024 = vmul.f32 %v2992, %v2992
        %v3025 = vmul.f32 %v2993, %v2993
        %v3026 = vmul.f32 %v2994, %v2994
        %v3027 = vmul.f32 %v2995, %v2995
        %v3028 = vmul.f32 %v2996, %v2996
        %v3029 = vmul.f32 %v2997, %v2997
        %v3030 = vmul.f32 %v2998, %v2998
        %v3031 = vmul.f32 %v2999, %v2999
        %v3032 = vmul.f32 %v3000, %v3000
        %v3033 = vmul.f32 %v3001, %v3001
        %v3034 = vmul.f32 %v3002, %v3002
        %v3035 = vmul.f32 %v3003, %v3003
        %v3036 = vmul.f32 %v3004, %v3004
        %v3037 = vmul.f32 %v3005, %v3005
        %v3038 = vmul.f32 %v3006, %v3006
        %v3039 = vmul.f32 %v3007, %v3007
        %v3040 = vmul.f32 %v3008, %v3008
        %v3041 = vmul.f32 %v3009, %v3009
        %v3042 = vmul.f32 %v3010, %v3010
        %v3043 = vmul.f32 %v3011, %v3011
        %v3044 = vmul.f32 %v3012, %v3012
        %v3045 = vmul.f32 %v3013, %v3013
        %v3046 = vmul.f32 %v3014, %v3014
        %v3047 = vmul.f32 %v3015, %v3015
        %v3048 = vmul.f32 %v3016, %v3016
        %v3049 = vmul.f32 %v3017, %v3017
        %v3050 = vmul.f32 %v3018, %v3018
        %v3051 = vmul.f32 %v3019, %v3019
        %v3052 = vmul.f32 %v3020, %v3020
        %v3053 = vadd.f32 %v3021, %v3022
        %3054 = vadd.xlane.f32.xlu0 %v3053
        %v3055 = vpop.xlane.xlu0 %3054
        %v3056 = vadd.f32 %v3023, %v3024
        %3057 = vadd.xlane.f32.xlu0 %v3056
        %v3058 = vpop.xlane.xlu0 %3057
        %v3059 = vadd.f32 %v3025, %v3026
        %3060 = vadd.xlane.f32.xlu0 %v3059
        %v3061 = vpop.xlane.xlu0 %3060
        %v3062 = vadd.f32 %v3027, %v3028
        %3063 = vadd.xlane.f32.xlu0 %v3062
        %v3064 = vpop.xlane.xlu0 %3063
        %v3065 = vadd.f32 %v3029, %v3030
        %3066 = vadd.xlane.f32.xlu0 %v3065
        %v3067 = vpop.xlane.xlu0 %3066
        %v3068 = vadd.f32 %v3031, %v3032
        %3069 = vadd.xlane.f32.xlu0 %v3068
        %v3070 = vpop.xlane.xlu0 %3069
        %v3071 = vadd.f32 %v3033, %v3034
        %3072 = vadd.xlane.f32.xlu0 %v3071
        %v3073 = vpop.xlane.xlu0 %3072
        %v3074 = vadd.f32 %v3035, %v3036
        %3075 = vadd.xlane.f32.xlu0 %v3074
        %v3076 = vpop.xlane.xlu0 %3075
        %v3077 = vadd.f32 %v3037, %v3038
        %3078 = vadd.xlane.f32.xlu0 %v3077
        %v3079 = vpop.xlane.xlu0 %3078
        %v3080 = vadd.f32 %v3039, %v3040
        %3081 = vadd.xlane.f32.xlu0 %v3080
        %v3082 = vpop.xlane.xlu0 %3081
        %v3083 = vadd.f32 %v3041, %v3042
        %3084 = vadd.xlane.f32.xlu0 %v3083
        %v3085 = vpop.xlane.xlu0 %3084
        %v3086 = vadd.f32 %v3043, %v3044
        %3087 = vadd.xlane.f32.xlu0 %v3086
        %v3088 = vpop.xlane.xlu0 %3087
        %v3089 = vadd.f32 %v3045, %v3046
        %3090 = vadd.xlane.f32.xlu0 %v3089
        %v3091 = vpop.xlane.xlu0 %3090
        %v3092 = vadd.f32 %v3047, %v3048
        %3093 = vadd.xlane.f32.xlu0 %v3092
        %v3094 = vpop.xlane.xlu0 %3093
        %v3095 = vadd.f32 %v3049, %v3050
        %3096 = vadd.xlane.f32.xlu0 %v3095
        %v3097 = vpop.xlane.xlu0 %3096
        %v3098 = vadd.f32 %v3051, %v3052
        %3099 = vadd.xlane.f32.xlu0 %v3098
        %v3100 = vpop.xlane.xlu0 %3099
        %v3101 = vmul.f32 %v3055, %v454
        %v3102 = vmul.f32 %v3058, %v454
        %v3103 = vmul.f32 %v3061, %v454
        %v3104 = vmul.f32 %v3064, %v454
        %v3105 = vmul.f32 %v3067, %v454
        %v3106 = vmul.f32 %v3070, %v454
        %v3107 = vmul.f32 %v3073, %v454
        %v3108 = vmul.f32 %v3076, %v454
        %v3109 = vmul.f32 %v3079, %v454
        %v3110 = vmul.f32 %v3082, %v454
        %v3111 = vmul.f32 %v3085, %v454
        %v3112 = vmul.f32 %v3088, %v454
        %v3113 = vmul.f32 %v3091, %v454
        %v3114 = vmul.f32 %v3094, %v454
        %v3115 = vmul.f32 %v3097, %v454
        %v3116 = vmul.f32 %v3100, %v454
        %v3117 = vadd.f32 %v3101, 1e-12
        %v3118 = vadd.f32 %v3102, 1e-12
        %v3119 = vadd.f32 %v3103, 1e-12
        %v3120 = vadd.f32 %v3104, 1e-12
        %v3121 = vadd.f32 %v3105, 1e-12
        %v3122 = vadd.f32 %v3106, 1e-12
        %v3123 = vadd.f32 %v3107, 1e-12
        %v3124 = vadd.f32 %v3108, 1e-12
        %v3125 = vadd.f32 %v3109, 1e-12
        %v3126 = vadd.f32 %v3110, 1e-12
        %v3127 = vadd.f32 %v3111, 1e-12
        %v3128 = vadd.f32 %v3112, 1e-12
        %v3129 = vadd.f32 %v3113, 1e-12
        %v3130 = vadd.f32 %v3114, 1e-12
        %v3131 = vadd.f32 %v3115, 1e-12
        %v3132 = vadd.f32 %v3116, 1e-12
        %v3133 = vrsqrt.pop %v3117
        %v3134 = vrsqrt.pop %v3118
        %v3135 = vrsqrt.pop %v3119
        %v3136 = vrsqrt.pop %v3120
        %v3137 = vrsqrt.pop %v3121
        %v3138 = vrsqrt.pop %v3122
        %v3139 = vrsqrt.pop %v3123
        %v3140 = vrsqrt.pop %v3124
        %v3141 = vrsqrt.pop %v3125
        %v3142 = vrsqrt.pop %v3126
        %v3143 = vrsqrt.pop %v3127
        %v3144 = vrsqrt.pop %v3128
        %v3145 = vrsqrt.pop %v3129
        %v3146 = vrsqrt.pop %v3130
        %v3147 = vrsqrt.pop %v3131
        %v3148 = vrsqrt.pop %v3132
        %v3149 = vmul.f32 %v2989, %v3133
        %v3150 = vmul.f32 %v2990, %v3133
        %v3151 = vmul.f32 %v2991, %v3134
        %v3152 = vmul.f32 %v2992, %v3134
        %v3153 = vmul.f32 %v2993, %v3135
        %v3154 = vmul.f32 %v2994, %v3135
        %v3155 = vmul.f32 %v2995, %v3136
        %v3156 = vmul.f32 %v2996, %v3136
        %v3157 = vmul.f32 %v2997, %v3137
        %v3158 = vmul.f32 %v2998, %v3137
        %v3159 = vmul.f32 %v2999, %v3138
        %v3160 = vmul.f32 %v3000, %v3138
        %v3161 = vmul.f32 %v3001, %v3139
        %v3162 = vmul.f32 %v3002, %v3139
        %v3163 = vmul.f32 %v3003, %v3140
        %v3164 = vmul.f32 %v3004, %v3140
        %v3165 = vmul.f32 %v3005, %v3141
        %v3166 = vmul.f32 %v3006, %v3141
        %v3167 = vmul.f32 %v3007, %v3142
        %v3168 = vmul.f32 %v3008, %v3142
        %v3169 = vmul.f32 %v3009, %v3143
        %v3170 = vmul.f32 %v3010, %v3143
        %v3171 = vmul.f32 %v3011, %v3144
        %v3172 = vmul.f32 %v3012, %v3144
        %v3173 = vmul.f32 %v3013, %v3145
        %v3174 = vmul.f32 %v3014, %v3145
        %v3175 = vmul.f32 %v3015, %v3146
        %v3176 = vmul.f32 %v3016, %v3146
        %v3177 = vmul.f32 %v3017, %v3147
        %v3178 = vmul.f32 %v3018, %v3147
        %v3179 = vmul.f32 %v3019, %v3148
        %v3180 = vmul.f32 %v3020, %v3148
        %v3182 = vlaneseq
        %v3183 = vshrl.u32 %v3182, 7
        %v3184 = vsub.s32 0, %v3183
        %v3185 = vrot.slane %v2922, %v3184
        %v3186 = vlaneseq
        %v3187 = vshrl.u32 %v3186, 7
        %v3188 = vsub.s32 1, %v3187
        %v3189 = vrot.slane %v2922, %v3188
        %v3192 = vmul.f32 %v3149, %v3185
        %v3193 = vmul.f32 %v3150, %v3189
        %v3194 = vmul.f32 %v3151, %v3185
        %v3195 = vmul.f32 %v3152, %v3189
        %v3196 = vmul.f32 %v3153, %v3185
        %v3197 = vmul.f32 %v3154, %v3189
        %v3198 = vmul.f32 %v3155, %v3185
        %v3199 = vmul.f32 %v3156, %v3189
        %v3200 = vmul.f32 %v3157, %v3185
        %v3201 = vmul.f32 %v3158, %v3189
        %v3202 = vmul.f32 %v3159, %v3185
        %v3203 = vmul.f32 %v3160, %v3189
        %v3204 = vmul.f32 %v3161, %v3185
        %v3205 = vmul.f32 %v3162, %v3189
        %v3206 = vmul.f32 %v3163, %v3185
        %v3207 = vmul.f32 %v3164, %v3189
        %v3208 = vmul.f32 %v3165, %v3185
        %v3209 = vmul.f32 %v3166, %v3189
        %v3210 = vmul.f32 %v3167, %v3185
        %v3211 = vmul.f32 %v3168, %v3189
        %v3212 = vmul.f32 %v3169, %v3185
        %v3213 = vmul.f32 %v3170, %v3189
        %v3214 = vmul.f32 %v3171, %v3185
        %v3215 = vmul.f32 %v3172, %v3189
        %v3216 = vmul.f32 %v3173, %v3185
        %v3217 = vmul.f32 %v3174, %v3189
        %v3218 = vmul.f32 %v3175, %v3185
        %v3219 = vmul.f32 %v3176, %v3189
        %v3220 = vmul.f32 %v3177, %v3185
        %v3221 = vmul.f32 %v3178, %v3189
        %v3222 = vmul.f32 %v3179, %v3185
        %v3223 = vmul.f32 %v3180, %v3189
        %v3225 = vlaneseq
        %v3226 = vshrl.u32 %v3225, 7
        %v3227 = vsub.s32 0, %v3226
        %v3228 = vrot.slane %v2924, %v3227
        %v3229 = vlaneseq
        %v3230 = vshrl.u32 %v3229, 7
        %v3231 = vsub.s32 1, %v3230
        %v3232 = vrot.slane %v2924, %v3231
        %v3235 = vadd.f32 %v3192, %v3228
        %v3236 = vadd.f32 %v3193, %v3232
        %v3237 = vadd.f32 %v3194, %v3228
        %v3238 = vadd.f32 %v3195, %v3232
        %v3239 = vadd.f32 %v3196, %v3228
        %v3240 = vadd.f32 %v3197, %v3232
        %v3241 = vadd.f32 %v3198, %v3228
        %v3242 = vadd.f32 %v3199, %v3232
        %v3243 = vadd.f32 %v3200, %v3228
        %v3244 = vadd.f32 %v3201, %v3232
        %v3245 = vadd.f32 %v3202, %v3228
        %v3246 = vadd.f32 %v3203, %v3232
        %v3247 = vadd.f32 %v3204, %v3228
        %v3248 = vadd.f32 %v3205, %v3232
        %v3249 = vadd.f32 %v3206, %v3228
        %v3250 = vadd.f32 %v3207, %v3232
        %v3251 = vadd.f32 %v3208, %v3228
        %v3252 = vadd.f32 %v3209, %v3232
        %v3253 = vadd.f32 %v3210, %v3228
        %v3254 = vadd.f32 %v3211, %v3232
        %v3255 = vadd.f32 %v3212, %v3228
        %v3256 = vadd.f32 %v3213, %v3232
        %v3257 = vadd.f32 %v3214, %v3228
        %v3258 = vadd.f32 %v3215, %v3232
        %v3259 = vadd.f32 %v3216, %v3228
        %v3260 = vadd.f32 %v3217, %v3232
        %v3261 = vadd.f32 %v3218, %v3228
        %v3262 = vadd.f32 %v3219, %v3232
        %v3263 = vadd.f32 %v3220, %v3228
        %v3264 = vadd.f32 %v3221, %v3232
        %v3265 = vadd.f32 %v3222, %v3228
        %v3266 = vadd.f32 %v3223, %v3232
        %v3267 = vpack.c.bf16 %v3237, %v3235
        %v3268 = vpack.c.bf16 %v3238, %v3236
        %v3269 = vpack.c.bf16 %v3241, %v3239
        %v3270 = vpack.c.bf16 %v3242, %v3240
        %v3271 = vpack.c.bf16 %v3245, %v3243
        %v3272 = vpack.c.bf16 %v3246, %v3244
        %v3273 = vpack.c.bf16 %v3249, %v3247
        %v3274 = vpack.c.bf16 %v3250, %v3248
        %v3275 = vpack.c.bf16 %v3253, %v3251
        %v3276 = vpack.c.bf16 %v3254, %v3252
        %v3277 = vpack.c.bf16 %v3257, %v3255
        %v3278 = vpack.c.bf16 %v3258, %v3256
        %v3279 = vpack.c.bf16 %v3261, %v3259
        %v3280 = vpack.c.bf16 %v3262, %v3260
        %v3281 = vpack.c.bf16 %v3265, %v3263
        %v3282 = vpack.c.bf16 %v3266, %v3264
        %v3283 = vld [vmem:[#allocation8] sm:$0xff]
        %v3284 = vld [vmem:[#allocation8 + $0x8] sm:$0xff]
        %v3285 = vld [vmem:[#allocation8 + $0x10] sm:$0xff]
        %v3286 = vld [vmem:[#allocation8 + $0x18] sm:$0xff]
        %v3287 = vld [vmem:[#allocation8 + $0x20] sm:$0xff]
        %v3288 = vld [vmem:[#allocation8 + $0x28] sm:$0xff]
        %v3289 = vld [vmem:[#allocation8 + $0x30] sm:$0xff]
        %v3290 = vld [vmem:[#allocation8 + $0x38] sm:$0xff]
        %v3291 = vld [vmem:[#allocation8 + $0x40] sm:$0xff]
        %v3292 = vld [vmem:[#allocation8 + $0x48] sm:$0xff]
        %v3293 = vld [vmem:[#allocation8 + $0x50] sm:$0xff]
        %v3294 = vld [vmem:[#allocation8 + $0x58] sm:$0xff]
        %v3295 = vld [vmem:[#allocation8 + $0x60] sm:$0xff]
        %v3296 = vld [vmem:[#allocation8 + $0x68] sm:$0xff]
        %v3297 = vld [vmem:[#allocation8 + $0x70] sm:$0xff]
        %v3298 = vld [vmem:[#allocation8 + $0x78] sm:$0xff]
        %v3299 = vld [vmem:[#allocation8 + $0x80] sm:$0xff]
        %v3300 = vld [vmem:[#allocation8 + $0x88] sm:$0xff]
        %v3301 = vld [vmem:[#allocation8 + $0x90] sm:$0xff]
        %v3302 = vld [vmem:[#allocation8 + $0x98] sm:$0xff]
        %v3303 = vld [vmem:[#allocation8 + $0xa0] sm:$0xff]
        %v3304 = vld [vmem:[#allocation8 + $0xa8] sm:$0xff]
        %v3305 = vld [vmem:[#allocation8 + $0xb0] sm:$0xff]
        %v3306 = vld [vmem:[#allocation8 + $0xb8] sm:$0xff]
        %v3307 = vld [vmem:[#allocation8 + $0xc0] sm:$0xff]
        %v3308 = vld [vmem:[#allocation8 + $0xc8] sm:$0xff]
        %v3309 = vld [vmem:[#allocation8 + $0xd0] sm:$0xff]
        %v3310 = vld [vmem:[#allocation8 + $0xd8] sm:$0xff]
        %v3311 = vld [vmem:[#allocation8 + $0xe0] sm:$0xff]
        %v3312 = vld [vmem:[#allocation8 + $0xe8] sm:$0xff]
        %v3313 = vld [vmem:[#allocation8 + $0xf0] sm:$0xff]
        %v3314 = vld [vmem:[#allocation8 + $0xf8] sm:$0xff]
        %v3315 = vld [vmem:[#allocation8 + $0x100] sm:$0xff]
        %v3316 = vld [vmem:[#allocation8 + $0x108] sm:$0xff]
        %v3317 = vld [vmem:[#allocation8 + $0x110] sm:$0xff]
        %v3318 = vld [vmem:[#allocation8 + $0x118] sm:$0xff]
        %v3319 = vld [vmem:[#allocation8 + $0x120] sm:$0xff]
        %v3320 = vld [vmem:[#allocation8 + $0x128] sm:$0xff]
        %v3321 = vld [vmem:[#allocation8 + $0x130] sm:$0xff]
        %v3322 = vld [vmem:[#allocation8 + $0x138] sm:$0xff]
        %v3323 = vld [vmem:[#allocation8 + $0x140] sm:$0xff]
        %v3324 = vld [vmem:[#allocation8 + $0x148] sm:$0xff]
        %v3325 = vld [vmem:[#allocation8 + $0x150] sm:$0xff]
        %v3326 = vld [vmem:[#allocation8 + $0x158] sm:$0xff]
        %v3327 = vld [vmem:[#allocation8 + $0x160] sm:$0xff]
        %v3328 = vld [vmem:[#allocation8 + $0x168] sm:$0xff]
        %v3329 = vld [vmem:[#allocation8 + $0x170] sm:$0xff]
        %v3330 = vld [vmem:[#allocation8 + $0x178] sm:$0xff]
        %v3331 = vld [vmem:[#allocation8 + $0x180] sm:$0xff]
        %v3332 = vld [vmem:[#allocation8 + $0x188] sm:$0xff]
        %v3333 = vld [vmem:[#allocation8 + $0x190] sm:$0xff]
        %v3334 = vld [vmem:[#allocation8 + $0x198] sm:$0xff]
        %v3335 = vld [vmem:[#allocation8 + $0x1a0] sm:$0xff]
        %v3336 = vld [vmem:[#allocation8 + $0x1a8] sm:$0xff]
        %v3337 = vld [vmem:[#allocation8 + $0x1b0] sm:$0xff]
        %v3338 = vld [vmem:[#allocation8 + $0x1b8] sm:$0xff]
        %v3339 = vld [vmem:[#allocation8 + $0x1c0] sm:$0xff]
        %v3340 = vld [vmem:[#allocation8 + $0x1c8] sm:$0xff]
        %v3341 = vld [vmem:[#allocation8 + $0x1d0] sm:$0xff]
        %v3342 = vld [vmem:[#allocation8 + $0x1d8] sm:$0xff]
        %v3343 = vld [vmem:[#allocation8 + $0x1e0] sm:$0xff]
        %v3344 = vld [vmem:[#allocation8 + $0x1e8] sm:$0xff]
        %v3345 = vld [vmem:[#allocation8 + $0x1f0] sm:$0xff]
        %v3346 = vld [vmem:[#allocation8 + $0x1f8] sm:$0xff]
        %v3347 = vld [vmem:[%s4] sm:$0xf]
        %v3349 = vlaneseq
        %v3350 = vshrl.u32 %v3349, 7
        %v3351 = vsub.s32 0, %v3350
        %v3352 = vrot.slane %v3347, %v3351
        %v3353 = vlaneseq
        %v3354 = vshrl.u32 %v3353, 7
        %v3355 = vsub.s32 1, %v3354
        %v3356 = vrot.slane %v3347, %v3355
        %v3357 = vlaneseq
        %v3358 = vshrl.u32 %v3357, 7
        %v3359 = vsub.s32 2, %v3358
        %v3360 = vrot.slane %v3347, %v3359
        %v3361 = vlaneseq
        %v3362 = vshrl.u32 %v3361, 7
        %v3363 = vsub.s32 3, %v3362
        %v3364 = vrot.slane %v3347, %v3363
        %v3433 = vunpack.c.l.b16 %v3283
        %v3434 = vunpack.c.h.b16 %v3283
        %v3435 = vunpack.c.l.b16 %v3284
        %v3436 = vunpack.c.h.b16 %v3284
        %v3437 = vunpack.c.l.b16 %v3285
        %v3438 = vunpack.c.h.b16 %v3285
        %v3439 = vunpack.c.l.b16 %v3286
        %v3440 = vunpack.c.h.b16 %v3286
        %v3441 = vunpack.c.l.b16 %v3287
        %v3442 = vunpack.c.h.b16 %v3287
        %v3443 = vunpack.c.l.b16 %v3288
        %v3444 = vunpack.c.h.b16 %v3288
        %v3445 = vunpack.c.l.b16 %v3289
        %v3446 = vunpack.c.h.b16 %v3289
        %v3447 = vunpack.c.l.b16 %v3290
        %v3448 = vunpack.c.h.b16 %v3290
        %v3449 = vunpack.c.l.b16 %v3291
        %v3450 = vunpack.c.h.b16 %v3291
        %v3451 = vunpack.c.l.b16 %v3292
        %v3452 = vunpack.c.h.b16 %v3292
        %v3453 = vunpack.c.l.b16 %v3293
        %v3454 = vunpack.c.h.b16 %v3293
        %v3455 = vunpack.c.l.b16 %v3294
        %v3456 = vunpack.c.h.b16 %v3294
        %v3457 = vunpack.c.l.b16 %v3295
        %v3458 = vunpack.c.h.b16 %v3295
        %v3459 = vunpack.c.l.b16 %v3296
        %v3460 = vunpack.c.h.b16 %v3296
        %v3461 = vunpack.c.l.b16 %v3297
        %v3462 = vunpack.c.h.b16 %v3297
        %v3463 = vunpack.c.l.b16 %v3298
        %v3464 = vunpack.c.h.b16 %v3298
        %v3465 = vunpack.c.l.b16 %v3299
        %v3466 = vunpack.c.h.b16 %v3299
        %v3467 = vunpack.c.l.b16 %v3300
        %v3468 = vunpack.c.h.b16 %v3300
        %v3469 = vunpack.c.l.b16 %v3301
        %v3470 = vunpack.c.h.b16 %v3301
        %v3471 = vunpack.c.l.b16 %v3302
        %v3472 = vunpack.c.h.b16 %v3302
        %v3473 = vunpack.c.l.b16 %v3303
        %v3474 = vunpack.c.h.b16 %v3303
        %v3475 = vunpack.c.l.b16 %v3304
        %v3476 = vunpack.c.h.b16 %v3304
        %v3477 = vunpack.c.l.b16 %v3305
        %v3478 = vunpack.c.h.b16 %v3305
        %v3479 = vunpack.c.l.b16 %v3306
        %v3480 = vunpack.c.h.b16 %v3306
        %v3481 = vunpack.c.l.b16 %v3307
        %v3482 = vunpack.c.h.b16 %v3307
        %v3483 = vunpack.c.l.b16 %v3308
        %v3484 = vunpack.c.h.b16 %v3308
        %v3485 = vunpack.c.l.b16 %v3309
        %v3486 = vunpack.c.h.b16 %v3309
        %v3487 = vunpack.c.l.b16 %v3310
        %v3488 = vunpack.c.h.b16 %v3310
        %v3489 = vunpack.c.l.b16 %v3311
        %v3490 = vunpack.c.h.b16 %v3311
        %v3491 = vunpack.c.l.b16 %v3312
        %v3492 = vunpack.c.h.b16 %v3312
        %v3493 = vunpack.c.l.b16 %v3313
        %v3494 = vunpack.c.h.b16 %v3313
        %v3495 = vunpack.c.l.b16 %v3314
        %v3496 = vunpack.c.h.b16 %v3314
        %v3497 = vunpack.c.l.b16 %v3315
        %v3498 = vunpack.c.h.b16 %v3315
        %v3499 = vunpack.c.l.b16 %v3316
        %v3500 = vunpack.c.h.b16 %v3316
        %v3501 = vunpack.c.l.b16 %v3317
        %v3502 = vunpack.c.h.b16 %v3317
        %v3503 = vunpack.c.l.b16 %v3318
        %v3504 = vunpack.c.h.b16 %v3318
        %v3505 = vunpack.c.l.b16 %v3319
        %v3506 = vunpack.c.h.b16 %v3319
        %v3507 = vunpack.c.l.b16 %v3320
        %v3508 = vunpack.c.h.b16 %v3320
        %v3509 = vunpack.c.l.b16 %v3321
        %v3510 = vunpack.c.h.b16 %v3321
        %v3511 = vunpack.c.l.b16 %v3322
        %v3512 = vunpack.c.h.b16 %v3322
        %v3513 = vunpack.c.l.b16 %v3323
        %v3514 = vunpack.c.h.b16 %v3323
        %v3515 = vunpack.c.l.b16 %v3324
        %v3516 = vunpack.c.h.b16 %v3324
        %v3517 = vunpack.c.l.b16 %v3325
        %v3518 = vunpack.c.h.b16 %v3325
        %v3519 = vunpack.c.l.b16 %v3326
        %v3520 = vunpack.c.h.b16 %v3326
        %v3521 = vunpack.c.l.b16 %v3327
        %v3522 = vunpack.c.h.b16 %v3327
        %v3523 = vunpack.c.l.b16 %v3328
        %v3524 = vunpack.c.h.b16 %v3328
        %v3525 = vunpack.c.l.b16 %v3329
        %v3526 = vunpack.c.h.b16 %v3329
        %v3527 = vunpack.c.l.b16 %v3330
        %v3528 = vunpack.c.h.b16 %v3330
        %v3529 = vunpack.c.l.b16 %v3331
        %v3530 = vunpack.c.h.b16 %v3331
        %v3531 = vunpack.c.l.b16 %v3332
        %v3532 = vunpack.c.h.b16 %v3332
        %v3533 = vunpack.c.l.b16 %v3333
        %v3534 = vunpack.c.h.b16 %v3333
        %v3535 = vunpack.c.l.b16 %v3334
        %v3536 = vunpack.c.h.b16 %v3334
        %v3537 = vunpack.c.l.b16 %v3335
        %v3538 = vunpack.c.h.b16 %v3335
        %v3539 = vunpack.c.l.b16 %v3336
        %v3540 = vunpack.c.h.b16 %v3336
        %v3541 = vunpack.c.l.b16 %v3337
        %v3542 = vunpack.c.h.b16 %v3337
        %v3543 = vunpack.c.l.b16 %v3338
        %v3544 = vunpack.c.h.b16 %v3338
        %v3545 = vunpack.c.l.b16 %v3339
        %v3546 = vunpack.c.h.b16 %v3339
        %v3547 = vunpack.c.l.b16 %v3340
        %v3548 = vunpack.c.h.b16 %v3340
        %v3549 = vunpack.c.l.b16 %v3341
        %v3550 = vunpack.c.h.b16 %v3341
        %v3551 = vunpack.c.l.b16 %v3342
        %v3552 = vunpack.c.h.b16 %v3342
        %v3553 = vunpack.c.l.b16 %v3343
        %v3554 = vunpack.c.h.b16 %v3343
        %v3555 = vunpack.c.l.b16 %v3344
        %v3556 = vunpack.c.h.b16 %v3344
        %v3557 = vunpack.c.l.b16 %v3345
        %v3558 = vunpack.c.h.b16 %v3345
        %v3559 = vunpack.c.l.b16 %v3346
        %v3560 = vunpack.c.h.b16 %v3346
        %v3561 = vpack.c.b16 %v3437, %v3433
        %v3562 = vpack.c.b16 %v3438, %v3434
        %v3563 = vpack.c.b16 %v3439, %v3435
        %v3564 = vpack.c.b16 %v3440, %v3436
        %v3565 = vpack.c.b16 %v3445, %v3441
        %v3566 = vpack.c.b16 %v3446, %v3442
        %v3567 = vpack.c.b16 %v3447, %v3443
        %v3568 = vpack.c.b16 %v3448, %v3444
        %v3569 = vpack.c.b16 %v3453, %v3449
        %v3570 = vpack.c.b16 %v3454, %v3450
        %v3571 = vpack.c.b16 %v3455, %v3451
        %v3572 = vpack.c.b16 %v3456, %v3452
        %v3573 = vpack.c.b16 %v3461, %v3457
        %v3574 = vpack.c.b16 %v3462, %v3458
        %v3575 = vpack.c.b16 %v3463, %v3459
        %v3576 = vpack.c.b16 %v3464, %v3460
        %v3577 = vpack.c.b16 %v3469, %v3465
        %v3578 = vpack.c.b16 %v3470, %v3466
        %v3579 = vpack.c.b16 %v3471, %v3467
        %v3580 = vpack.c.b16 %v3472, %v3468
        %v3581 = vpack.c.b16 %v3477, %v3473
        %v3582 = vpack.c.b16 %v3478, %v3474
        %v3583 = vpack.c.b16 %v3479, %v3475
        %v3584 = vpack.c.b16 %v3480, %v3476
        %v3585 = vpack.c.b16 %v3485, %v3481
        %v3586 = vpack.c.b16 %v3486, %v3482
        %v3587 = vpack.c.b16 %v3487, %v3483
        %v3588 = vpack.c.b16 %v3488, %v3484
        %v3589 = vpack.c.b16 %v3493, %v3489
        %v3590 = vpack.c.b16 %v3494, %v3490
        %v3591 = vpack.c.b16 %v3495, %v3491
        %v3592 = vpack.c.b16 %v3496, %v3492
        %v3593 = vpack.c.b16 %v3501, %v3497
        %v3594 = vpack.c.b16 %v3502, %v3498
        %v3595 = vpack.c.b16 %v3503, %v3499
        %v3596 = vpack.c.b16 %v3504, %v3500
        %v3597 = vpack.c.b16 %v3509, %v3505
        %v3598 = vpack.c.b16 %v3510, %v3506
        %v3599 = vpack.c.b16 %v3511, %v3507
        %v3600 = vpack.c.b16 %v3512, %v3508
        %v3601 = vpack.c.b16 %v3517, %v3513
        %v3602 = vpack.c.b16 %v3518, %v3514
        %v3603 = vpack.c.b16 %v3519, %v3515
        %v3604 = vpack.c.b16 %v3520, %v3516
        %v3605 = vpack.c.b16 %v3525, %v3521
        %v3606 = vpack.c.b16 %v3526, %v3522
        %v3607 = vpack.c.b16 %v3527, %v3523
        %v3608 = vpack.c.b16 %v3528, %v3524
        %v3609 = vpack.c.b16 %v3533, %v3529
        %v3610 = vpack.c.b16 %v3534, %v3530
        %v3611 = vpack.c.b16 %v3535, %v3531
        %v3612 = vpack.c.b16 %v3536, %v3532
        %v3613 = vpack.c.b16 %v3541, %v3537
        %v3614 = vpack.c.b16 %v3542, %v3538
        %v3615 = vpack.c.b16 %v3543, %v3539
        %v3616 = vpack.c.b16 %v3544, %v3540
        %v3617 = vpack.c.b16 %v3549, %v3545
        %v3618 = vpack.c.b16 %v3550, %v3546
        %v3619 = vpack.c.b16 %v3551, %v3547
        %v3620 = vpack.c.b16 %v3552, %v3548
        %v3621 = vpack.c.b16 %v3557, %v3553
        %v3622 = vpack.c.b16 %v3558, %v3554
        %v3623 = vpack.c.b16 %v3559, %v3555
        %v3624 = vpack.c.b16 %v3560, %v3556
        %3689 = vmatprep.subr.bf16.mxu0 %v3562
        %3690 = vmatpush1.bf16.msra.mxu0 %v3561
        %3691 = vmatprep.subr.bf16.mxu0 %v3566
        %3692 = vmatpush1.bf16.msra.mxu0 %v3565
        %3693 = vmatprep.subr.bf16.mxu0 %v3570
        %3694 = vmatpush1.bf16.msra.mxu0 %v3569
        %3695 = vmatprep.subr.bf16.mxu0 %v3574
        %3696 = vmatpush1.bf16.msra.mxu0 %v3573
        %3697 = vmatprep.subr.bf16.mxu0 %v3578
        %3698 = vmatpush1.bf16.msra.mxu0 %v3577
        %3699 = vmatprep.subr.bf16.mxu0 %v3582
        %3700 = vmatpush1.bf16.msra.mxu0 %v3581
        %3701 = vmatprep.subr.bf16.mxu0 %v3586
        %3702 = vmatpush1.bf16.msra.mxu0 %v3585
        %3703 = vmatprep.subr.bf16.mxu0 %v3590
        %3704 = vmatpush1.bf16.msra.mxu0 %v3589
        %3705 = vmatprep.subr.bf16.mxu0 %v3594
        %3706 = vmatpush1.bf16.msra.mxu0 %v3593
        %3707 = vmatprep.subr.bf16.mxu0 %v3598
        %3708 = vmatpush1.bf16.msra.mxu0 %v3597
        %3709 = vmatprep.subr.bf16.mxu0 %v3602
        %3710 = vmatpush1.bf16.msra.mxu0 %v3601
        %3711 = vmatprep.subr.bf16.mxu0 %v3606
        %3712 = vmatpush1.bf16.msra.mxu0 %v3605
        %3713 = vmatprep.subr.bf16.mxu0 %v3610
        %3714 = vmatpush1.bf16.msra.mxu0 %v3609
        %3715 = vmatprep.subr.bf16.mxu0 %v3614
        %3716 = vmatpush1.bf16.msra.mxu0 %v3613
        %3717 = vmatprep.subr.bf16.mxu0 %v3618
        %3718 = vmatpush1.bf16.msra.mxu0 %v3617
        %3719 = vmatprep.subr.bf16.mxu0 %v3622
        %3720 = vmatpush1.bf16.msra.mxu0 %v3621
        %3721 = vmatprep.mubr.bf16.mxu0 %v3268
        %3722 = vmatmul.mubr.bf16.gmra.mrb[0].mxu0 %v3267
        %v3723 = vpop.f32.mrb[0].mxu0
        %v3724 = vadd.f32 %v3352, %v3723
        %v3725 = vpop.f32.mrb[0].mxu0
        %v3726 = vadd.f32 %v3356, %v3725
        %v3727 = vpop.f32.mrb[0].mxu0
        %v3728 = vadd.f32 %v3352, %v3727
        %v3729 = vpop.f32.mrb[0].mxu0
        %v3730 = vadd.f32 %v3356, %v3729
        %3731 = vmatprep.mubr.bf16.mxu0 %v3270
        %3732 = vmatmul.mubr.bf16.gmra.mrb[0].mxu0 %v3269
        %v3733 = vpop.f32.mrb[0].mxu0
        %v3734 = vadd.f32 %v3352, %v3733
        %v3735 = vpop.f32.mrb[0].mxu0
        %v3736 = vadd.f32 %v3356, %v3735
        %v3737 = vpop.f32.mrb[0].mxu0
        %v3738 = vadd.f32 %v3352, %v3737
        %v3739 = vpop.f32.mrb[0].mxu0
        %v3740 = vadd.f32 %v3356, %v3739
        %3741 = vmatprep.mubr.bf16.mxu0 %v3272
        %3742 = vmatmul.mubr.bf16.gmra.mrb[0].mxu0 %v3271
        %v3743 = vpop.f32.mrb[0].mxu0
        %v3744 = vadd.f32 %v3352, %v3743
        %v3745 = vpop.f32.mrb[0].mxu0
        %v3746 = vadd.f32 %v3356, %v3745
        %v3747 = vpop.f32.mrb[0].mxu0
        %v3748 = vadd.f32 %v3352, %v3747
        %v3749 = vpop.f32.mrb[0].mxu0
        %v3750 = vadd.f32 %v3356, %v3749
        %3751 = vmatprep.mubr.bf16.mxu0 %v3274
        %3752 = vmatmul.mubr.bf16.gmra.mrb[0].mxu0 %v3273
        %v3753 = vpop.f32.mrb[0].mxu0
        %v3754 = vadd.f32 %v3352, %v3753
        %v3755 = vpop.f32.mrb[0].mxu0
        %v3756 = vadd.f32 %v3356, %v3755
        %v3757 = vpop.f32.mrb[0].mxu0
        %v3758 = vadd.f32 %v3352, %v3757
        %v3759 = vpop.f32.mrb[0].mxu0
        %v3760 = vadd.f32 %v3356, %v3759
        %3761 = vmatprep.mubr.bf16.mxu0 %v3276
        %3762 = vmatmul.mubr.bf16.gmra.mrb[0].mxu0 %v3275
        %v3763 = vpop.f32.mrb[0].mxu0
        %v3764 = vadd.f32 %v3352, %v3763
        %v3765 = vpop.f32.mrb[0].mxu0
        %v3766 = vadd.f32 %v3356, %v3765
        %v3767 = vpop.f32.mrb[0].mxu0
        %v3768 = vadd.f32 %v3352, %v3767
        %v3769 = vpop.f32.mrb[0].mxu0
        %v3770 = vadd.f32 %v3356, %v3769
        %3771 = vmatprep.mubr.bf16.mxu0 %v3278
        %3772 = vmatmul.mubr.bf16.gmra.mrb[0].mxu0 %v3277
        %v3773 = vpop.f32.mrb[0].mxu0
        %v3774 = vadd.f32 %v3352, %v3773
        %v3775 = vpop.f32.mrb[0].mxu0
        %v3776 = vadd.f32 %v3356, %v3775
        %v3777 = vpop.f32.mrb[0].mxu0
        %v3778 = vadd.f32 %v3352, %v3777
        %v3779 = vpop.f32.mrb[0].mxu0
        %v3780 = vadd.f32 %v3356, %v3779
        %3781 = vmatprep.mubr.bf16.mxu0 %v3280
        %3782 = vmatmul.mubr.bf16.gmra.mrb[0].mxu0 %v3279
        %v3783 = vpop.f32.mrb[0].mxu0
        %v3784 = vadd.f32 %v3352, %v3783
        %v3785 = vpop.f32.mrb[0].mxu0
        %v3786 = vadd.f32 %v3356, %v3785
        %v3787 = vpop.f32.mrb[0].mxu0
        %v3788 = vadd.f32 %v3352, %v3787
        %v3789 = vpop.f32.mrb[0].mxu0
        %v3790 = vadd.f32 %v3356, %v3789
        %3791 = vmatprep.mubr.bf16.mxu0 %v3282
        %3792 = vmatmul.mubr.bf16.gmra.mrb[0].mxu0 %v3281
        %v3793 = vpop.f32.mrb[0].mxu0
        %v3794 = vadd.f32 %v3352, %v3793
        %v3795 = vpop.f32.mrb[0].mxu0
        %v3796 = vadd.f32 %v3356, %v3795
        %v3797 = vpop.f32.mrb[0].mxu0
        %v3798 = vadd.f32 %v3352, %v3797
        %v3799 = vpop.f32.mrb[0].mxu0
        %v3800 = vadd.f32 %v3356, %v3799
        %3801 = vdwg.mxu0
        %3802 = vmatprep.subr.bf16.mxu0 %v3564
        %3803 = vmatpush1.bf16.msra.mxu0 %v3563
        %3804 = vmatprep.subr.bf16.mxu0 %v3568
        %3805 = vmatpush1.bf16.msra.mxu0 %v3567
        %3806 = vmatprep.subr.bf16.mxu0 %v3572
        %3807 = vmatpush1.bf16.msra.mxu0 %v3571
        %3808 = vmatprep.subr.bf16.mxu0 %v3576
        %3809 = vmatpush1.bf16.msra.mxu0 %v3575
        %3810 = vmatprep.subr.bf16.mxu0 %v3580
        %3811 = vmatpush1.bf16.msra.mxu0 %v3579
        %3812 = vmatprep.subr.bf16.mxu0 %v3584
        %3813 = vmatpush1.bf16.msra.mxu0 %v3583
        %3814 = vmatprep.subr.bf16.mxu0 %v3588
        %3815 = vmatpush1.bf16.msra.mxu0 %v3587
        %3816 = vmatprep.subr.bf16.mxu0 %v3592
        %3817 = vmatpush1.bf16.msra.mxu0 %v3591
        %3818 = vmatprep.subr.bf16.mxu0 %v3596
        %3819 = vmatpush1.bf16.msra.mxu0 %v3595
        %3820 = vmatprep.subr.bf16.mxu0 %v3600
        %3821 = vmatpush1.bf16.msra.mxu0 %v3599
        %3822 = vmatprep.subr.bf16.mxu0 %v3604
        %3823 = vmatpush1.bf16.msra.mxu0 %v3603
        %3824 = vmatprep.subr.bf16.mxu0 %v3608
        %3825 = vmatpush1.bf16.msra.mxu0 %v3607
        %3826 = vmatprep.subr.bf16.mxu0 %v3612
        %3827 = vmatpush1.bf16.msra.mxu0 %v3611
        %3828 = vmatprep.subr.bf16.mxu0 %v3616
        %3829 = vmatpush1.bf16.msra.mxu0 %v3615
        %3830 = vmatprep.subr.bf16.mxu0 %v3620
        %3831 = vmatpush1.bf16.msra.mxu0 %v3619
        %3832 = vmatprep.subr.bf16.mxu0 %v3624
        %3833 = vmatpush1.bf16.msra.mxu0 %v3623
        %3834 = vmatprep.mubr.bf16.mxu0 %v3268
        %3835 = vmatmul.mubr.bf16.gmra.mrb[0].mxu0 %v3267
        %v3836 = vpop.f32.mrb[0].mxu0
        %v3837 = vadd.f32 %v3360, %v3836
        %v3838 = vpop.f32.mrb[0].mxu0
        %v3839 = vadd.f32 %v3364, %v3838
        %v3840 = vpop.f32.mrb[0].mxu0
        %v3841 = vadd.f32 %v3360, %v3840
        %v3842 = vpop.f32.mrb[0].mxu0
        %v3843 = vadd.f32 %v3364, %v3842
        %3844 = vmatprep.mubr.bf16.mxu0 %v3270
        %3845 = vmatmul.mubr.bf16.gmra.mrb[0].mxu0 %v3269
        %v3846 = vpop.f32.mrb[0].mxu0
        %v3847 = vadd.f32 %v3360, %v3846
        %v3848 = vpop.f32.mrb[0].mxu0
        %v3849 = vadd.f32 %v3364, %v3848
        %v3850 = vpop.f32.mrb[0].mxu0
        %v3851 = vadd.f32 %v3360, %v3850
        %v3852 = vpop.f32.mrb[0].mxu0
        %v3853 = vadd.f32 %v3364, %v3852
        %3854 = vmatprep.mubr.bf16.mxu0 %v3272
        %3855 = vmatmul.mubr.bf16.gmra.mrb[0].mxu0 %v3271
        %v3856 = vpop.f32.mrb[0].mxu0
        %v3857 = vadd.f32 %v3360, %v3856
        %v3858 = vpop.f32.mrb[0].mxu0
        %v3859 = vadd.f32 %v3364, %v3858
        %v3860 = vpop.f32.mrb[0].mxu0
        %v3861 = vadd.f32 %v3360, %v3860
        %v3862 = vpop.f32.mrb[0].mxu0
        %v3863 = vadd.f32 %v3364, %v3862
        %3864 = vmatprep.mubr.bf16.mxu0 %v3274
        %3865 = vmatmul.mubr.bf16.gmra.mrb[0].mxu0 %v3273
        %v3866 = vpop.f32.mrb[0].mxu0
        %v3867 = vadd.f32 %v3360, %v3866
        %v3868 = vpop.f32.mrb[0].mxu0
        %v3869 = vadd.f32 %v3364, %v3868
        %v3870 = vpop.f32.mrb[0].mxu0
        %v3871 = vadd.f32 %v3360, %v3870
        %v3872 = vpop.f32.mrb[0].mxu0
        %v3873 = vadd.f32 %v3364, %v3872
        %3874 = vmatprep.mubr.bf16.mxu0 %v3276
        %3875 = vmatmul.mubr.bf16.gmra.mrb[0].mxu0 %v3275
        %v3876 = vpop.f32.mrb[0].mxu0
        %v3877 = vadd.f32 %v3360, %v3876
        %v3878 = vpop.f32.mrb[0].mxu0
        %v3879 = vadd.f32 %v3364, %v3878
        %v3880 = vpop.f32.mrb[0].mxu0
        %v3881 = vadd.f32 %v3360, %v3880
        %v3882 = vpop.f32.mrb[0].mxu0
        %v3883 = vadd.f32 %v3364, %v3882
        %3884 = vmatprep.mubr.bf16.mxu0 %v3278
        %3885 = vmatmul.mubr.bf16.gmra.mrb[0].mxu0 %v3277
        %v3886 = vpop.f32.mrb[0].mxu0
        %v3887 = vadd.f32 %v3360, %v3886
        %v3888 = vpop.f32.mrb[0].mxu0
        %v3889 = vadd.f32 %v3364, %v3888
        %v3890 = vpop.f32.mrb[0].mxu0
        %v3891 = vadd.f32 %v3360, %v3890
        %v3892 = vpop.f32.mrb[0].mxu0
        %v3893 = vadd.f32 %v3364, %v3892
        %3894 = vmatprep.mubr.bf16.mxu0 %v3280
        %3895 = vmatmul.mubr.bf16.gmra.mrb[0].mxu0 %v3279
        %v3896 = vpop.f32.mrb[0].mxu0
        %v3897 = vadd.f32 %v3360, %v3896
        %v3898 = vpop.f32.mrb[0].mxu0
        %v3899 = vadd.f32 %v3364, %v3898
        %v3900 = vpop.f32.mrb[0].mxu0
        %v3901 = vadd.f32 %v3360, %v3900
        %v3902 = vpop.f32.mrb[0].mxu0
        %v3903 = vadd.f32 %v3364, %v3902
        %3904 = vmatprep.mubr.bf16.mxu0 %v3282
        %3905 = vmatmul.mubr.bf16.gmra.mrb[0].mxu0 %v3281
        %v3906 = vpop.f32.mrb[0].mxu0
        %v3907 = vadd.f32 %v3360, %v3906
        %v3908 = vpop.f32.mrb[0].mxu0
        %v3909 = vadd.f32 %v3364, %v3908
        %v3910 = vpop.f32.mrb[0].mxu0
        %v3911 = vadd.f32 %v3360, %v3910
        %v3912 = vpop.f32.mrb[0].mxu0
        %v3913 = vadd.f32 %v3364, %v3912
        %3914 = vdwg.mxu0
        %v3915 = vmul.f32 %v3724, 0.5
        %v3916 = vmul.f32 %v3726, 0.5
        %v3917 = vmul.f32 %v3837, 0.5
        %v3918 = vmul.f32 %v3839, 0.5
        %v3919 = vmul.f32 %v3728, 0.5
        %v3920 = vmul.f32 %v3730, 0.5
        %v3921 = vmul.f32 %v3841, 0.5
        %v3922 = vmul.f32 %v3843, 0.5
        %v3923 = vmul.f32 %v3734, 0.5
        %v3924 = vmul.f32 %v3736, 0.5
        %v3925 = vmul.f32 %v3847, 0.5
        %v3926 = vmul.f32 %v3849, 0.5
        %v3927 = vmul.f32 %v3738, 0.5
        %v3928 = vmul.f32 %v3740, 0.5
        %v3929 = vmul.f32 %v3851, 0.5
        %v3930 = vmul.f32 %v3853, 0.5
        %v3931 = vmul.f32 %v3744, 0.5
        %v3932 = vmul.f32 %v3746, 0.5
        %v3933 = vmul.f32 %v3857, 0.5
        %v3934 = vmul.f32 %v3859, 0.5
        %v3935 = vmul.f32 %v3748, 0.5
        %v3936 = vmul.f32 %v3750, 0.5
        %v3937 = vmul.f32 %v3861, 0.5
        %v3938 = vmul.f32 %v3863, 0.5
        %v3939 = vmul.f32 %v3754, 0.5
        %v3940 = vmul.f32 %v3756, 0.5
        %v3941 = vmul.f32 %v3867, 0.5
        %v3942 = vmul.f32 %v3869, 0.5
        %v3943 = vmul.f32 %v3758, 0.5
        %v3944 = vmul.f32 %v3760, 0.5
        %v3945 = vmul.f32 %v3871, 0.5
        %v3946 = vmul.f32 %v3873, 0.5
        %v3947 = vmul.f32 %v3764, 0.5
        %v3948 = vmul.f32 %v3766, 0.5
        %v3949 = vmul.f32 %v3877, 0.5
        %v3950 = vmul.f32 %v3879, 0.5
        %v3951 = vmul.f32 %v3768, 0.5
        %v3952 = vmul.f32 %v3770, 0.5
        %v3953 = vmul.f32 %v3881, 0.5
        %v3954 = vmul.f32 %v3883, 0.5
        %v3955 = vmul.f32 %v3774, 0.5
        %v3956 = vmul.f32 %v3776, 0.5
        %v3957 = vmul.f32 %v3887, 0.5
        %v3958 = vmul.f32 %v3889, 0.5
        %v3959 = vmul.f32 %v3778, 0.5
        %v3960 = vmul.f32 %v3780, 0.5
        %v3961 = vmul.f32 %v3891, 0.5
        %v3962 = vmul.f32 %v3893, 0.5
        %v3963 = vmul.f32 %v3784, 0.5
        %v3964 = vmul.f32 %v3786, 0.5
        %v3965 = vmul.f32 %v3897, 0.5
        %v3966 = vmul.f32 %v3899, 0.5
        %v3967 = vmul.f32 %v3788, 0.5
        %v3968 = vmul.f32 %v3790, 0.5
        %v3969 = vmul.f32 %v3901, 0.5
        %v3970 = vmul.f32 %v3903, 0.5
        %v3971 = vmul.f32 %v3794, 0.5
        %v3972 = vmul.f32 %v3796, 0.5
        %v3973 = vmul.f32 %v3907, 0.5
        %v3974 = vmul.f32 %v3909, 0.5
        %v3975 = vmul.f32 %v3798, 0.5
        %v3976 = vmul.f32 %v3800, 0.5
        %v3977 = vmul.f32 %v3911, 0.5
        %v3978 = vmul.f32 %v3913, 0.5
        %v3979 = vmul.f32 %v3724, 0.044715
        %v3980 = vmul.f32 %v3726, 0.044715
        %v3981 = vmul.f32 %v3837, 0.044715
        %v3982 = vmul.f32 %v3839, 0.044715
        %v3983 = vmul.f32 %v3728, 0.044715
        %v3984 = vmul.f32 %v3730, 0.044715
        %v3985 = vmul.f32 %v3841, 0.044715
        %v3986 = vmul.f32 %v3843, 0.044715
        %v3987 = vmul.f32 %v3734, 0.044715
        %v3988 = vmul.f32 %v3736, 0.044715
        %v3989 = vmul.f32 %v3847, 0.044715
        %v3990 = vmul.f32 %v3849, 0.044715
        %v3991 = vmul.f32 %v3738, 0.044715
        %v3992 = vmul.f32 %v3740, 0.044715
        %v3993 = vmul.f32 %v3851, 0.044715
        %v3994 = vmul.f32 %v3853, 0.044715
        %v3995 = vmul.f32 %v3744, 0.044715
        %v3996 = vmul.f32 %v3746, 0.044715
        %v3997 = vmul.f32 %v3857, 0.044715
        %v3998 = vmul.f32 %v3859, 0.044715
        %v3999 = vmul.f32 %v3748, 0.044715
        %v4000 = vmul.f32 %v3750, 0.044715
        %v4001 = vmul.f32 %v3861, 0.044715
        %v4002 = vmul.f32 %v3863, 0.044715
        %v4003 = vmul.f32 %v3754, 0.044715
        %v4004 = vmul.f32 %v3756, 0.044715
        %v4005 = vmul.f32 %v3867, 0.044715
        %v4006 = vmul.f32 %v3869, 0.044715
        %v4007 = vmul.f32 %v3758, 0.044715
        %v4008 = vmul.f32 %v3760, 0.044715
        %v4009 = vmul.f32 %v3871, 0.044715
        %v4010 = vmul.f32 %v3873, 0.044715
        %v4011 = vmul.f32 %v3764, 0.044715
        %v4012 = vmul.f32 %v3766, 0.044715
        %v4013 = vmul.f32 %v3877, 0.044715
        %v4014 = vmul.f32 %v3879, 0.044715
        %v4015 = vmul.f32 %v3768, 0.044715
        %v4016 = vmul.f32 %v3770, 0.044715
        %v4017 = vmul.f32 %v3881, 0.044715
        %v4018 = vmul.f32 %v3883, 0.044715
        %v4019 = vmul.f32 %v3774, 0.044715
        %v4020 = vmul.f32 %v3776, 0.044715
        %v4021 = vmul.f32 %v3887, 0.044715
        %v4022 = vmul.f32 %v3889, 0.044715
        %v4023 = vmul.f32 %v3778, 0.044715
        %v4024 = vmul.f32 %v3780, 0.044715
        %v4025 = vmul.f32 %v3891, 0.044715
        %v4026 = vmul.f32 %v3893, 0.044715
        %v4027 = vmul.f32 %v3784, 0.044715
        %v4028 = vmul.f32 %v3786, 0.044715
        %v4029 = vmul.f32 %v3897, 0.044715
        %v4030 = vmul.f32 %v3899, 0.044715
        %v4031 = vmul.f32 %v3788, 0.044715
        %v4032 = vmul.f32 %v3790, 0.044715
        %v4033 = vmul.f32 %v3901, 0.044715
        %v4034 = vmul.f32 %v3903, 0.044715
        %v4035 = vmul.f32 %v3794, 0.044715
        %v4036 = vmul.f32 %v3796, 0.044715
        %v4037 = vmul.f32 %v3907, 0.044715
        %v4038 = vmul.f32 %v3909, 0.044715
        %v4039 = vmul.f32 %v3798, 0.044715
        %v4040 = vmul.f32 %v3800, 0.044715
        %v4041 = vmul.f32 %v3911, 0.044715
        %v4042 = vmul.f32 %v3913, 0.044715
        %v4043 = vmul.f32 %v3979, %v3724
        %v4044 = vmul.f32 %v3980, %v3726
        %v4045 = vmul.f32 %v3981, %v3837
        %v4046 = vmul.f32 %v3982, %v3839
        %v4047 = vmul.f32 %v3983, %v3728
        %v4048 = vmul.f32 %v3984, %v3730
        %v4049 = vmul.f32 %v3985, %v3841
        %v4050 = vmul.f32 %v3986, %v3843
        %v4051 = vmul.f32 %v3987, %v3734
        %v4052 = vmul.f32 %v3988, %v3736
        %v4053 = vmul.f32 %v3989, %v3847
        %v4054 = vmul.f32 %v3990, %v3849
        %v4055 = vmul.f32 %v3991, %v3738
        %v4056 = vmul.f32 %v3992, %v3740
        %v4057 = vmul.f32 %v3993, %v3851
        %v4058 = vmul.f32 %v3994, %v3853
        %v4059 = vmul.f32 %v3995, %v3744
        %v4060 = vmul.f32 %v3996, %v3746
        %v4061 = vmul.f32 %v3997, %v3857
        %v4062 = vmul.f32 %v3998, %v3859
        %v4063 = vmul.f32 %v3999, %v3748
        %v4064 = vmul.f32 %v4000, %v3750
        %v4065 = vmul.f32 %v4001, %v3861
        %v4066 = vmul.f32 %v4002, %v3863
        %v4067 = vmul.f32 %v4003, %v3754
        %v4068 = vmul.f32 %v4004, %v3756
        %v4069 = vmul.f32 %v4005, %v3867
        %v4070 = vmul.f32 %v4006, %v3869
        %v4071 = vmul.f32 %v4007, %v3758
        %v4072 = vmul.f32 %v4008, %v3760
        %v4073 = vmul.f32 %v4009, %v3871
        %v4074 = vmul.f32 %v4010, %v3873
        %v4075 = vmul.f32 %v4011, %v3764
        %v4076 = vmul.f32 %v4012, %v3766
        %v4077 = vmul.f32 %v4013, %v3877
        %v4078 = vmul.f32 %v4014, %v3879
        %v4079 = vmul.f32 %v4015, %v3768
        %v4080 = vmul.f32 %v4016, %v3770
        %v4081 = vmul.f32 %v4017, %v3881
        %v4082 = vmul.f32 %v4018, %v3883
        %v4083 = vmul.f32 %v4019, %v3774
        %v4084 = vmul.f32 %v4020, %v3776
        %v4085 = vmul.f32 %v4021, %v3887
        %v4086 = vmul.f32 %v4022, %v3889
        %v4087 = vmul.f32 %v4023, %v3778
        %v4088 = vmul.f32 %v4024, %v3780
        %v4089 = vmul.f32 %v4025, %v3891
        %v4090 = vmul.f32 %v4026, %v3893
        %v4091 = vmul.f32 %v4027, %v3784
        %v4092 = vmul.f32 %v4028, %v3786
        %v4093 = vmul.f32 %v4029, %v3897
        %v4094 = vmul.f32 %v4030, %v3899
        %v4095 = vmul.f32 %v4031, %v3788
        %v4096 = vmul.f32 %v4032, %v3790
        %v4097 = vmul.f32 %v4033, %v3901
        %v4098 = vmul.f32 %v4034, %v3903
        %v4099 = vmul.f32 %v4035, %v3794
        %v4100 = vmul.f32 %v4036, %v3796
        %v4101 = vmul.f32 %v4037, %v3907
        %v4102 = vmul.f32 %v4038, %v3909
        %v4103 = vmul.f32 %v4039, %v3798
        %v4104 = vmul.f32 %v4040, %v3800
        %v4105 = vmul.f32 %v4041, %v3911
        %v4106 = vmul.f32 %v4042, %v3913
        %v4107 = vmul.f32 %v4043, %v3724
        %v4108 = vmul.f32 %v4044, %v3726
        %v4109 = vmul.f32 %v4045, %v3837
        %v4110 = vmul.f32 %v4046, %v3839
        %v4111 = vmul.f32 %v4047, %v3728
        %v4112 = vmul.f32 %v4048, %v3730
        %v4113 = vmul.f32 %v4049, %v3841
        %v4114 = vmul.f32 %v4050, %v3843
        %v4115 = vmul.f32 %v4051, %v3734
        %v4116 = vmul.f32 %v4052, %v3736
        %v4117 = vmul.f32 %v4053, %v3847
        %v4118 = vmul.f32 %v4054, %v3849
        %v4119 = vmul.f32 %v4055, %v3738
        %v4120 = vmul.f32 %v4056, %v3740
        %v4121 = vmul.f32 %v4057, %v3851
        %v4122 = vmul.f32 %v4058, %v3853
        %v4123 = vmul.f32 %v4059, %v3744
        %v4124 = vmul.f32 %v4060, %v3746
        %v4125 = vmul.f32 %v4061, %v3857
        %v4126 = vmul.f32 %v4062, %v3859
        %v4127 = vmul.f32 %v4063, %v3748
        %v4128 = vmul.f32 %v4064, %v3750
        %v4129 = vmul.f32 %v4065, %v3861
        %v4130 = vmul.f32 %v4066, %v3863
        %v4131 = vmul.f32 %v4067, %v3754
        %v4132 = vmul.f32 %v4068, %v3756
        %v4133 = vmul.f32 %v4069, %v3867
        %v4134 = vmul.f32 %v4070, %v3869
        %v4135 = vmul.f32 %v4071, %v3758
        %v4136 = vmul.f32 %v4072, %v3760
        %v4137 = vmul.f32 %v4073, %v3871
        %v4138 = vmul.f32 %v4074, %v3873
        %v4139 = vmul.f32 %v4075, %v3764
        %v4140 = vmul.f32 %v4076, %v3766
        %v4141 = vmul.f32 %v4077, %v3877
        %v4142 = vmul.f32 %v4078, %v3879
        %v4143 = vmul.f32 %v4079, %v3768
        %v4144 = vmul.f32 %v4080, %v3770
        %v4145 = vmul.f32 %v4081, %v3881
        %v4146 = vmul.f32 %v4082, %v3883
        %v4147 = vmul.f32 %v4083, %v3774
        %v4148 = vmul.f32 %v4084, %v3776
        %v4149 = vmul.f32 %v4085, %v3887
        %v4150 = vmul.f32 %v4086, %v3889
        %v4151 = vmul.f32 %v4087, %v3778
        %v4152 = vmul.f32 %v4088, %v3780
        %v4153 = vmul.f32 %v4089, %v3891
        %v4154 = vmul.f32 %v4090, %v3893
        %v4155 = vmul.f32 %v4091, %v3784
        %v4156 = vmul.f32 %v4092, %v3786
        %v4157 = vmul.f32 %v4093, %v3897
        %v4158 = vmul.f32 %v4094, %v3899
        %v4159 = vmul.f32 %v4095, %v3788
        %v4160 = vmul.f32 %v4096, %v3790
        %v4161 = vmul.f32 %v4097, %v3901
        %v4162 = vmul.f32 %v4098, %v3903
        %v4163 = vmul.f32 %v4099, %v3794
        %v4164 = vmul.f32 %v4100, %v3796
        %v4165 = vmul.f32 %v4101, %v3907
        %v4166 = vmul.f32 %v4102, %v3909
        %v4167 = vmul.f32 %v4103, %v3798
        %v4168 = vmul.f32 %v4104, %v3800
        %v4169 = vmul.f32 %v4105, %v3911
        %v4170 = vmul.f32 %v4106, %v3913
        %v4171 = vadd.f32 %v3724, %v4107
        %v4172 = vadd.f32 %v3726, %v4108
        %v4173 = vadd.f32 %v3837, %v4109
        %v4174 = vadd.f32 %v3839, %v4110
        %v4175 = vadd.f32 %v3728, %v4111
        %v4176 = vadd.f32 %v3730, %v4112
        %v4177 = vadd.f32 %v3841, %v4113
        %v4178 = vadd.f32 %v3843, %v4114
        %v4179 = vadd.f32 %v3734, %v4115
        %v4180 = vadd.f32 %v3736, %v4116
        %v4181 = vadd.f32 %v3847, %v4117
        %v4182 = vadd.f32 %v3849, %v4118
        %v4183 = vadd.f32 %v3738, %v4119
        %v4184 = vadd.f32 %v3740, %v4120
        %v4185 = vadd.f32 %v3851, %v4121
        %v4186 = vadd.f32 %v3853, %v4122
        %v4187 = vadd.f32 %v3744, %v4123
        %v4188 = vadd.f32 %v3746, %v4124
        %v4189 = vadd.f32 %v3857, %v4125
        %v4190 = vadd.f32 %v3859, %v4126
        %v4191 = vadd.f32 %v3748, %v4127
        %v4192 = vadd.f32 %v3750, %v4128
        %v4193 = vadd.f32 %v3861, %v4129
        %v4194 = vadd.f32 %v3863, %v4130
        %v4195 = vadd.f32 %v3754, %v4131
        %v4196 = vadd.f32 %v3756, %v4132
        %v4197 = vadd.f32 %v3867, %v4133
        %v4198 = vadd.f32 %v3869, %v4134
        %v4199 = vadd.f32 %v3758, %v4135
        %v4200 = vadd.f32 %v3760, %v4136
        %v4201 = vadd.f32 %v3871, %v4137
        %v4202 = vadd.f32 %v3873, %v4138
        %v4203 = vadd.f32 %v3764, %v4139
        %v4204 = vadd.f32 %v3766, %v4140
        %v4205 = vadd.f32 %v3877, %v4141
        %v4206 = vadd.f32 %v3879, %v4142
        %v4207 = vadd.f32 %v3768, %v4143
        %v4208 = vadd.f32 %v3770, %v4144
        %v4209 = vadd.f32 %v3881, %v4145
        %v4210 = vadd.f32 %v3883, %v4146
        %v4211 = vadd.f32 %v3774, %v4147
        %v4212 = vadd.f32 %v3776, %v4148
        %v4213 = vadd.f32 %v3887, %v4149
        %v4214 = vadd.f32 %v3889, %v4150
        %v4215 = vadd.f32 %v3778, %v4151
        %v4216 = vadd.f32 %v3780, %v4152
        %v4217 = vadd.f32 %v3891, %v4153
        %v4218 = vadd.f32 %v3893, %v4154
        %v4219 = vadd.f32 %v3784, %v4155
        %v4220 = vadd.f32 %v3786, %v4156
        %v4221 = vadd.f32 %v3897, %v4157
        %v4222 = vadd.f32 %v3899, %v4158
        %v4223 = vadd.f32 %v3788, %v4159
        %v4224 = vadd.f32 %v3790, %v4160
        %v4225 = vadd.f32 %v3901, %v4161
        %v4226 = vadd.f32 %v3903, %v4162
        %v4227 = vadd.f32 %v3794, %v4163
        %v4228 = vadd.f32 %v3796, %v4164
        %v4229 = vadd.f32 %v3907, %v4165
        %v4230 = vadd.f32 %v3909, %v4166
        %v4231 = vadd.f32 %v3798, %v4167
        %v4232 = vadd.f32 %v3800, %v4168
        %v4233 = vadd.f32 %v3911, %v4169
        %v4234 = vadd.f32 %v3913, %v4170
        %v4235 = vmul.f32 %v4171, 0.7978846
        %v4236 = vmul.f32 %v4172, 0.7978846
        %v4237 = vmul.f32 %v4173, 0.7978846
        %v4238 = vmul.f32 %v4174, 0.7978846
        %v4239 = vmul.f32 %v4175, 0.7978846
        %v4240 = vmul.f32 %v4176, 0.7978846
        %v4241 = vmul.f32 %v4177, 0.7978846
        %v4242 = vmul.f32 %v4178, 0.7978846
        %v4243 = vmul.f32 %v4179, 0.7978846
        %v4244 = vmul.f32 %v4180, 0.7978846
        %v4245 = vmul.f32 %v4181, 0.7978846
        %v4246 = vmul.f32 %v4182, 0.7978846
        %v4247 = vmul.f32 %v4183, 0.7978846
        %v4248 = vmul.f32 %v4184, 0.7978846
        %v4249 = vmul.f32 %v4185, 0.7978846
        %v4250 = vmul.f32 %v4186, 0.7978846
        %v4251 = vmul.f32 %v4187, 0.7978846
        %v4252 = vmul.f32 %v4188, 0.7978846
        %v4253 = vmul.f32 %v4189, 0.7978846
        %v4254 = vmul.f32 %v4190, 0.7978846
        %v4255 = vmul.f32 %v4191, 0.7978846
        %v4256 = vmul.f32 %v4192, 0.7978846
        %v4257 = vmul.f32 %v4193, 0.7978846
        %v4258 = vmul.f32 %v4194, 0.7978846
        %v4259 = vmul.f32 %v4195, 0.7978846
        %v4260 = vmul.f32 %v4196, 0.7978846
        %v4261 = vmul.f32 %v4197, 0.7978846
        %v4262 = vmul.f32 %v4198, 0.7978846
        %v4263 = vmul.f32 %v4199, 0.7978846
        %v4264 = vmul.f32 %v4200, 0.7978846
        %v4265 = vmul.f32 %v4201, 0.7978846
        %v4266 = vmul.f32 %v4202, 0.7978846
        %v4267 = vmul.f32 %v4203, 0.7978846
        %v4268 = vmul.f32 %v4204, 0.7978846
        %v4269 = vmul.f32 %v4205, 0.7978846
        %v4270 = vmul.f32 %v4206, 0.7978846
        %v4271 = vmul.f32 %v4207, 0.7978846
        %v4272 = vmul.f32 %v4208, 0.7978846
        %v4273 = vmul.f32 %v4209, 0.7978846
        %v4274 = vmul.f32 %v4210, 0.7978846
        %v4275 = vmul.f32 %v4211, 0.7978846
        %v4276 = vmul.f32 %v4212, 0.7978846
        %v4277 = vmul.f32 %v4213, 0.7978846
        %v4278 = vmul.f32 %v4214, 0.7978846
        %v4279 = vmul.f32 %v4215, 0.7978846
        %v4280 = vmul.f32 %v4216, 0.7978846
        %v4281 = vmul.f32 %v4217, 0.7978846
        %v4282 = vmul.f32 %v4218, 0.7978846
        %v4283 = vmul.f32 %v4219, 0.7978846
        %v4284 = vmul.f32 %v4220, 0.7978846
        %v4285 = vmul.f32 %v4221, 0.7978846
        %v4286 = vmul.f32 %v4222, 0.7978846
        %v4287 = vmul.f32 %v4223, 0.7978846
        %v4288 = vmul.f32 %v4224, 0.7978846
        %v4289 = vmul.f32 %v4225, 0.7978846
        %v4290 = vmul.f32 %v4226, 0.7978846
        %v4291 = vmul.f32 %v4227, 0.7978846
        %v4292 = vmul.f32 %v4228, 0.7978846
        %v4293 = vmul.f32 %v4229, 0.7978846
        %v4294 = vmul.f32 %v4230, 0.7978846
        %v4295 = vmul.f32 %v4231, 0.7978846
        %v4296 = vmul.f32 %v4232, 0.7978846
        %v4297 = vmul.f32 %v4233, 0.7978846
        %v4298 = vmul.f32 %v4234, 0.7978846
        %v4299 = vtanh.pop %v4235
        %v4300 = vtanh.pop %v4236
        %v4301 = vtanh.pop %v4237
        %v4302 = vtanh.pop %v4238
        %v4303 = vtanh.pop %v4239
        %v4304 = vtanh.pop %v4240
        %v4305 = vtanh.pop %v4241
        %v4306 = vtanh.pop %v4242
        %v4307 = vtanh.pop %v4243
        %v4308 = vtanh.pop %v4244
        %v4309 = vtanh.pop %v4245
        %v4310 = vtanh.pop %v4246
        %v4311 = vtanh.pop %v4247
        %v4312 = vtanh.pop %v4248
        %v4313 = vtanh.pop %v4249
        %v4314 = vtanh.pop %v4250
        %v4315 = vtanh.pop %v4251
        %v4316 = vtanh.pop %v4252
        %v4317 = vtanh.pop %v4253
        %v4318 = vtanh.pop %v4254
        %v4319 = vtanh.pop %v4255
        %v4320 = vtanh.pop %v4256
        %v4321 = vtanh.pop %v4257
        %v4322 = vtanh.pop %v4258
        %v4323 = vtanh.pop %v4259
        %v4324 = vtanh.pop %v4260
        %v4325 = vtanh.pop %v4261
        %v4326 = vtanh.pop %v4262
        %v4327 = vtanh.pop %v4263
        %v4328 = vtanh.pop %v4264
        %v4329 = vtanh.pop %v4265
        %v4330 = vtanh.pop %v4266
        %v4331 = vtanh.pop %v4267
        %v4332 = vtanh.pop %v4268
        %v4333 = vtanh.pop %v4269
        %v4334 = vtanh.pop %v4270
        %v4335 = vtanh.pop %v4271
        %v4336 = vtanh.pop %v4272
        %v4337 = vtanh.pop %v4273
        %v4338 = vtanh.pop %v4274
        %v4339 = vtanh.pop %v4275
        %v4340 = vtanh.pop %v4276
        %v4341 = vtanh.pop %v4277
        %v4342 = vtanh.pop %v4278
        %v4343 = vtanh.pop %v4279
        %v4344 = vtanh.pop %v4280
        %v4345 = vtanh.pop %v4281
        %v4346 = vtanh.pop %v4282
        %v4347 = vtanh.pop %v4283
        %v4348 = vtanh.pop %v4284
        %v4349 = vtanh.pop %v4285
        %v4350 = vtanh.pop %v4286
        %v4351 = vtanh.pop %v4287
        %v4352 = vtanh.pop %v4288
        %v4353 = vtanh.pop %v4289
        %v4354 = vtanh.pop %v4290
        %v4355 = vtanh.pop %v4291
        %v4356 = vtanh.pop %v4292
        %v4357 = vtanh.pop %v4293
        %v4358 = vtanh.pop %v4294
        %v4359 = vtanh.pop %v4295
        %v4360 = vtanh.pop %v4296
        %v4361 = vtanh.pop %v4297
        %v4362 = vtanh.pop %v4298
        %v4363 = vadd.f32 %v4299, 1.0
        %v4364 = vadd.f32 %v4300, 1.0
        %v4365 = vadd.f32 %v4301, 1.0
        %v4366 = vadd.f32 %v4302, 1.0
        %v4367 = vadd.f32 %v4303, 1.0
        %v4368 = vadd.f32 %v4304, 1.0
        %v4369 = vadd.f32 %v4305, 1.0
        %v4370 = vadd.f32 %v4306, 1.0
        %v4371 = vadd.f32 %v4307, 1.0
        %v4372 = vadd.f32 %v4308, 1.0
        %v4373 = vadd.f32 %v4309, 1.0
        %v4374 = vadd.f32 %v4310, 1.0
        %v4375 = vadd.f32 %v4311, 1.0
        %v4376 = vadd.f32 %v4312, 1.0
        %v4377 = vadd.f32 %v4313, 1.0
        %v4378 = vadd.f32 %v4314, 1.0
        %v4379 = vadd.f32 %v4315, 1.0
        %v4380 = vadd.f32 %v4316, 1.0
        %v4381 = vadd.f32 %v4317, 1.0
        %v4382 = vadd.f32 %v4318, 1.0
        %v4383 = vadd.f32 %v4319, 1.0
        %v4384 = vadd.f32 %v4320, 1.0
        %v4385 = vadd.f32 %v4321, 1.0
        %v4386 = vadd.f32 %v4322, 1.0
        %v4387 = vadd.f32 %v4323, 1.0
        %v4388 = vadd.f32 %v4324, 1.0
        %v4389 = vadd.f32 %v4325, 1.0
        %v4390 = vadd.f32 %v4326, 1.0
        %v4391 = vadd.f32 %v4327, 1.0
        %v4392 = vadd.f32 %v4328, 1.0
        %v4393 = vadd.f32 %v4329, 1.0
        %v4394 = vadd.f32 %v4330, 1.0
        %v4395 = vadd.f32 %v4331, 1.0
        %v4396 = vadd.f32 %v4332, 1.0
        %v4397 = vadd.f32 %v4333, 1.0
        %v4398 = vadd.f32 %v4334, 1.0
        %v4399 = vadd.f32 %v4335, 1.0
        %v4400 = vadd.f32 %v4336, 1.0
        %v4401 = vadd.f32 %v4337, 1.0
        %v4402 = vadd.f32 %v4338, 1.0
        %v4403 = vadd.f32 %v4339, 1.0
        %v4404 = vadd.f32 %v4340, 1.0
        %v4405 = vadd.f32 %v4341, 1.0
        %v4406 = vadd.f32 %v4342, 1.0
        %v4407 = vadd.f32 %v4343, 1.0
        %v4408 = vadd.f32 %v4344, 1.0
        %v4409 = vadd.f32 %v4345, 1.0
        %v4410 = vadd.f32 %v4346, 1.0
        %v4411 = vadd.f32 %v4347, 1.0
        %v4412 = vadd.f32 %v4348, 1.0
        %v4413 = vadd.f32 %v4349, 1.0
        %v4414 = vadd.f32 %v4350, 1.0
        %v4415 = vadd.f32 %v4351, 1.0
        %v4416 = vadd.f32 %v4352, 1.0
        %v4417 = vadd.f32 %v4353, 1.0
        %v4418 = vadd.f32 %v4354, 1.0
        %v4419 = vadd.f32 %v4355, 1.0
        %v4420 = vadd.f32 %v4356, 1.0
        %v4421 = vadd.f32 %v4357, 1.0
        %v4422 = vadd.f32 %v4358, 1.0
        %v4423 = vadd.f32 %v4359, 1.0
        %v4424 = vadd.f32 %v4360, 1.0
        %v4425 = vadd.f32 %v4361, 1.0
        %v4426 = vadd.f32 %v4362, 1.0
        %v4427 = vmul.f32 %v3915, %v4363
        %v4428 = vmul.f32 %v3916, %v4364
        %v4429 = vmul.f32 %v3917, %v4365
        %v4430 = vmul.f32 %v3918, %v4366
        %v4431 = vmul.f32 %v3919, %v4367
        %v4432 = vmul.f32 %v3920, %v4368
        %v4433 = vmul.f32 %v3921, %v4369
        %v4434 = vmul.f32 %v3922, %v4370
        %v4435 = vmul.f32 %v3923, %v4371
        %v4436 = vmul.f32 %v3924, %v4372
        %v4437 = vmul.f32 %v3925, %v4373
        %v4438 = vmul.f32 %v3926, %v4374
        %v4439 = vmul.f32 %v3927, %v4375
        %v4440 = vmul.f32 %v3928, %v4376
        %v4441 = vmul.f32 %v3929, %v4377
        %v4442 = vmul.f32 %v3930, %v4378
        %v4443 = vmul.f32 %v3931, %v4379
        %v4444 = vmul.f32 %v3932, %v4380
        %v4445 = vmul.f32 %v3933, %v4381
        %v4446 = vmul.f32 %v3934, %v4382
        %v4447 = vmul.f32 %v3935, %v4383
        %v4448 = vmul.f32 %v3936, %v4384
        %v4449 = vmul.f32 %v3937, %v4385
        %v4450 = vmul.f32 %v3938, %v4386
        %v4451 = vmul.f32 %v3939, %v4387
        %v4452 = vmul.f32 %v3940, %v4388
        %v4453 = vmul.f32 %v3941, %v4389
        %v4454 = vmul.f32 %v3942, %v4390
        %v4455 = vmul.f32 %v3943, %v4391
        %v4456 = vmul.f32 %v3944, %v4392
        %v4457 = vmul.f32 %v3945, %v4393
        %v4458 = vmul.f32 %v3946, %v4394
        %v4459 = vmul.f32 %v3947, %v4395
        %v4460 = vmul.f32 %v3948, %v4396
        %v4461 = vmul.f32 %v3949, %v4397
        %v4462 = vmul.f32 %v3950, %v4398
        %v4463 = vmul.f32 %v3951, %v4399
        %v4464 = vmul.f32 %v3952, %v4400
        %v4465 = vmul.f32 %v3953, %v4401
        %v4466 = vmul.f32 %v3954, %v4402
        %v4467 = vmul.f32 %v3955, %v4403
        %v4468 = vmul.f32 %v3956, %v4404
        %v4469 = vmul.f32 %v3957, %v4405
        %v4470 = vmul.f32 %v3958, %v4406
        %v4471 = vmul.f32 %v3959, %v4407
        %v4472 = vmul.f32 %v3960, %v4408
        %v4473 = vmul.f32 %v3961, %v4409
        %v4474 = vmul.f32 %v3962, %v4410
        %v4475 = vmul.f32 %v3963, %v4411
        %v4476 = vmul.f32 %v3964, %v4412
        %v4477 = vmul.f32 %v3965, %v4413
        %v4478 = vmul.f32 %v3966, %v4414
        %v4479 = vmul.f32 %v3967, %v4415
        %v4480 = vmul.f32 %v3968, %v4416
        %v4481 = vmul.f32 %v3969, %v4417
        %v4482 = vmul.f32 %v3970, %v4418
        %v4483 = vmul.f32 %v3971, %v4419
        %v4484 = vmul.f32 %v3972, %v4420
        %v4485 = vmul.f32 %v3973, %v4421
        %v4486 = vmul.f32 %v3974, %v4422
        %v4487 = vmul.f32 %v3975, %v4423
        %v4488 = vmul.f32 %v3976, %v4424
        %v4489 = vmul.f32 %v3977, %v4425
        %v4490 = vmul.f32 %v3978, %v4426
        %v4491 = vpack.c.bf16 %v4431, %v4427
        %v4492 = vpack.c.bf16 %v4432, %v4428
        %v4493 = vpack.c.bf16 %v4433, %v4429
        %v4494 = vpack.c.bf16 %v4434, %v4430
        %v4495 = vpack.c.bf16 %v4439, %v4435
        %v4496 = vpack.c.bf16 %v4440, %v4436
        %v4497 = vpack.c.bf16 %v4441, %v4437
        %v4498 = vpack.c.bf16 %v4442, %v4438
        %v4499 = vpack.c.bf16 %v4447, %v4443
        %v4500 = vpack.c.bf16 %v4448, %v4444
        %v4501 = vpack.c.bf16 %v4449, %v4445
        %v4502 = vpack.c.bf16 %v4450, %v4446
        %v4503 = vpack.c.bf16 %v4455, %v4451
        %v4504 = vpack.c.bf16 %v4456, %v4452
        %v4505 = vpack.c.bf16 %v4457, %v4453
        %v4506 = vpack.c.bf16 %v4458, %v4454
        %v4507 = vpack.c.bf16 %v4463, %v4459
        %v4508 = vpack.c.bf16 %v4464, %v4460
        %v4509 = vpack.c.bf16 %v4465, %v4461
        %v4510 = vpack.c.bf16 %v4466, %v4462
        %v4511 = vpack.c.bf16 %v4471, %v4467
        %v4512 = vpack.c.bf16 %v4472, %v4468
        %v4513 = vpack.c.bf16 %v4473, %v4469
        %v4514 = vpack.c.bf16 %v4474, %v4470
        %v4515 = vpack.c.bf16 %v4479, %v4475
        %v4516 = vpack.c.bf16 %v4480, %v4476
        %v4517 = vpack.c.bf16 %v4481, %v4477
        %v4518 = vpack.c.bf16 %v4482, %v4478
        %v4519 = vpack.c.bf16 %v4487, %v4483
        %v4520 = vpack.c.bf16 %v4488, %v4484
        %v4521 = vpack.c.bf16 %v4489, %v4485
        %v4522 = vpack.c.bf16 %v4490, %v4486
        %v4523 = vld [vmem:[#allocation10] sm:$0xff]
        %v4524 = vld [vmem:[#allocation10 + $0x8] sm:$0xff]
        %v4525 = vld [vmem:[#allocation10 + $0x10] sm:$0xff]
        %v4526 = vld [vmem:[#allocation10 + $0x18] sm:$0xff]
        %v4527 = vld [vmem:[#allocation10 + $0x20] sm:$0xff]
        %v4528 = vld [vmem:[#allocation10 + $0x28] sm:$0xff]
        %v4529 = vld [vmem:[#allocation10 + $0x30] sm:$0xff]
        %v4530 = vld [vmem:[#allocation10 + $0x38] sm:$0xff]
        %v4531 = vld [vmem:[#allocation10 + $0x40] sm:$0xff]
        %v4532 = vld [vmem:[#allocation10 + $0x48] sm:$0xff]
        %v4533 = vld [vmem:[#allocation10 + $0x50] sm:$0xff]
        %v4534 = vld [vmem:[#allocation10 + $0x58] sm:$0xff]
        %v4535 = vld [vmem:[#allocation10 + $0x60] sm:$0xff]
        %v4536 = vld [vmem:[#allocation10 + $0x68] sm:$0xff]
        %v4537 = vld [vmem:[#allocation10 + $0x70] sm:$0xff]
        %v4538 = vld [vmem:[#allocation10 + $0x78] sm:$0xff]
        %v4539 = vld [vmem:[#allocation10 + $0x80] sm:$0xff]
        %v4540 = vld [vmem:[#allocation10 + $0x88] sm:$0xff]
        %v4541 = vld [vmem:[#allocation10 + $0x90] sm:$0xff]
        %v4542 = vld [vmem:[#allocation10 + $0x98] sm:$0xff]
        %v4543 = vld [vmem:[#allocation10 + $0xa0] sm:$0xff]
        %v4544 = vld [vmem:[#allocation10 + $0xa8] sm:$0xff]
        %v4545 = vld [vmem:[#allocation10 + $0xb0] sm:$0xff]
        %v4546 = vld [vmem:[#allocation10 + $0xb8] sm:$0xff]
        %v4547 = vld [vmem:[#allocation10 + $0xc0] sm:$0xff]
        %v4548 = vld [vmem:[#allocation10 + $0xc8] sm:$0xff]
        %v4549 = vld [vmem:[#allocation10 + $0xd0] sm:$0xff]
        %v4550 = vld [vmem:[#allocation10 + $0xd8] sm:$0xff]
        %v4551 = vld [vmem:[#allocation10 + $0xe0] sm:$0xff]
        %v4552 = vld [vmem:[#allocation10 + $0xe8] sm:$0xff]
        %v4553 = vld [vmem:[#allocation10 + $0xf0] sm:$0xff]
        %v4554 = vld [vmem:[#allocation10 + $0xf8] sm:$0xff]
        %v4555 = vld [vmem:[#allocation10 + $0x100] sm:$0xff]
        %v4556 = vld [vmem:[#allocation10 + $0x108] sm:$0xff]
        %v4557 = vld [vmem:[#allocation10 + $0x110] sm:$0xff]
        %v4558 = vld [vmem:[#allocation10 + $0x118] sm:$0xff]
        %v4559 = vld [vmem:[#allocation10 + $0x120] sm:$0xff]
        %v4560 = vld [vmem:[#allocation10 + $0x128] sm:$0xff]
        %v4561 = vld [vmem:[#allocation10 + $0x130] sm:$0xff]
        %v4562 = vld [vmem:[#allocation10 + $0x138] sm:$0xff]
        %v4563 = vld [vmem:[#allocation10 + $0x140] sm:$0xff]
        %v4564 = vld [vmem:[#allocation10 + $0x148] sm:$0xff]
        %v4565 = vld [vmem:[#allocation10 + $0x150] sm:$0xff]
        %v4566 = vld [vmem:[#allocation10 + $0x158] sm:$0xff]
        %v4567 = vld [vmem:[#allocation10 + $0x160] sm:$0xff]
        %v4568 = vld [vmem:[#allocation10 + $0x168] sm:$0xff]
        %v4569 = vld [vmem:[#allocation10 + $0x170] sm:$0xff]
        %v4570 = vld [vmem:[#allocation10 + $0x178] sm:$0xff]
        %v4571 = vld [vmem:[#allocation10 + $0x180] sm:$0xff]
        %v4572 = vld [vmem:[#allocation10 + $0x188] sm:$0xff]
        %v4573 = vld [vmem:[#allocation10 + $0x190] sm:$0xff]
        %v4574 = vld [vmem:[#allocation10 + $0x198] sm:$0xff]
        %v4575 = vld [vmem:[#allocation10 + $0x1a0] sm:$0xff]
        %v4576 = vld [vmem:[#allocation10 + $0x1a8] sm:$0xff]
        %v4577 = vld [vmem:[#allocation10 + $0x1b0] sm:$0xff]
        %v4578 = vld [vmem:[#allocation10 + $0x1b8] sm:$0xff]
        %v4579 = vld [vmem:[#allocation10 + $0x1c0] sm:$0xff]
        %v4580 = vld [vmem:[#allocation10 + $0x1c8] sm:$0xff]
        %v4581 = vld [vmem:[#allocation10 + $0x1d0] sm:$0xff]
        %v4582 = vld [vmem:[#allocation10 + $0x1d8] sm:$0xff]
        %v4583 = vld [vmem:[#allocation10 + $0x1e0] sm:$0xff]
        %v4584 = vld [vmem:[#allocation10 + $0x1e8] sm:$0xff]
        %v4585 = vld [vmem:[#allocation10 + $0x1f0] sm:$0xff]
        %v4586 = vld [vmem:[#allocation10 + $0x1f8] sm:$0xff]
        %s4587 = scalar_lea.vmem [#allocation11], 16
        %v4588 = vld [vmem:[%s4587] ss:$8 sm:$0x3]
        %v4590 = vlaneseq
        %v4591 = vshrl.u32 %v4590, 7
        %v4592 = vsub.s32 0, %v4591
        %v4593 = vrot.slane %v4588, %v4592
        %v4594 = vlaneseq
        %v4595 = vshrl.u32 %v4594, 7
        %v4596 = vsub.s32 1, %v4595
        %v4597 = vrot.slane %v4588, %v4596
        %v4664 = vunpack.c.l.b16 %v4523
        %v4665 = vunpack.c.h.b16 %v4523
        %v4666 = vunpack.c.l.b16 %v4524
        %v4667 = vunpack.c.h.b16 %v4524
        %v4668 = vunpack.c.l.b16 %v4525
        %v4669 = vunpack.c.h.b16 %v4525
        %v4670 = vunpack.c.l.b16 %v4526
        %v4671 = vunpack.c.h.b16 %v4526
        %v4672 = vunpack.c.l.b16 %v4527
        %v4673 = vunpack.c.h.b16 %v4527
        %v4674 = vunpack.c.l.b16 %v4528
        %v4675 = vunpack.c.h.b16 %v4528
        %v4676 = vunpack.c.l.b16 %v4529
        %v4677 = vunpack.c.h.b16 %v4529
        %v4678 = vunpack.c.l.b16 %v4530
        %v4679 = vunpack.c.h.b16 %v4530
        %v4680 = vunpack.c.l.b16 %v4531
        %v4681 = vunpack.c.h.b16 %v4531
        %v4682 = vunpack.c.l.b16 %v4532
        %v4683 = vunpack.c.h.b16 %v4532
        %v4684 = vunpack.c.l.b16 %v4533
        %v4685 = vunpack.c.h.b16 %v4533
        %v4686 = vunpack.c.l.b16 %v4534
        %v4687 = vunpack.c.h.b16 %v4534
        %v4688 = vunpack.c.l.b16 %v4535
        %v4689 = vunpack.c.h.b16 %v4535
        %v4690 = vunpack.c.l.b16 %v4536
        %v4691 = vunpack.c.h.b16 %v4536
        %v4692 = vunpack.c.l.b16 %v4537
        %v4693 = vunpack.c.h.b16 %v4537
        %v4694 = vunpack.c.l.b16 %v4538
        %v4695 = vunpack.c.h.b16 %v4538
        %v4696 = vunpack.c.l.b16 %v4539
        %v4697 = vunpack.c.h.b16 %v4539
        %v4698 = vunpack.c.l.b16 %v4540
        %v4699 = vunpack.c.h.b16 %v4540
        %v4700 = vunpack.c.l.b16 %v4541
        %v4701 = vunpack.c.h.b16 %v4541
        %v4702 = vunpack.c.l.b16 %v4542
        %v4703 = vunpack.c.h.b16 %v4542
        %v4704 = vunpack.c.l.b16 %v4543
        %v4705 = vunpack.c.h.b16 %v4543
        %v4706 = vunpack.c.l.b16 %v4544
        %v4707 = vunpack.c.h.b16 %v4544
        %v4708 = vunpack.c.l.b16 %v4545
        %v4709 = vunpack.c.h.b16 %v4545
        %v4710 = vunpack.c.l.b16 %v4546
        %v4711 = vunpack.c.h.b16 %v4546
        %v4712 = vunpack.c.l.b16 %v4547
        %v4713 = vunpack.c.h.b16 %v4547
        %v4714 = vunpack.c.l.b16 %v4548
        %v4715 = vunpack.c.h.b16 %v4548
        %v4716 = vunpack.c.l.b16 %v4549
        %v4717 = vunpack.c.h.b16 %v4549
        %v4718 = vunpack.c.l.b16 %v4550
        %v4719 = vunpack.c.h.b16 %v4550
        %v4720 = vunpack.c.l.b16 %v4551
        %v4721 = vunpack.c.h.b16 %v4551
        %v4722 = vunpack.c.l.b16 %v4552
        %v4723 = vunpack.c.h.b16 %v4552
        %v4724 = vunpack.c.l.b16 %v4553
        %v4725 = vunpack.c.h.b16 %v4553
        %v4726 = vunpack.c.l.b16 %v4554
        %v4727 = vunpack.c.h.b16 %v4554
        %v4728 = vunpack.c.l.b16 %v4555
        %v4729 = vunpack.c.h.b16 %v4555
        %v4730 = vunpack.c.l.b16 %v4556
        %v4731 = vunpack.c.h.b16 %v4556
        %v4732 = vunpack.c.l.b16 %v4557
        %v4733 = vunpack.c.h.b16 %v4557
        %v4734 = vunpack.c.l.b16 %v4558
        %v4735 = vunpack.c.h.b16 %v4558
        %v4736 = vunpack.c.l.b16 %v4559
        %v4737 = vunpack.c.h.b16 %v4559
        %v4738 = vunpack.c.l.b16 %v4560
        %v4739 = vunpack.c.h.b16 %v4560
        %v4740 = vunpack.c.l.b16 %v4561
        %v4741 = vunpack.c.h.b16 %v4561
        %v4742 = vunpack.c.l.b16 %v4562
        %v4743 = vunpack.c.h.b16 %v4562
        %v4744 = vunpack.c.l.b16 %v4563
        %v4745 = vunpack.c.h.b16 %v4563
        %v4746 = vunpack.c.l.b16 %v4564
        %v4747 = vunpack.c.h.b16 %v4564
        %v4748 = vunpack.c.l.b16 %v4565
        %v4749 = vunpack.c.h.b16 %v4565
        %v4750 = vunpack.c.l.b16 %v4566
        %v4751 = vunpack.c.h.b16 %v4566
        %v4752 = vunpack.c.l.b16 %v4567
        %v4753 = vunpack.c.h.b16 %v4567
        %v4754 = vunpack.c.l.b16 %v4568
        %v4755 = vunpack.c.h.b16 %v4568
        %v4756 = vunpack.c.l.b16 %v4569
        %v4757 = vunpack.c.h.b16 %v4569
        %v4758 = vunpack.c.l.b16 %v4570
        %v4759 = vunpack.c.h.b16 %v4570
        %v4760 = vunpack.c.l.b16 %v4571
        %v4761 = vunpack.c.h.b16 %v4571
        %v4762 = vunpack.c.l.b16 %v4572
        %v4763 = vunpack.c.h.b16 %v4572
        %v4764 = vunpack.c.l.b16 %v4573
        %v4765 = vunpack.c.h.b16 %v4573
        %v4766 = vunpack.c.l.b16 %v4574
        %v4767 = vunpack.c.h.b16 %v4574
        %v4768 = vunpack.c.l.b16 %v4575
        %v4769 = vunpack.c.h.b16 %v4575
        %v4770 = vunpack.c.l.b16 %v4576
        %v4771 = vunpack.c.h.b16 %v4576
        %v4772 = vunpack.c.l.b16 %v4577
        %v4773 = vunpack.c.h.b16 %v4577
        %v4774 = vunpack.c.l.b16 %v4578
        %v4775 = vunpack.c.h.b16 %v4578
        %v4776 = vunpack.c.l.b16 %v4579
        %v4777 = vunpack.c.h.b16 %v4579
        %v4778 = vunpack.c.l.b16 %v4580
        %v4779 = vunpack.c.h.b16 %v4580
        %v4780 = vunpack.c.l.b16 %v4581
        %v4781 = vunpack.c.h.b16 %v4581
        %v4782 = vunpack.c.l.b16 %v4582
        %v4783 = vunpack.c.h.b16 %v4582
        %v4784 = vunpack.c.l.b16 %v4583
        %v4785 = vunpack.c.h.b16 %v4583
        %v4786 = vunpack.c.l.b16 %v4584
        %v4787 = vunpack.c.h.b16 %v4584
        %v4788 = vunpack.c.l.b16 %v4585
        %v4789 = vunpack.c.h.b16 %v4585
        %v4790 = vunpack.c.l.b16 %v4586
        %v4791 = vunpack.c.h.b16 %v4586
        %v4792 = vpack.c.b16 %v4666, %v4664
        %v4793 = vpack.c.b16 %v4667, %v4665
        %v4794 = vpack.c.b16 %v4670, %v4668
        %v4795 = vpack.c.b16 %v4671, %v4669
        %v4796 = vpack.c.b16 %v4674, %v4672
        %v4797 = vpack.c.b16 %v4675, %v4673
        %v4798 = vpack.c.b16 %v4678, %v4676
        %v4799 = vpack.c.b16 %v4679, %v4677
        %v4800 = vpack.c.b16 %v4682, %v4680
        %v4801 = vpack.c.b16 %v4683, %v4681
        %v4802 = vpack.c.b16 %v4686, %v4684
        %v4803 = vpack.c.b16 %v4687, %v4685
        %v4804 = vpack.c.b16 %v4690, %v4688
        %v4805 = vpack.c.b16 %v4691, %v4689
        %v4806 = vpack.c.b16 %v4694, %v4692
        %v4807 = vpack.c.b16 %v4695, %v4693
        %v4808 = vpack.c.b16 %v4698, %v4696
        %v4809 = vpack.c.b16 %v4699, %v4697
        %v4810 = vpack.c.b16 %v4702, %v4700
        %v4811 = vpack.c.b16 %v4703, %v4701
        %v4812 = vpack.c.b16 %v4706, %v4704
        %v4813 = vpack.c.b16 %v4707, %v4705
        %v4814 = vpack.c.b16 %v4710, %v4708
        %v4815 = vpack.c.b16 %v4711, %v4709
        %v4816 = vpack.c.b16 %v4714, %v4712
        %v4817 = vpack.c.b16 %v4715, %v4713
        %v4818 = vpack.c.b16 %v4718, %v4716
        %v4819 = vpack.c.b16 %v4719, %v4717
        %v4820 = vpack.c.b16 %v4722, %v4720
        %v4821 = vpack.c.b16 %v4723, %v4721
        %v4822 = vpack.c.b16 %v4726, %v4724
        %v4823 = vpack.c.b16 %v4727, %v4725
        %v4824 = vpack.c.b16 %v4730, %v4728
        %v4825 = vpack.c.b16 %v4731, %v4729
        %v4826 = vpack.c.b16 %v4734, %v4732
        %v4827 = vpack.c.b16 %v4735, %v4733
        %v4828 = vpack.c.b16 %v4738, %v4736
        %v4829 = vpack.c.b16 %v4739, %v4737
        %v4830 = vpack.c.b16 %v4742, %v4740
        %v4831 = vpack.c.b16 %v4743, %v4741
        %v4832 = vpack.c.b16 %v4746, %v4744
        %v4833 = vpack.c.b16 %v4747, %v4745
        %v4834 = vpack.c.b16 %v4750, %v4748
        %v4835 = vpack.c.b16 %v4751, %v4749
        %v4836 = vpack.c.b16 %v4754, %v4752
        %v4837 = vpack.c.b16 %v4755, %v4753
        %v4838 = vpack.c.b16 %v4758, %v4756
        %v4839 = vpack.c.b16 %v4759, %v4757
        %v4840 = vpack.c.b16 %v4762, %v4760
        %v4841 = vpack.c.b16 %v4763, %v4761
        %v4842 = vpack.c.b16 %v4766, %v4764
        %v4843 = vpack.c.b16 %v4767, %v4765
        %v4844 = vpack.c.b16 %v4770, %v4768
        %v4845 = vpack.c.b16 %v4771, %v4769
        %v4846 = vpack.c.b16 %v4774, %v4772
        %v4847 = vpack.c.b16 %v4775, %v4773
        %v4848 = vpack.c.b16 %v4778, %v4776
        %v4849 = vpack.c.b16 %v4779, %v4777
        %v4850 = vpack.c.b16 %v4782, %v4780
        %v4851 = vpack.c.b16 %v4783, %v4781
        %v4852 = vpack.c.b16 %v4786, %v4784
        %v4853 = vpack.c.b16 %v4787, %v4785
        %v4854 = vpack.c.b16 %v4790, %v4788
        %v4855 = vpack.c.b16 %v4791, %v4789
        %4920 = vmatprep.subr.bf16.mxu0 %v4793
        %4921 = vmatpush1.bf16.msra.mxu0 %v4792
        %4922 = vmatprep.subr.bf16.mxu0 %v4795
        %4923 = vmatpush1.bf16.msra.mxu0 %v4794
        %4924 = vmatprep.subr.bf16.mxu0 %v4797
        %4925 = vmatpush1.bf16.msra.mxu0 %v4796
        %4926 = vmatprep.subr.bf16.mxu0 %v4799
        %4927 = vmatpush1.bf16.msra.mxu0 %v4798
        %4928 = vmatprep.subr.bf16.mxu0 %v4801
        %4929 = vmatpush1.bf16.msra.mxu0 %v4800
        %4930 = vmatprep.subr.bf16.mxu0 %v4803
        %4931 = vmatpush1.bf16.msra.mxu0 %v4802
        %4932 = vmatprep.subr.bf16.mxu0 %v4805
        %4933 = vmatpush1.bf16.msra.mxu0 %v4804
        %4934 = vmatprep.subr.bf16.mxu0 %v4807
        %4935 = vmatpush1.bf16.msra.mxu0 %v4806
        %4936 = vmatprep.subr.bf16.mxu0 %v4809
        %4937 = vmatpush1.bf16.msra.mxu0 %v4808
        %4938 = vmatprep.subr.bf16.mxu0 %v4811
        %4939 = vmatpush1.bf16.msra.mxu0 %v4810
        %4940 = vmatprep.subr.bf16.mxu0 %v4813
        %4941 = vmatpush1.bf16.msra.mxu0 %v4812
        %4942 = vmatprep.subr.bf16.mxu0 %v4815
        %4943 = vmatpush1.bf16.msra.mxu0 %v4814
        %4944 = vmatprep.subr.bf16.mxu0 %v4817
        %4945 = vmatpush1.bf16.msra.mxu0 %v4816
        %4946 = vmatprep.subr.bf16.mxu0 %v4819
        %4947 = vmatpush1.bf16.msra.mxu0 %v4818
        %4948 = vmatprep.subr.bf16.mxu0 %v4821
        %4949 = vmatpush1.bf16.msra.mxu0 %v4820
        %4950 = vmatprep.subr.bf16.mxu0 %v4823
        %4951 = vmatpush1.bf16.msra.mxu0 %v4822
        %4952 = vmatprep.mubr.bf16.mxu0 %v4492
        %4953 = vmatmul.mubr.bf16.gmra.mrb[0].mxu0 %v4491
        %v4954 = vpop.f32.mrb[0].mxu0
        %v4955 = vadd.f32 %v4593, %v4954
        %v4956 = vpop.f32.mrb[0].mxu0
        %v4957 = vadd.f32 %v4597, %v4956
        %v4958 = vpop.f32.mrb[0].mxu0
        %v4959 = vadd.f32 %v4593, %v4958
        %v4960 = vpop.f32.mrb[0].mxu0
        %v4961 = vadd.f32 %v4597, %v4960
        %4962 = vmatprep.mubr.bf16.mxu0 %v4496
        %4963 = vmatmul.mubr.bf16.gmra.mrb[0].mxu0 %v4495
        %v4964 = vpop.f32.mrb[0].mxu0
        %v4965 = vadd.f32 %v4593, %v4964
        %v4966 = vpop.f32.mrb[0].mxu0
        %v4967 = vadd.f32 %v4597, %v4966
        %v4968 = vpop.f32.mrb[0].mxu0
        %v4969 = vadd.f32 %v4593, %v4968
        %v4970 = vpop.f32.mrb[0].mxu0
        %v4971 = vadd.f32 %v4597, %v4970
        %4972 = vmatprep.mubr.bf16.mxu0 %v4500
        %4973 = vmatmul.mubr.bf16.gmra.mrb[0].mxu0 %v4499
        %v4974 = vpop.f32.mrb[0].mxu0
        %v4975 = vadd.f32 %v4593, %v4974
        %v4976 = vpop.f32.mrb[0].mxu0
        %v4977 = vadd.f32 %v4597, %v4976
        %v4978 = vpop.f32.mrb[0].mxu0
        %v4979 = vadd.f32 %v4593, %v4978
        %v4980 = vpop.f32.mrb[0].mxu0
        %v4981 = vadd.f32 %v4597, %v4980
        %4982 = vmatprep.mubr.bf16.mxu0 %v4504
        %4983 = vmatmul.mubr.bf16.gmra.mrb[0].mxu0 %v4503
        %v4984 = vpop.f32.mrb[0].mxu0
        %v4985 = vadd.f32 %v4593, %v4984
        %v4986 = vpop.f32.mrb[0].mxu0
        %v4987 = vadd.f32 %v4597, %v4986
        %v4988 = vpop.f32.mrb[0].mxu0
        %v4989 = vadd.f32 %v4593, %v4988
        %v4990 = vpop.f32.mrb[0].mxu0
        %v4991 = vadd.f32 %v4597, %v4990
        %4992 = vmatprep.mubr.bf16.mxu0 %v4508
        %4993 = vmatmul.mubr.bf16.gmra.mrb[0].mxu0 %v4507
        %v4994 = vpop.f32.mrb[0].mxu0
        %v4995 = vadd.f32 %v4593, %v4994
        %v4996 = vpop.f32.mrb[0].mxu0
        %v4997 = vadd.f32 %v4597, %v4996
        %v4998 = vpop.f32.mrb[0].mxu0
        %v4999 = vadd.f32 %v4593, %v4998
        %v5000 = vpop.f32.mrb[0].mxu0
        %v5001 = vadd.f32 %v4597, %v5000
        %5002 = vmatprep.mubr.bf16.mxu0 %v4512
        %5003 = vmatmul.mubr.bf16.gmra.mrb[0].mxu0 %v4511
        %v5004 = vpop.f32.mrb[0].mxu0
        %v5005 = vadd.f32 %v4593, %v5004
        %v5006 = vpop.f32.mrb[0].mxu0
        %v5007 = vadd.f32 %v4597, %v5006
        %v5008 = vpop.f32.mrb[0].mxu0
        %v5009 = vadd.f32 %v4593, %v5008
        %v5010 = vpop.f32.mrb[0].mxu0
        %v5011 = vadd.f32 %v4597, %v5010
        %5012 = vmatprep.mubr.bf16.mxu0 %v4516
        %5013 = vmatmul.mubr.bf16.gmra.mrb[0].mxu0 %v4515
        %v5014 = vpop.f32.mrb[0].mxu0
        %v5015 = vadd.f32 %v4593, %v5014
        %v5016 = vpop.f32.mrb[0].mxu0
        %v5017 = vadd.f32 %v4597, %v5016
        %v5018 = vpop.f32.mrb[0].mxu0
        %v5019 = vadd.f32 %v4593, %v5018
        %v5020 = vpop.f32.mrb[0].mxu0
        %v5021 = vadd.f32 %v4597, %v5020
        %5022 = vmatprep.mubr.bf16.mxu0 %v4520
        %5023 = vmatmul.mubr.bf16.gmra.mrb[0].mxu0 %v4519
        %v5024 = vpop.f32.mrb[0].mxu0
        %v5025 = vadd.f32 %v4593, %v5024
        %v5026 = vpop.f32.mrb[0].mxu0
        %v5027 = vadd.f32 %v4597, %v5026
        %v5028 = vpop.f32.mrb[0].mxu0
        %v5029 = vadd.f32 %v4593, %v5028
        %v5030 = vpop.f32.mrb[0].mxu0
        %v5031 = vadd.f32 %v4597, %v5030
        %5032 = vdwg.mxu0
        %5033 = vmatprep.subr.bf16.mxu0 %v4825
        %5034 = vmatpush1.bf16.msra.mxu0 %v4824
        %5035 = vmatprep.subr.bf16.mxu0 %v4827
        %5036 = vmatpush1.bf16.msra.mxu0 %v4826
        %5037 = vmatprep.subr.bf16.mxu0 %v4829
        %5038 = vmatpush1.bf16.msra.mxu0 %v4828
        %5039 = vmatprep.subr.bf16.mxu0 %v4831
        %5040 = vmatpush1.bf16.msra.mxu0 %v4830
        %5041 = vmatprep.subr.bf16.mxu0 %v4833
        %5042 = vmatpush1.bf16.msra.mxu0 %v4832
        %5043 = vmatprep.subr.bf16.mxu0 %v4835
        %5044 = vmatpush1.bf16.msra.mxu0 %v4834
        %5045 = vmatprep.subr.bf16.mxu0 %v4837
        %5046 = vmatpush1.bf16.msra.mxu0 %v4836
        %5047 = vmatprep.subr.bf16.mxu0 %v4839
        %5048 = vmatpush1.bf16.msra.mxu0 %v4838
        %5049 = vmatprep.subr.bf16.mxu0 %v4841
        %5050 = vmatpush1.bf16.msra.mxu0 %v4840
        %5051 = vmatprep.subr.bf16.mxu0 %v4843
        %5052 = vmatpush1.bf16.msra.mxu0 %v4842
        %5053 = vmatprep.subr.bf16.mxu0 %v4845
        %5054 = vmatpush1.bf16.msra.mxu0 %v4844
        %5055 = vmatprep.subr.bf16.mxu0 %v4847
        %5056 = vmatpush1.bf16.msra.mxu0 %v4846
        %5057 = vmatprep.subr.bf16.mxu0 %v4849
        %5058 = vmatpush1.bf16.msra.mxu0 %v4848
        %5059 = vmatprep.subr.bf16.mxu0 %v4851
        %5060 = vmatpush1.bf16.msra.mxu0 %v4850
        %5061 = vmatprep.subr.bf16.mxu0 %v4853
        %5062 = vmatpush1.bf16.msra.mxu0 %v4852
        %5063 = vmatprep.subr.bf16.mxu0 %v4855
        %5064 = vmatpush1.bf16.msra.mxu0 %v4854
        %5065 = vmatprep.mubr.bf16.mxu0 %v4494
        %5066 = vmatmul.mubr.bf16.gmra.mrb[0].mxu0 %v4493
        %v5067 = vpop.f32.mrb[0].mxu0
        %v5068 = vadd.f32 %v4955, %v5067
        %v5069 = vpop.f32.mrb[0].mxu0
        %v5070 = vadd.f32 %v4957, %v5069
        %v5071 = vpop.f32.mrb[0].mxu0
        %v5072 = vadd.f32 %v4959, %v5071
        %v5073 = vpop.f32.mrb[0].mxu0
        %v5074 = vadd.f32 %v4961, %v5073
        %5075 = vmatprep.mubr.bf16.mxu0 %v4498
        %5076 = vmatmul.mubr.bf16.gmra.mrb[0].mxu0 %v4497
        %v5077 = vpop.f32.mrb[0].mxu0
        %v5078 = vadd.f32 %v4965, %v5077
        %v5079 = vpop.f32.mrb[0].mxu0
        %v5080 = vadd.f32 %v4967, %v5079
        %v5081 = vpop.f32.mrb[0].mxu0
        %v5082 = vadd.f32 %v4969, %v5081
        %v5083 = vpop.f32.mrb[0].mxu0
        %v5084 = vadd.f32 %v4971, %v5083
        %5085 = vmatprep.mubr.bf16.mxu0 %v4502
        %5086 = vmatmul.mubr.bf16.gmra.mrb[0].mxu0 %v4501
        %v5087 = vpop.f32.mrb[0].mxu0
        %v5088 = vadd.f32 %v4975, %v5087
        %v5089 = vpop.f32.mrb[0].mxu0
        %v5090 = vadd.f32 %v4977, %v5089
        %v5091 = vpop.f32.mrb[0].mxu0
        %v5092 = vadd.f32 %v4979, %v5091
        %v5093 = vpop.f32.mrb[0].mxu0
        %v5094 = vadd.f32 %v4981, %v5093
        %5095 = vmatprep.mubr.bf16.mxu0 %v4506
        %5096 = vmatmul.mubr.bf16.gmra.mrb[0].mxu0 %v4505
        %v5097 = vpop.f32.mrb[0].mxu0
        %v5098 = vadd.f32 %v4985, %v5097
        %v5099 = vpop.f32.mrb[0].mxu0
        %v5100 = vadd.f32 %v4987, %v5099
        %v5101 = vpop.f32.mrb[0].mxu0
        %v5102 = vadd.f32 %v4989, %v5101
        %v5103 = vpop.f32.mrb[0].mxu0
        %v5104 = vadd.f32 %v4991, %v5103
        %5105 = vmatprep.mubr.bf16.mxu0 %v4510
        %5106 = vmatmul.mubr.bf16.gmra.mrb[0].mxu0 %v4509
        %v5107 = vpop.f32.mrb[0].mxu0
        %v5108 = vadd.f32 %v4995, %v5107
        %v5109 = vpop.f32.mrb[0].mxu0
        %v5110 = vadd.f32 %v4997, %v5109
        %v5111 = vpop.f32.mrb[0].mxu0
        %v5112 = vadd.f32 %v4999, %v5111
        %v5113 = vpop.f32.mrb[0].mxu0
        %v5114 = vadd.f32 %v5001, %v5113
        %5115 = vmatprep.mubr.bf16.mxu0 %v4514
        %5116 = vmatmul.mubr.bf16.gmra.mrb[0].mxu0 %v4513
        %v5117 = vpop.f32.mrb[0].mxu0
        %v5118 = vadd.f32 %v5005, %v5117
        %v5119 = vpop.f32.mrb[0].mxu0
        %v5120 = vadd.f32 %v5007, %v5119
        %v5121 = vpop.f32.mrb[0].mxu0
        %v5122 = vadd.f32 %v5009, %v5121
        %v5123 = vpop.f32.mrb[0].mxu0
        %v5124 = vadd.f32 %v5011, %v5123
        %5125 = vmatprep.mubr.bf16.mxu0 %v4518
        %5126 = vmatmul.mubr.bf16.gmra.mrb[0].mxu0 %v4517
        %v5127 = vpop.f32.mrb[0].mxu0
        %v5128 = vadd.f32 %v5015, %v5127
        %v5129 = vpop.f32.mrb[0].mxu0
        %v5130 = vadd.f32 %v5017, %v5129
        %v5131 = vpop.f32.mrb[0].mxu0
        %v5132 = vadd.f32 %v5019, %v5131
        %v5133 = vpop.f32.mrb[0].mxu0
        %v5134 = vadd.f32 %v5021, %v5133
        %5135 = vmatprep.mubr.bf16.mxu0 %v4522
        %5136 = vmatmul.mubr.bf16.gmra.mrb[0].mxu0 %v4521
        %v5137 = vpop.f32.mrb[0].mxu0
        %v5138 = vadd.f32 %v5025, %v5137
        %v5139 = vpop.f32.mrb[0].mxu0
        %v5140 = vadd.f32 %v5027, %v5139
        %v5141 = vpop.f32.mrb[0].mxu0
        %v5142 = vadd.f32 %v5029, %v5141
        %v5143 = vpop.f32.mrb[0].mxu0
        %v5144 = vadd.f32 %v5031, %v5143
        %5145 = vdwg.mxu0
        %v5146 = vadd.f32 %v3235, %v5068
        %v5147 = vadd.f32 %v3236, %v5070
        %v5148 = vadd.f32 %v3237, %v5072
        %v5149 = vadd.f32 %v3238, %v5074
        %v5150 = vadd.f32 %v3239, %v5078
        %v5151 = vadd.f32 %v3240, %v5080
        %v5152 = vadd.f32 %v3241, %v5082
        %v5153 = vadd.f32 %v3242, %v5084
        %v5154 = vadd.f32 %v3243, %v5088
        %v5155 = vadd.f32 %v3244, %v5090
        %v5156 = vadd.f32 %v3245, %v5092
        %v5157 = vadd.f32 %v3246, %v5094
        %v5158 = vadd.f32 %v3247, %v5098
        %v5159 = vadd.f32 %v3248, %v5100
        %v5160 = vadd.f32 %v3249, %v5102
        %v5161 = vadd.f32 %v3250, %v5104
        %v5162 = vadd.f32 %v3251, %v5108
        %v5163 = vadd.f32 %v3252, %v5110
        %v5164 = vadd.f32 %v3253, %v5112
        %v5165 = vadd.f32 %v3254, %v5114
        %v5166 = vadd.f32 %v3255, %v5118
        %v5167 = vadd.f32 %v3256, %v5120
        %v5168 = vadd.f32 %v3257, %v5122
        %v5169 = vadd.f32 %v3258, %v5124
        %v5170 = vadd.f32 %v3259, %v5128
        %v5171 = vadd.f32 %v3260, %v5130
        %v5172 = vadd.f32 %v3261, %v5132
        %v5173 = vadd.f32 %v3262, %v5134
        %v5174 = vadd.f32 %v3263, %v5138
        %v5175 = vadd.f32 %v3264, %v5140
        %v5176 = vadd.f32 %v3265, %v5142
        %v5177 = vadd.f32 %v3266, %v5144
        %s5178 = scalar_lea.vmem [#allocation11], 17
        %v5179 = vld [vmem:[%s5178] ss:$8 sm:$0x3]
        %s5180 = scalar_lea.vmem [#allocation11], 18
        %v5181 = vld [vmem:[%s5180] ss:$8 sm:$0x3]
        %v5182 = vadd.f32 %v5146, %v5147
        %5183 = vadd.xlane.f32.xlu0 %v5182
        %v5184 = vpop.xlane.xlu0 %5183
        %v5185 = vadd.f32 %v5148, %v5149
        %5186 = vadd.xlane.f32.xlu0 %v5185
        %v5187 = vpop.xlane.xlu0 %5186
        %v5188 = vadd.f32 %v5150, %v5151
        %5189 = vadd.xlane.f32.xlu0 %v5188
        %v5190 = vpop.xlane.xlu0 %5189
        %v5191 = vadd.f32 %v5152, %v5153
        %5192 = vadd.xlane.f32.xlu0 %v5191
        %v5193 = vpop.xlane.xlu0 %5192
        %v5194 = vadd.f32 %v5154, %v5155
        %5195 = vadd.xlane.f32.xlu0 %v5194
        %v5196 = vpop.xlane.xlu0 %5195
        %v5197 = vadd.f32 %v5156, %v5157
        %5198 = vadd.xlane.f32.xlu0 %v5197
        %v5199 = vpop.xlane.xlu0 %5198
        %v5200 = vadd.f32 %v5158, %v5159
        %5201 = vadd.xlane.f32.xlu0 %v5200
        %v5202 = vpop.xlane.xlu0 %5201
        %v5203 = vadd.f32 %v5160, %v5161
        %5204 = vadd.xlane.f32.xlu0 %v5203
        %v5205 = vpop.xlane.xlu0 %5204
        %v5206 = vadd.f32 %v5162, %v5163
        %5207 = vadd.xlane.f32.xlu0 %v5206
        %v5208 = vpop.xlane.xlu0 %5207
        %v5209 = vadd.f32 %v5164, %v5165
        %5210 = vadd.xlane.f32.xlu0 %v5209
        %v5211 = vpop.xlane.xlu0 %5210
        %v5212 = vadd.f32 %v5166, %v5167
        %5213 = vadd.xlane.f32.xlu0 %v5212
        %v5214 = vpop.xlane.xlu0 %5213
        %v5215 = vadd.f32 %v5168, %v5169
        %5216 = vadd.xlane.f32.xlu0 %v5215
        %v5217 = vpop.xlane.xlu0 %5216
        %v5218 = vadd.f32 %v5170, %v5171
        %5219 = vadd.xlane.f32.xlu0 %v5218
        %v5220 = vpop.xlane.xlu0 %5219
        %v5221 = vadd.f32 %v5172, %v5173
        %5222 = vadd.xlane.f32.xlu0 %v5221
        %v5223 = vpop.xlane.xlu0 %5222
        %v5224 = vadd.f32 %v5174, %v5175
        %5225 = vadd.xlane.f32.xlu0 %v5224
        %v5226 = vpop.xlane.xlu0 %5225
        %v5227 = vadd.f32 %v5176, %v5177
        %5228 = vadd.xlane.f32.xlu0 %v5227
        %v5229 = vpop.xlane.xlu0 %5228
        %v5230 = vmul.f32 %v5184, %v454
        %v5231 = vmul.f32 %v5187, %v454
        %v5232 = vmul.f32 %v5190, %v454
        %v5233 = vmul.f32 %v5193, %v454
        %v5234 = vmul.f32 %v5196, %v454
        %v5235 = vmul.f32 %v5199, %v454
        %v5236 = vmul.f32 %v5202, %v454
        %v5237 = vmul.f32 %v5205, %v454
        %v5238 = vmul.f32 %v5208, %v454
        %v5239 = vmul.f32 %v5211, %v454
        %v5240 = vmul.f32 %v5214, %v454
        %v5241 = vmul.f32 %v5217, %v454
        %v5242 = vmul.f32 %v5220, %v454
        %v5243 = vmul.f32 %v5223, %v454
        %v5244 = vmul.f32 %v5226, %v454
        %v5245 = vmul.f32 %v5229, %v454
        %v5246 = vsub.f32 %v5146, %v5230
        %v5247 = vsub.f32 %v5147, %v5230
        %v5248 = vsub.f32 %v5148, %v5231
        %v5249 = vsub.f32 %v5149, %v5231
        %v5250 = vsub.f32 %v5150, %v5232
        %v5251 = vsub.f32 %v5151, %v5232
        %v5252 = vsub.f32 %v5152, %v5233
        %v5253 = vsub.f32 %v5153, %v5233
        %v5254 = vsub.f32 %v5154, %v5234
        %v5255 = vsub.f32 %v5155, %v5234
        %v5256 = vsub.f32 %v5156, %v5235
        %v5257 = vsub.f32 %v5157, %v5235
        %v5258 = vsub.f32 %v5158, %v5236
        %v5259 = vsub.f32 %v5159, %v5236
        %v5260 = vsub.f32 %v5160, %v5237
        %v5261 = vsub.f32 %v5161, %v5237
        %v5262 = vsub.f32 %v5162, %v5238
        %v5263 = vsub.f32 %v5163, %v5238
        %v5264 = vsub.f32 %v5164, %v5239
        %v5265 = vsub.f32 %v5165, %v5239
        %v5266 = vsub.f32 %v5166, %v5240
        %v5267 = vsub.f32 %v5167, %v5240
        %v5268 = vsub.f32 %v5168, %v5241
        %v5269 = vsub.f32 %v5169, %v5241
        %v5270 = vsub.f32 %v5170, %v5242
        %v5271 = vsub.f32 %v5171, %v5242
        %v5272 = vsub.f32 %v5172, %v5243
        %v5273 = vsub.f32 %v5173, %v5243
        %v5274 = vsub.f32 %v5174, %v5244
        %v5275 = vsub.f32 %v5175, %v5244
        %v5276 = vsub.f32 %v5176, %v5245
        %v5277 = vsub.f32 %v5177, %v5245
        %v5278 = vmul.f32 %v5246, %v5246
        %v5279 = vmul.f32 %v5247, %v5247
        %v5280 = vmul.f32 %v5248, %v5248
        %v5281 = vmul.f32 %v5249, %v5249
        %v5282 = vmul.f32 %v5250, %v5250
        %v5283 = vmul.f32 %v5251, %v5251
        %v5284 = vmul.f32 %v5252, %v5252
        %v5285 = vmul.f32 %v5253, %v5253
        %v5286 = vmul.f32 %v5254, %v5254
        %v5287 = vmul.f32 %v5255, %v5255
        %v5288 = vmul.f32 %v5256, %v5256
        %v5289 = vmul.f32 %v5257, %v5257
        %v5290 = vmul.f32 %v5258, %v5258
        %v5291 = vmul.f32 %v5259, %v5259
        %v5292 = vmul.f32 %v5260, %v5260
        %v5293 = vmul.f32 %v5261, %v5261
        %v5294 = vmul.f32 %v5262, %v5262
        %v5295 = vmul.f32 %v5263, %v5263
        %v5296 = vmul.f32 %v5264, %v5264
        %v5297 = vmul.f32 %v5265, %v5265
        %v5298 = vmul.f32 %v5266, %v5266
        %v5299 = vmul.f32 %v5267, %v5267
        %v5300 = vmul.f32 %v5268, %v5268
        %v5301 = vmul.f32 %v5269, %v5269
        %v5302 = vmul.f32 %v5270, %v5270
        %v5303 = vmul.f32 %v5271, %v5271
        %v5304 = vmul.f32 %v5272, %v5272
        %v5305 = vmul.f32 %v5273, %v5273
        %v5306 = vmul.f32 %v5274, %v5274
        %v5307 = vmul.f32 %v5275, %v5275
        %v5308 = vmul.f32 %v5276, %v5276
        %v5309 = vmul.f32 %v5277, %v5277
        %v5310 = vadd.f32 %v5278, %v5279
        %5311 = vadd.xlane.f32.xlu0 %v5310
        %v5312 = vpop.xlane.xlu0 %5311
        %v5313 = vadd.f32 %v5280, %v5281
        %5314 = vadd.xlane.f32.xlu0 %v5313
        %v5315 = vpop.xlane.xlu0 %5314
        %v5316 = vadd.f32 %v5282, %v5283
        %5317 = vadd.xlane.f32.xlu0 %v5316
        %v5318 = vpop.xlane.xlu0 %5317
        %v5319 = vadd.f32 %v5284, %v5285
        %5320 = vadd.xlane.f32.xlu0 %v5319
        %v5321 = vpop.xlane.xlu0 %5320
        %v5322 = vadd.f32 %v5286, %v5287
        %5323 = vadd.xlane.f32.xlu0 %v5322
        %v5324 = vpop.xlane.xlu0 %5323
        %v5325 = vadd.f32 %v5288, %v5289
        %5326 = vadd.xlane.f32.xlu0 %v5325
        %v5327 = vpop.xlane.xlu0 %5326
        %v5328 = vadd.f32 %v5290, %v5291
        %5329 = vadd.xlane.f32.xlu0 %v5328
        %v5330 = vpop.xlane.xlu0 %5329
        %v5331 = vadd.f32 %v5292, %v5293
        %5332 = vadd.xlane.f32.xlu0 %v5331
        %v5333 = vpop.xlane.xlu0 %5332
        %v5334 = vadd.f32 %v5294, %v5295
        %5335 = vadd.xlane.f32.xlu0 %v5334
        %v5336 = vpop.xlane.xlu0 %5335
        %v5337 = vadd.f32 %v5296, %v5297
        %5338 = vadd.xlane.f32.xlu0 %v5337
        %v5339 = vpop.xlane.xlu0 %5338
        %v5340 = vadd.f32 %v5298, %v5299
        %5341 = vadd.xlane.f32.xlu0 %v5340
        %v5342 = vpop.xlane.xlu0 %5341
        %v5343 = vadd.f32 %v5300, %v5301
        %5344 = vadd.xlane.f32.xlu0 %v5343
        %v5345 = vpop.xlane.xlu0 %5344
        %v5346 = vadd.f32 %v5302, %v5303
        %5347 = vadd.xlane.f32.xlu0 %v5346
        %v5348 = vpop.xlane.xlu0 %5347
        %v5349 = vadd.f32 %v5304, %v5305
        %5350 = vadd.xlane.f32.xlu0 %v5349
        %v5351 = vpop.xlane.xlu0 %5350
        %v5352 = vadd.f32 %v5306, %v5307
        %5353 = vadd.xlane.f32.xlu0 %v5352
        %v5354 = vpop.xlane.xlu0 %5353
        %v5355 = vadd.f32 %v5308, %v5309
        %5356 = vadd.xlane.f32.xlu0 %v5355
        %v5357 = vpop.xlane.xlu0 %5356
        %v5358 = vmul.f32 %v5312, %v454
        %v5359 = vmul.f32 %v5315, %v454
        %v5360 = vmul.f32 %v5318, %v454
        %v5361 = vmul.f32 %v5321, %v454
        %v5362 = vmul.f32 %v5324, %v454
        %v5363 = vmul.f32 %v5327, %v454
        %v5364 = vmul.f32 %v5330, %v454
        %v5365 = vmul.f32 %v5333, %v454
        %v5366 = vmul.f32 %v5336, %v454
        %v5367 = vmul.f32 %v5339, %v454
        %v5368 = vmul.f32 %v5342, %v454
        %v5369 = vmul.f32 %v5345, %v454
        %v5370 = vmul.f32 %v5348, %v454
        %v5371 = vmul.f32 %v5351, %v454
        %v5372 = vmul.f32 %v5354, %v454
        %v5373 = vmul.f32 %v5357, %v454
        %v5374 = vadd.f32 %v5358, 1e-12
        %v5375 = vadd.f32 %v5359, 1e-12
        %v5376 = vadd.f32 %v5360, 1e-12
        %v5377 = vadd.f32 %v5361, 1e-12
        %v5378 = vadd.f32 %v5362, 1e-12
        %v5379 = vadd.f32 %v5363, 1e-12
        %v5380 = vadd.f32 %v5364, 1e-12
        %v5381 = vadd.f32 %v5365, 1e-12
        %v5382 = vadd.f32 %v5366, 1e-12
        %v5383 = vadd.f32 %v5367, 1e-12
        %v5384 = vadd.f32 %v5368, 1e-12
        %v5385 = vadd.f32 %v5369, 1e-12
        %v5386 = vadd.f32 %v5370, 1e-12
        %v5387 = vadd.f32 %v5371, 1e-12
        %v5388 = vadd.f32 %v5372, 1e-12
        %v5389 = vadd.f32 %v5373, 1e-12
        %v5390 = vrsqrt.pop %v5374
        %v5391 = vrsqrt.pop %v5375
        %v5392 = vrsqrt.pop %v5376
        %v5393 = vrsqrt.pop %v5377
        %v5394 = vrsqrt.pop %v5378
        %v5395 = vrsqrt.pop %v5379
        %v5396 = vrsqrt.pop %v5380
        %v5397 = vrsqrt.pop %v5381
        %v5398 = vrsqrt.pop %v5382
        %v5399 = vrsqrt.pop %v5383
        %v5400 = vrsqrt.pop %v5384
        %v5401 = vrsqrt.pop %v5385
        %v5402 = vrsqrt.pop %v5386
        %v5403 = vrsqrt.pop %v5387
        %v5404 = vrsqrt.pop %v5388
        %v5405 = vrsqrt.pop %v5389
        %v5406 = vmul.f32 %v5246, %v5390
        %v5407 = vmul.f32 %v5247, %v5390
        %v5408 = vmul.f32 %v5248, %v5391
        %v5409 = vmul.f32 %v5249, %v5391
        %v5410 = vmul.f32 %v5250, %v5392
        %v5411 = vmul.f32 %v5251, %v5392
        %v5412 = vmul.f32 %v5252, %v5393
        %v5413 = vmul.f32 %v5253, %v5393
        %v5414 = vmul.f32 %v5254, %v5394
        %v5415 = vmul.f32 %v5255, %v5394
        %v5416 = vmul.f32 %v5256, %v5395
        %v5417 = vmul.f32 %v5257, %v5395
        %v5418 = vmul.f32 %v5258, %v5396
        %v5419 = vmul.f32 %v5259, %v5396
        %v5420 = vmul.f32 %v5260, %v5397
        %v5421 = vmul.f32 %v5261, %v5397
        %v5422 = vmul.f32 %v5262, %v5398
        %v5423 = vmul.f32 %v5263, %v5398
        %v5424 = vmul.f32 %v5264, %v5399
        %v5425 = vmul.f32 %v5265, %v5399
        %v5426 = vmul.f32 %v5266, %v5400
        %v5427 = vmul.f32 %v5267, %v5400
        %v5428 = vmul.f32 %v5268, %v5401
        %v5429 = vmul.f32 %v5269, %v5401
        %v5430 = vmul.f32 %v5270, %v5402
        %v5431 = vmul.f32 %v5271, %v5402
        %v5432 = vmul.f32 %v5272, %v5403
        %v5433 = vmul.f32 %v5273, %v5403
        %v5434 = vmul.f32 %v5274, %v5404
        %v5435 = vmul.f32 %v5275, %v5404
        %v5436 = vmul.f32 %v5276, %v5405
        %v5437 = vmul.f32 %v5277, %v5405
        %v5439 = vlaneseq
        %v5440 = vshrl.u32 %v5439, 7
        %v5441 = vsub.s32 0, %v5440
        %v5442 = vrot.slane %v5179, %v5441
        %v5443 = vlaneseq
        %v5444 = vshrl.u32 %v5443, 7
        %v5445 = vsub.s32 1, %v5444
        %v5446 = vrot.slane %v5179, %v5445
        %v5449 = vmul.f32 %v5406, %v5442
        %v5450 = vmul.f32 %v5407, %v5446
        %v5451 = vmul.f32 %v5408, %v5442
        %v5452 = vmul.f32 %v5409, %v5446
        %v5453 = vmul.f32 %v5410, %v5442
        %v5454 = vmul.f32 %v5411, %v5446
        %v5455 = vmul.f32 %v5412, %v5442
        %v5456 = vmul.f32 %v5413, %v5446
        %v5457 = vmul.f32 %v5414, %v5442
        %v5458 = vmul.f32 %v5415, %v5446
        %v5459 = vmul.f32 %v5416, %v5442
        %v5460 = vmul.f32 %v5417, %v5446
        %v5461 = vmul.f32 %v5418, %v5442
        %v5462 = vmul.f32 %v5419, %v5446
        %v5463 = vmul.f32 %v5420, %v5442
        %v5464 = vmul.f32 %v5421, %v5446
        %v5465 = vmul.f32 %v5422, %v5442
        %v5466 = vmul.f32 %v5423, %v5446
        %v5467 = vmul.f32 %v5424, %v5442
        %v5468 = vmul.f32 %v5425, %v5446
        %v5469 = vmul.f32 %v5426, %v5442
        %v5470 = vmul.f32 %v5427, %v5446
        %v5471 = vmul.f32 %v5428, %v5442
        %v5472 = vmul.f32 %v5429, %v5446
        %v5473 = vmul.f32 %v5430, %v5442
        %v5474 = vmul.f32 %v5431, %v5446
        %v5475 = vmul.f32 %v5432, %v5442
        %v5476 = vmul.f32 %v5433, %v5446
        %v5477 = vmul.f32 %v5434, %v5442
        %v5478 = vmul.f32 %v5435, %v5446
        %v5479 = vmul.f32 %v5436, %v5442
        %v5480 = vmul.f32 %v5437, %v5446
        %v5482 = vlaneseq
        %v5483 = vshrl.u32 %v5482, 7
        %v5484 = vsub.s32 0, %v5483
        %v5485 = vrot.slane %v5181, %v5484
        %v5486 = vlaneseq
        %v5487 = vshrl.u32 %v5486, 7
        %v5488 = vsub.s32 1, %v5487
        %v5489 = vrot.slane %v5181, %v5488
        %v5492 = vadd.f32 %v5449, %v5485
        %v5493 = vadd.f32 %v5450, %v5489
        %v5494 = vadd.f32 %v5451, %v5485
        %v5495 = vadd.f32 %v5452, %v5489
        %v5496 = vadd.f32 %v5453, %v5485
        %v5497 = vadd.f32 %v5454, %v5489
        %v5498 = vadd.f32 %v5455, %v5485
        %v5499 = vadd.f32 %v5456, %v5489
        %v5500 = vadd.f32 %v5457, %v5485
        %v5501 = vadd.f32 %v5458, %v5489
        %v5502 = vadd.f32 %v5459, %v5485
        %v5503 = vadd.f32 %v5460, %v5489
        %v5504 = vadd.f32 %v5461, %v5485
        %v5505 = vadd.f32 %v5462, %v5489
        %v5506 = vadd.f32 %v5463, %v5485
        %v5507 = vadd.f32 %v5464, %v5489
        %v5508 = vadd.f32 %v5465, %v5485
        %v5509 = vadd.f32 %v5466, %v5489
        %v5510 = vadd.f32 %v5467, %v5485
        %v5511 = vadd.f32 %v5468, %v5489
        %v5512 = vadd.f32 %v5469, %v5485
        %v5513 = vadd.f32 %v5470, %v5489
        %v5514 = vadd.f32 %v5471, %v5485
        %v5515 = vadd.f32 %v5472, %v5489
        %v5516 = vadd.f32 %v5473, %v5485
        %v5517 = vadd.f32 %v5474, %v5489
        %v5518 = vadd.f32 %v5475, %v5485
        %v5519 = vadd.f32 %v5476, %v5489
        %v5520 = vadd.f32 %v5477, %v5485
        %v5521 = vadd.f32 %v5478, %v5489
        %v5522 = vadd.f32 %v5479, %v5485
        %v5523 = vadd.f32 %v5480, %v5489
        %v5524 = vpack.c.bf16 %v5494, %v5492
        %v5525 = vpack.c.bf16 %v5495, %v5493
        %v5526 = vpack.c.bf16 %v5498, %v5496
        %v5527 = vpack.c.bf16 %v5499, %v5497
        %v5528 = vpack.c.bf16 %v5502, %v5500
        %v5529 = vpack.c.bf16 %v5503, %v5501
        %v5530 = vpack.c.bf16 %v5506, %v5504
        %v5531 = vpack.c.bf16 %v5507, %v5505
        %v5532 = vpack.c.bf16 %v5510, %v5508
        %v5533 = vpack.c.bf16 %v5511, %v5509
        %v5534 = vpack.c.bf16 %v5514, %v5512
        %v5535 = vpack.c.bf16 %v5515, %v5513
        %v5536 = vpack.c.bf16 %v5518, %v5516
        %v5537 = vpack.c.bf16 %v5519, %v5517
        %v5538 = vpack.c.bf16 %v5522, %v5520
        %v5539 = vpack.c.bf16 %v5523, %v5521
        %v5556 = vunpack.c.l.b16 %v5524
        %v5557 = vunpack.c.l.b16 %v5525
        %v5558 = vunpack.c.h.b16 %v5524
        %v5559 = vunpack.c.h.b16 %v5525
        %v5560 = vunpack.c.l.b16 %v5526
        %v5561 = vunpack.c.l.b16 %v5527
        %v5562 = vunpack.c.h.b16 %v5526
        %v5563 = vunpack.c.h.b16 %v5527
        %v5564 = vunpack.c.l.b16 %v5528
        %v5565 = vunpack.c.l.b16 %v5529
        %v5566 = vunpack.c.h.b16 %v5528
        %v5567 = vunpack.c.h.b16 %v5529
        %v5568 = vunpack.c.l.b16 %v5530
        %v5569 = vunpack.c.l.b16 %v5531
        %v5570 = vunpack.c.h.b16 %v5530
        %v5571 = vunpack.c.h.b16 %v5531
        %v5572 = vunpack.c.l.b16 %v5532
        %v5573 = vunpack.c.l.b16 %v5533
        %v5574 = vunpack.c.h.b16 %v5532
        %v5575 = vunpack.c.h.b16 %v5533
        %v5576 = vunpack.c.l.b16 %v5534
        %v5577 = vunpack.c.l.b16 %v5535
        %v5578 = vunpack.c.h.b16 %v5534
        %v5579 = vunpack.c.h.b16 %v5535
        %v5580 = vunpack.c.l.b16 %v5536
        %v5581 = vunpack.c.l.b16 %v5537
        %v5582 = vunpack.c.h.b16 %v5536
        %v5583 = vunpack.c.h.b16 %v5537
        %v5584 = vunpack.c.l.b16 %v5538
        %v5585 = vunpack.c.l.b16 %v5539
        %v5586 = vunpack.c.h.b16 %v5538
        %v5587 = vunpack.c.h.b16 %v5539
        %v5588 = vpack.c.b16 %v5557, %v5556
        %v5589 = vpack.c.b16 %v5559, %v5558
        %v5590 = vpack.c.b16 %v5561, %v5560
        %v5591 = vpack.c.b16 %v5563, %v5562
        %v5592 = vpack.c.b16 %v5565, %v5564
        %v5593 = vpack.c.b16 %v5567, %v5566
        %v5594 = vpack.c.b16 %v5569, %v5568
        %v5595 = vpack.c.b16 %v5571, %v5570
        %v5596 = vpack.c.b16 %v5573, %v5572
        %v5597 = vpack.c.b16 %v5575, %v5574
        %v5598 = vpack.c.b16 %v5577, %v5576
        %v5599 = vpack.c.b16 %v5579, %v5578
        %v5600 = vpack.c.b16 %v5581, %v5580
        %v5601 = vpack.c.b16 %v5583, %v5582
        %v5602 = vpack.c.b16 %v5585, %v5584
        %v5603 = vpack.c.b16 %v5587, %v5586
        %5620 = vst [vmem:[%s369] sm:$0xff] %v5588
        %5621 = vst [vmem:[%s369 + $0x8] sm:$0xff] %v5589
        %5622 = vst [vmem:[%s369 + $0x10] sm:$0xff] %v5590
        %5623 = vst [vmem:[%s369 + $0x18] sm:$0xff] %v5591
        %5624 = vst [vmem:[%s369 + $0x20] sm:$0xff] %v5592
        %5625 = vst [vmem:[%s369 + $0x28] sm:$0xff] %v5593
        %5626 = vst [vmem:[%s369 + $0x30] sm:$0xff] %v5594
        %5627 = vst [vmem:[%s369 + $0x38] sm:$0xff] %v5595
        %5628 = vst [vmem:[%s369 + $0x40] sm:$0xff] %v5596
        %5629 = vst [vmem:[%s369 + $0x48] sm:$0xff] %v5597
        %5630 = vst [vmem:[%s369 + $0x50] sm:$0xff] %v5598
        %5631 = vst [vmem:[%s369 + $0x58] sm:$0xff] %v5599
        %5632 = vst [vmem:[%s369 + $0x60] sm:$0xff] %v5600
        %5633 = vst [vmem:[%s369 + $0x68] sm:$0xff] %v5601
        %5634 = vst [vmem:[%s369 + $0x70] sm:$0xff] %v5602
        %5635 = vst [vmem:[%s369 + $0x78] sm:$0xff] %v5603
        %s5636 = sand.u32 %s187, 1
        %s5637 = scalar_lea.sflag [#allocation4], %s5636
        %s5638 = sand.u32 %s187, 1
        %s5639 = smul.addr %s5638, 128
        %s5640 = scalar_lea.vmem [#allocation13], %s5639
        // Predicated region
        $region73: #{tpu_custom_call.1} parent=47 // pred_check
          %p5641 = pneg %p197
        $region74: #{tpu_custom_call.1} parent=47 // pred_check_branch
          %5643 = sbr.rel (%p5641) target = $region76
        $region75: #{tpu_custom_call.1} parent=47 // pred_region
          %s5645 = ssub.s32 2048, 2048
          %5646 = vsyncadd %s5637, %s5645
          %s5647 = smul.addr %s27, 32
          %s5648 = smul.addr %s5647, 64
          %s5649 = scalar_lea.hbm %s7, %s5648
          %s5650 = sshll.u32 %s5640, 4
          %s5651 = int_to_ptr.vmem [resolvable:$true] %s5650
          %5656 = dma.vmem_to_hbm [thread:$0]  %s5651, 2048, %s5649, %s5637, 128, 128, 8
        $region76: #{tpu_custom_call.1} parent=47 // pred_fallthru
          _
      $region48: #{tpu_custom_call.1} parent=5 // pred_fallthru
        _
      %p5657 = scmp.le.s32.totalorder 2, %s22
      // Predicated region
      $region77: #{tpu_custom_call.1} parent=5 // pred_check
        %p5658 = pneg %p5657
      $region78: #{tpu_custom_call.1} parent=5 // pred_check_branch
        %5660 = sbr.rel (%p5658) target = $region80
      $region79: #{tpu_custom_call.1} parent=5 // pred_region
        %s5661 = ssub.s32 %s22, 2
        // Predicated region
        $region81: #{tpu_custom_call.1} parent=79 // pred_check
          %p5662 = pneg %p203
        $region82: #{tpu_custom_call.1} parent=79 // pred_check_branch
          %5664 = sbr.rel (%p5662) target = $region84
        $region83: #{tpu_custom_call.1} parent=79 // pred_region
          %s5665 = sand.u32 %s188, 1
          %s5666 = scalar_lea.sflag [#allocation4], %s5665
          %s5667 = sand.u32 %s188, 1
          %s5668 = smul.addr %s5667, 128
          %s5669 = scalar_lea.vmem [#allocation13], %s5668
          %5670 = dma.done %s5666, 2048
        $region84: #{tpu_custom_call.1} parent=79 // pred_fallthru
          _
      $region80: #{tpu_custom_call.1} parent=5 // pred_fallthru
        _
    $region6: #{tpu_custom_call.1} parent=1 // loop_footer
      %s26 = sadd.s32 1, %s22
    $region7: #{tpu_custom_call.1} parent=1 // loop_footer_branch
      %21 = sbr.rel target = $region3
    $region8: #{tpu_custom_call.1} parent=1 // loop_exit
      _
    %5671 = vsyncpa [#allocation3], 1
    %s5672 = scalar_lea.sflag [#allocation3], 1
    %5673 = vsyncpa %s5672, 1
    %5674 = vsyncpa [#allocation6], 1
    %5675 = vsyncpa [#allocation9], 1
    %5676 = vsyncpa [#allocation12], 1
    %5677 = vsyncpa [#allocation4], 1
    %s5678 = scalar_lea.sflag [#allocation4], 1
    %5679 = vsyncpa %s5678, 1

</llo_original>
